<compile_context>
chip_gen: v6e
topology: v6e:2x2x1
jax: 0.10.0
libtpu: 0.0.40
codegen_flags: <defaults>
</compile_context>

<pallas_src>
import functools
import math

import numpy as np
import jax
import jax.numpy as jnp
from jax.experimental import pallas as pl
from jax.experimental.pallas import tpu as pltpu

# ----------------------------- configuration --------------------------------
IN_CH = 6        # in_channels
EDGE_DIM = 4     # edge_dim
HIDDEN = 32      # hidden_channels
OUT_CH = 16      # out_channels
NUM_LAYERS = 3
NUM_HEADS = 8
DH = HIDDEN // NUM_HEADS
DH_PAD = 8       # per-head dim padded to the sublane tile for clean head split/merge


# ------------------------------- kernel -------------------------------------
def _encoder_kernel(n_nodes, batch_size, num_layers, num_heads, dh_pad,
                    xT_ref, virtT_ref, edge_ref, maskb_ref,
                    winT_ref, binT_ref,
                    wqkvT_ref, bqkvT_ref,
                    we_ref,
                    woT_ref, boT_ref,
                    wout_ref, bout_ref,
                    out_ref,
                    h_scr):
    f32 = jnp.float32
    bf16 = jnp.bfloat16
    n_tot = n_nodes + batch_size
    hp = num_heads * dh_pad                      # padded concat-head width (64)
    edge_dim = we_ref.shape[-1]
    l = pl.program_id(0)

    # ---- layer 0: input projection + append virtual tokens (transposed) -----
    @pl.when(l == 0)
    def _init():
        h0 = jnp.dot(winT_ref[...], xT_ref[...],
                     preferred_element_type=f32) + binT_ref[...]     # [C, n_nodes]
        h_scr[:, :n_nodes] = h0
        h_scr[:, n_nodes:] = virtT_ref[...]

    hT = h_scr[...]                                                   # [C, N] f32

    # ---- fused QKV projection: one MXU call, lane dim = N -------------------
    qkvT = jnp.dot(wqkvT_ref[0], hT,
                   preferred_element_type=f32) + bqkvT_ref[0]         # [3*hp, N]
    qT = qkvT[0 * hp:1 * hp].reshape(num_heads, dh_pad, n_tot)        # [H, dhp, N]
    kT = qkvT[1 * hp:2 * hp].reshape(num_heads, dh_pad, n_tot)
    vT = qkvT[2 * hp:3 * hp].reshape(num_heads, dh_pad, n_tot)
    q = jnp.transpose(qT, (0, 2, 1)).astype(bf16)                     # [H, N, dhp]

    # ---- scores: batched MXU, lane-dense on keys ----------------------------
    # (1/sqrt(dh) already folded into w_q / b_q in the glue)
    s = jax.lax.dot_general(q, kT.astype(bf16),
                            (((2,), (1,)), ((0,), (0,))),
                            preferred_element_type=f32)               # [H, Nq, Nk]

    # ---- edge-conditioned bias rebuilt in-kernel + mask ----------------------
    s = s + maskb_ref[...][None]                                      # [1, N, N] bcast
    we = we_ref[0]                                                    # [H, E] f32
    edge = edge_ref[...].astype(f32)                                  # [E, N, N]
    for e in range(edge_dim):                                         # E=4 fused MACs
        s = s + we[:, e:e + 1][:, :, None] * edge[e][None]

    # ---- masked softmax (f32, v5e-safe); normalize after aggregation --------
    m = jnp.max(s, axis=2, keepdims=True)
    p = jnp.exp(s - m)
    denom = jnp.sum(p, axis=2)                                        # [H, Nq]

    # ---- PV aggregation transposed so the output lane dim is N --------------
    accT = jax.lax.dot_general(vT.astype(bf16), p.astype(bf16),
                               (((2,), (2,)), ((0,), (0,))),
                               preferred_element_type=f32)            # [H, dhp, Nq]
    accT = accT * pl.reciprocal(denom, approx=True)[:, None, :]
    accT_flat = accT.reshape(hp, n_tot)                               # heads merged

    # ---- output projection + residual + ReLU (lane-dense on N) --------------
    oT = jnp.dot(woT_ref[0], accT_flat,
                 preferred_element_type=f32) + boT_ref[0]             # [C, N]
    h_new = jnp.maximum(hT + oT, 0.0)
    h_scr[...] = h_new

    # ---- last layer: graph-level readout of the virtual tokens --------------
    @pl.when(l == num_layers - 1)
    def _readout():
        h_virt = h_new[:, n_nodes:n_nodes + batch_size]               # [C, B]
        out_ref[...] = jax.lax.dot_general(
            h_virt, wout_ref[...], (((0,), (0,)), ((), ())),
            preferred_element_type=f32) + bout_ref[...]


# --------------------------- plain-JAX glue ----------------------------------
def build_dense_graph(edge_index, edge_attr, batch):
    """Virtual-node augmentation + densification (mirrors the torch forward glue)."""
    edge_index = np.asarray(edge_index)
    batch = np.asarray(batch)
    n_nodes = batch.shape[0]
    batch_size = int(batch.max()) + 1
    n_tot = n_nodes + batch_size

    if edge_attr.ndim == 1:
        edge_attr = edge_attr[:, None]
    edge_dim = edge_attr.shape[-1]

    src, dst = edge_index[0], edge_index[1]
    # virtual edges: virtual node of each graph -> every real node of that graph
    v_src = n_nodes + batch
    v_dst = np.arange(n_nodes)
    src1 = np.concatenate([src, v_src])
    dst1 = np.concatenate([dst, v_dst])
    # add reversed edges
    src_all = np.concatenate([src1, dst1])
    dst_all = np.concatenate([dst1, src1])

    zero_virtual = jnp.zeros((n_nodes, edge_dim), jnp.float32)
    attr1 = jnp.concatenate([edge_attr.astype(jnp.float32), zero_virtual], axis=0)
    attr_all = jnp.concatenate([attr1, attr1], axis=0)            # [E_tot, edge_dim]

    mask = jnp.zeros((n_tot, n_tot), jnp.float32).at[dst_all, src_all].set(1.0)
    edge_dense = jnp.zeros((edge_dim, n_tot, n_tot), jnp.float32)
    edge_dense = edge_dense.at[:, dst_all, src_all].set(attr_all.T)
    return mask, edge_dense, n_nodes, batch_size


def _pad_heads_T(w, b, scale=1.0):
    """[L, C_in, C_out] / [L, 1, C_out] -> per-head transposed, dh padded to DH_PAD."""
    L, C = NUM_LAYERS, HIDDEN
    w = w * scale
    b = b * scale
    w_h = jnp.transpose(w.reshape(L, C, NUM_HEADS, DH), (0, 2, 3, 1))   # [L, H, dh, C_in]
    w_h = jnp.pad(w_h, ((0, 0), (0, 0), (0, DH_PAD - DH), (0, 0)))
    wT = w_h.reshape(L, NUM_HEADS * DH_PAD, C)                          # [L, 64, C_in]
    b_h = jnp.pad(b.reshape(L, NUM_HEADS, DH),
                  ((0, 0), (0, 0), (0, DH_PAD - DH)))
    bT = b_h.reshape(L, NUM_HEADS * DH_PAD, 1)                          # [L, 64, 1]
    return wT, bT


def graph_transformer_encoder(x, edge_index, edge_attr, batch, params):
    mask, edge_dense, n_nodes, batch_size = build_dense_graph(edge_index, edge_attr, batch)
    n_tot = n_nodes + batch_size
    L, C, H = NUM_LAYERS, HIDDEN, NUM_HEADS
    hp = H * DH_PAD

    # mask as an additive bias; edge tensor shipped once in bf16 (shared by all layers)
    mask_bias = jnp.where(mask > 0, 0.0, -1e30).astype(jnp.float32)     # [N, N]
    edge_bf16 = edge_dense.astype(jnp.bfloat16)                          # [E, N, N]

    # fused, transposed, head-padded QKV weights; 1/sqrt(dh) folded into q
    scale = 1.0 / math.sqrt(DH)
    wqT, bqT = _pad_heads_T(params["w_q"], params["b_q"], scale)
    wkT, bkT = _pad_heads_T(params["w_k"], params["b_k"])
    wvT, bvT = _pad_heads_T(params["w_v"], params["b_v"])
    w_qkvT = jnp.concatenate([wqT, wkT, wvT], axis=1)                    # [L, 192, 32]
    b_qkvT = jnp.concatenate([bqT, bkT, bvT], axis=1)                    # [L, 192, 1]

    # output projection, transposed + head-padded columns
    w_o_h = jnp.pad(params["w_o"].reshape(L, H, DH, C),
                    ((0, 0), (0, 0), (0, DH_PAD - DH), (0, 0)))          # [L, H, dhp, C]
    w_oT = jnp.transpose(w_o_h.reshape(L, hp, C), (0, 2, 1))             # [L, 32, 64]
    b_oT = jnp.transpose(params["b_o"], (0, 2, 1))                       # [L, 32, 1]

    w_e_heads = jnp.transpose(params["w_e"], (0, 2, 1))                  # [L, H, E]

    # transposed small tensors for the lane-dense orientation
    xT = jnp.transpose(x.astype(jnp.float32))                            # [IN_CH, n_nodes]
    virtT = jnp.tile(jnp.transpose(params["virtual_token"]), (1, batch_size))  # [C, B]
    w_inT = jnp.transpose(params["w_in"])                                 # [C, IN_CH]
    b_inT = jnp.transpose(params["b_in"])                                 # [C, 1]

    args = (xT, virtT, edge_bf16, mask_bias,
            w_inT, b_inT,
            w_qkvT, b_qkvT,
            w_e_heads,
            w_oT, b_oT,
            params["w_out"], params["b_out"])

    # VMEM budget: resident inputs + [H, N, N] f32 score/prob transients
    est_bytes = sum(int(np.prod(a.shape)) * np.dtype(a.dtype).itemsize for a in args)
    est_bytes += 4 * H * n_tot * n_tot * 4
    vmem_limit = int(min(max(2 * est_bytes, 16 << 20), 48 << 20))

    kernel = functools.partial(_encoder_kernel, n_nodes, batch_size,
                               NUM_LAYERS, NUM_HEADS, DH_PAD)

    full2 = lambda shp: pl.BlockSpec(shp, lambda l: (0, 0))
    in_specs = [
        full2((IN_CH, n_nodes)),                                     # xT
        full2((HIDDEN, batch_size)),                                 # virtT
        pl.BlockSpec((EDGE_DIM, n_tot, n_tot), lambda l: (0, 0, 0)), # edge_dense
        full2((n_tot, n_tot)),                                       # mask_bias
        full2((HIDDEN, IN_CH)),                                      # w_inT
        full2((HIDDEN, 1)),                                          # b_inT
        pl.BlockSpec((1, 3 * hp, HIDDEN), lambda l: (l, 0, 0)),      # w_qkvT (per layer)
        pl.BlockSpec((1, 3 * hp, 1), lambda l: (l, 0, 0)),           # b_qkvT
        pl.BlockSpec((1, H, EDGE_DIM), lambda l: (l, 0, 0)),         # w_e
        pl.BlockSpec((1, HIDDEN, hp), lambda l: (l, 0, 0)),          # w_oT
        pl.BlockSpec((1, HIDDEN, 1), lambda l: (l, 0, 0)),           # b_oT
        full2((HIDDEN, OUT_CH)),                                     # w_out
        full2((1, OUT_CH)),                                          # b_out
    ]

    out = pl.pallas_call(
        kernel,
        out_shape=jax.ShapeDtypeStruct((batch_size, OUT_CH), jnp.float32),
        grid_spec=pltpu.PrefetchScalarGridSpec(
            num_scalar_prefetch=0,
            grid=(NUM_LAYERS,),
            in_specs=in_specs,
            out_specs=pl.BlockSpec((batch_size, OUT_CH), lambda l: (0, 0)),
            scratch_shapes=[pltpu.VMEM((HIDDEN, n_tot), jnp.float32)],   # hidden carry
        ),
        compiler_params=pltpu.CompilerParams(
            dimension_semantics=("arbitrary",),
            vmem_limit_bytes=vmem_limit),
    )(*args)
    return out


# --------------------------- pure-JAX reference ------------------------------
def reference_forward(x, edge_index, edge_attr, batch, params):
    mask, edge_dense, n_nodes, batch_size = build_dense_graph(edge_index, edge_attr, batch)
    h = x.astype(jnp.float32) @ params["w_in"] + params["b_in"]
    virt = jnp.tile(params["virtual_token"], (batch_size, 1))
    h = jnp.concatenate([h, virt], axis=0)
    for l in range(NUM_LAYERS):
        q = h @ params["w_q"][l] + params["b_q"][l]
        k = h @ params["w_k"][l] + params["b_k"][l]
        v = h @ params["w_v"][l] + params["b_v"][l]
        heads = []
        for hd in range(NUM_HEADS):
            lo = hd * DH
            qh, kh, vh = q[:, lo:lo + DH], k[:, lo:lo + DH], v[:, lo:lo + DH]
            s = (qh @ kh.T) / math.sqrt(DH)
            s = s + jnp.einsum("enm,e->nm", edge_dense, params["w_e"][l, :, hd])
            s = jnp.where(mask > 0, s, -1e30)
            a = jax.nn.softmax(s, axis=1)
            heads.append(a @ vh)
        o = jnp.concatenate(heads, axis=1) @ params["w_o"][l] + params["b_o"][l]
        h = jnp.maximum(h + o, 0.0)
    return h[n_nodes:] @ params["w_out"] + params["b_out"]


# ------------------------------ parameters -----------------------------------
def init_params(key):
    ks = jax.random.split(key, 14)
    s = 0.15
    rnd = lambda k, shape: jax.random.normal(k, shape, jnp.float32) * s
    return {
        "virtual_token": rnd(ks[0], (1, HIDDEN)),
        "w_in": rnd(ks[1], (IN_CH, HIDDEN)),   "b_in": rnd(ks[2], (1, HIDDEN)),
        "w_q": rnd(ks[3], (NUM_LAYERS, HIDDEN, HIDDEN)),
        "b_q": rnd(ks[4], (NUM_LAYERS, 1, HIDDEN)),
        "w_k": rnd(ks[5], (NUM_LAYERS, HIDDEN, HIDDEN)),
        "b_k": rnd(ks[6], (NUM_LAYERS, 1, HIDDEN)),
        "w_v": rnd(ks[7], (NUM_LAYERS, HIDDEN, HIDDEN)),
        "b_v": rnd(ks[8], (NUM_LAYERS, 1, HIDDEN)),
        "w_o": rnd(ks[9], (NUM_LAYERS, HIDDEN, HIDDEN)),
        "b_o": rnd(ks[10], (NUM_LAYERS, 1, HIDDEN)),
        "w_e": rnd(ks[11], (NUM_LAYERS, EDGE_DIM, NUM_HEADS)),
        "w_out": rnd(ks[12], (HIDDEN, OUT_CH)), "b_out": rnd(ks[13], (1, OUT_CH)),
    }


# --------------------------------- main ---------------------------------------
if __name__ == "__main__":
    key = jax.random.PRNGKey(0)
    k_par, k_x, k_e = jax.random.split(key, 3)

    # small synthetic 2-graph batch: 5 + 6 nodes, 11 directed edges
    batch = np.array([0] * 5 + [1] * 6, dtype=np.int32)
    edge_index = np.array(
        [[0, 1, 2, 3, 0, 5, 6, 7, 8, 9, 5],
         [1, 2, 3, 4, 2, 6, 7, 8, 9, 10, 7]], dtype=np.int32)
    n_nodes = batch.shape[0]
    n_edges = edge_index.shape[1]

    x = jax.random.normal(k_x, (n_nodes, IN_CH), jnp.float32)
    edge_attr = jax.random.normal(k_e, (n_edges, EDGE_DIM), jnp.float32)

    params = init_params(k_par)

    out = graph_transformer_encoder(x, edge_index, edge_attr, batch, params)
    out = jax.block_until_ready(out)

    ref = reference_forward(x, edge_index, edge_attr, batch, params)
    err = float(jnp.max(jnp.abs(out - ref)))
    scale = 1.0 + float(jnp.max(jnp.abs(ref)))
    assert out.shape == (int(batch.max()) + 1, OUT_CH)
    # kernel uses bf16 MXU operands, bf16 edge tensor + approx reciprocal; reference is f32
    assert err < 5e-2 * scale, f"mismatch vs reference: {err}"

    print("KERNEL_OK")
</pallas_src>

<mosaic_0001>
module attributes {stable_mosaic.version = 11 : i64} {
  func.func @_encoder_kernel(%arg0: i32, %arg1: memref<6x11xf32, #tpu.memory_space<vmem>>, %arg2: memref<32x2xf32, #tpu.memory_space<vmem>>, %arg3: memref<4x13x13xbf16, #tpu.memory_space<vmem>>, %arg4: memref<13x13xf32, #tpu.memory_space<vmem>>, %arg5: memref<32x6xf32, #tpu.memory_space<vmem>>, %arg6: memref<32x1xf32, #tpu.memory_space<vmem>>, %arg7: memref<1x192x32xf32, #tpu.memory_space<vmem>>, %arg8: memref<1x192x1xf32, #tpu.memory_space<vmem>>, %arg9: memref<1x8x4xf32, #tpu.memory_space<vmem>>, %arg10: memref<1x32x64xf32, #tpu.memory_space<vmem>>, %arg11: memref<1x32x1xf32, #tpu.memory_space<vmem>>, %arg12: memref<32x16xf32, #tpu.memory_space<vmem>>, %arg13: memref<1x16xf32, #tpu.memory_space<vmem>>, %arg14: memref<2x16xf32, #tpu.memory_space<vmem>>, %arg15: memref<32x13xf32, #tpu.memory_space<vmem>>) attributes {dimension_semantics = [#tpu.dimension_semantics<arbitrary>], iteration_bounds = array<i64: 3>, scalar_prefetch = 0 : i64, scratch_operands = 1 : i64, tpu.core_type = #tpu.core_type<tc>, window_params = [{pipeline_mode = #tpu.pipeline_mode<synchronous>, transform_indices = @transform_0, window_bounds = array<i64: 6, 11>}, {pipeline_mode = #tpu.pipeline_mode<synchronous>, transform_indices = @transform_1, window_bounds = array<i64: 32, 2>}, {pipeline_mode = #tpu.pipeline_mode<synchronous>, transform_indices = @transform_2, window_bounds = array<i64: 4, 13, 13>}, {pipeline_mode = #tpu.pipeline_mode<synchronous>, transform_indices = @transform_3, window_bounds = array<i64: 13, 13>}, {pipeline_mode = #tpu.pipeline_mode<synchronous>, transform_indices = @transform_4, window_bounds = array<i64: 32, 6>}, {pipeline_mode = #tpu.pipeline_mode<synchronous>, transform_indices = @transform_5, window_bounds = array<i64: 32, 1>}, {transform_indices = @transform_6, window_bounds = array<i64: 1, 192, 32>}, {transform_indices = @transform_7, window_bounds = array<i64: 1, 192, 1>}, {transform_indices = @transform_8, window_bounds = array<i64: 1, 8, 4>}, {transform_indices = @transform_9, window_bounds = array<i64: 1, 32, 64>}, {transform_indices = @transform_10, window_bounds = array<i64: 1, 32, 1>}, {pipeline_mode = #tpu.pipeline_mode<synchronous>, transform_indices = @transform_11, window_bounds = array<i64: 32, 16>}, {pipeline_mode = #tpu.pipeline_mode<synchronous>, transform_indices = @transform_12, window_bounds = array<i64: 1, 16>}, {pipeline_mode = #tpu.pipeline_mode<synchronous>, transform_indices = @transform_13, window_bounds = array<i64: 2, 16>}]} {
    %c0_i32 = arith.constant 0 : i32
    %0 = arith.cmpi eq, %arg0, %c0_i32 : i32
    %1 = arith.extui %0 : i1 to i32
    %c0_i32_0 = arith.constant 0 : i32
    %2 = arith.cmpi ne, %1, %c0_i32_0 : i32
    scf.if %2 {
      %c0_31 = arith.constant 0 : index
      %c0_32 = arith.constant 0 : index
      %93 = vector.load %arg5[%c0_31, %c0_32] : memref<32x6xf32, #tpu.memory_space<vmem>>, vector<32x6xf32>
      %c0_33 = arith.constant 0 : index
      %c0_34 = arith.constant 0 : index
      %94 = vector.load %arg1[%c0_33, %c0_34] : memref<6x11xf32, #tpu.memory_space<vmem>>, vector<6x11xf32>
      %cst_35 = arith.constant dense<0.000000e+00> : vector<32x11xf32>
      %95 = tpu.matmul %93, %94, %cst_35 {dimension_numbers = #tpu.dot_dimension_numbers<[1], [0], [0], [1], [0, 0, 1, 1], [], []>} : vector<32x6xf32>, vector<6x11xf32>, vector<32x11xf32> -> vector<32x11xf32>
      %c0_36 = arith.constant 0 : index
      %c0_37 = arith.constant 0 : index
      %96 = vector.load %arg6[%c0_36, %c0_37] : memref<32x1xf32, #tpu.memory_space<vmem>>, vector<32x1xf32>
      %97 = vector.broadcast %96 : vector<32x1xf32> to vector<32x11xf32>
      %98 = arith.addf %95, %97 : vector<32x11xf32>
      %c0_38 = arith.constant 0 : index
      %c0_39 = arith.constant 0 : index
      %99 = vector.load %arg15[%c0_38, %c0_39] : memref<32x13xf32, #tpu.memory_space<vmem>>, vector<32x11xf32>
      tpu.vector_store %arg15[%c0_38, %c0_39], %98 {strides = array<i32>} : memref<32x13xf32, #tpu.memory_space<vmem>>, vector<32x11xf32>,
      %c0_40 = arith.constant 0 : index
      %c0_41 = arith.constant 0 : index
      %100 = vector.load %arg2[%c0_40, %c0_41] : memref<32x2xf32, #tpu.memory_space<vmem>>, vector<32x2xf32>
      %c0_42 = arith.constant 0 : index
      %c11 = arith.constant 11 : index
      %101 = vector.load %arg15[%c0_42, %c11] : memref<32x13xf32, #tpu.memory_space<vmem>>, vector<32x2xf32>
      tpu.vector_store %arg15[%c0_42, %c11], %100 {strides = array<i32>} : memref<32x13xf32, #tpu.memory_space<vmem>>, vector<32x2xf32>,
    } else {
    }
    %c0 = arith.constant 0 : index
    %c0_1 = arith.constant 0 : index
    %3 = vector.load %arg15[%c0, %c0_1] : memref<32x13xf32, #tpu.memory_space<vmem>>, vector<32x13xf32>
    %c0_2 = arith.constant 0 : index
    %c0_3 = arith.constant 0 : index
    %c0_4 = arith.constant 0 : index
    %4 = vector.load %arg7[%c0_2, %c0_3, %c0_4] : memref<1x192x32xf32, #tpu.memory_space<vmem>>, vector<1x192x32xf32>
    %5 = vector.shape_cast %4 : vector<1x192x32xf32> to vector<192x32xf32>
    %cst = arith.constant dense<0.000000e+00> : vector<192x13xf32>
    %6 = tpu.matmul %5, %3, %cst {dimension_numbers = #tpu.dot_dimension_numbers<[1], [0], [0], [1], [0, 0, 1, 1], [], []>} : vector<192x32xf32>, vector<32x13xf32>, vector<192x13xf32> -> vector<192x13xf32>
    %c0_5 = arith.constant 0 : index
    %c0_6 = arith.constant 0 : index
    %c0_7 = arith.constant 0 : index
    %7 = vector.load %arg8[%c0_5, %c0_6, %c0_7] : memref<1x192x1xf32, #tpu.memory_space<vmem>>, vector<1x192x1xf32>
    %8 = vector.shape_cast %7 : vector<1x192x1xf32> to vector<192x1xf32>
    %9 = vector.broadcast %8 : vector<192x1xf32> to vector<192x13xf32>
    %10 = arith.addf %6, %9 : vector<192x13xf32>
    %11 = vector.extract_strided_slice %10 {offsets = [0, 0], sizes = [64, 13], strides = [1, 1]} : vector<192x13xf32> to vector<64x13xf32>
    %12 = vector.shape_cast %11 : vector<64x13xf32> to vector<8x8x13xf32>
    %13 = vector.extract_strided_slice %10 {offsets = [64, 0], sizes = [64, 13], strides = [1, 1]} : vector<192x13xf32> to vector<64x13xf32>
    %14 = vector.shape_cast %13 : vector<64x13xf32> to vector<8x8x13xf32>
    %15 = vector.extract_strided_slice %10 {offsets = [128, 0], sizes = [64, 13], strides = [1, 1]} : vector<192x13xf32> to vector<64x13xf32>
    %16 = vector.shape_cast %15 : vector<64x13xf32> to vector<8x8x13xf32>
    %17 = tpu.transpose %12, [0, 2, 1] : vector<8x8x13xf32> -> vector<8x13x8xf32>
    %18 = arith.truncf %17 : vector<8x13x8xf32> to vector<8x13x8xbf16>
    %19 = arith.truncf %14 : vector<8x8x13xf32> to vector<8x8x13xbf16>
    %cst_8 = arith.constant dense<0.000000e+00> : vector<8x13x13xf32>
    %20 = tpu.matmul %18, %19, %cst_8 {dimension_numbers = #tpu.dot_dimension_numbers<[2], [1], [1], [2], [0, 0, 0, 1, 1, 2], [0], [0]>} : vector<8x13x8xbf16>, vector<8x8x13xbf16>, vector<8x13x13xf32> -> vector<8x13x13xf32>
    %c0_9 = arith.constant 0 : index
    %c0_10 = arith.constant 0 : index
    %21 = vector.load %arg4[%c0_9, %c0_10] : memref<13x13xf32, #tpu.memory_space<vmem>>, vector<13x13xf32>
    %22 = vector.shape_cast %21 : vector<13x13xf32> to vector<1x13x13xf32>
    %23 = vector.broadcast %22 : vector<1x13x13xf32> to vector<8x13x13xf32>
    %24 = arith.addf %20, %23 : vector<8x13x13xf32>
    %c0_11 = arith.constant 0 : index
    %c0_12 = arith.constant 0 : index
    %c0_13 = arith.constant 0 : index
    %25 = vector.load %arg9[%c0_11, %c0_12, %c0_13] : memref<1x8x4xf32, #tpu.memory_space<vmem>>, vector<1x8x4xf32>
    %26 = vector.shape_cast %25 : vector<1x8x4xf32> to vector<8x4xf32>
    %c0_14 = arith.constant 0 : index
    %c0_15 = arith.constant 0 : index
    %c0_16 = arith.constant 0 : index
    %27 = vector.load %arg3[%c0_14, %c0_15, %c0_16] : memref<4x13x13xbf16, #tpu.memory_space<vmem>>, vector<4x13x13xbf16>
    %28 = arith.extf %27 : vector<4x13x13xbf16> to vector<4x13x13xf32>
    %29 = vector.extract_strided_slice %26 {offsets = [0, 0], sizes = [8, 1], strides = [1, 1]} : vector<8x4xf32> to vector<8x1xf32>
    %30 = vector.shape_cast %29 : vector<8x1xf32> to vector<8x1x1xf32>
    %31 = vector.extract_strided_slice %28 {offsets = [0, 0, 0], sizes = [1, 13, 13], strides = [1, 1, 1]} : vector<4x13x13xf32> to vector<1x13x13xf32>
    %32 = vector.shape_cast %31 : vector<1x13x13xf32> to vector<13x13xf32>
    %33 = vector.shape_cast %32 : vector<13x13xf32> to vector<1x13x13xf32>
    %34 = vector.broadcast %30 : vector<8x1x1xf32> to vector<8x13x13xf32>
    %35 = vector.broadcast %33 : vector<1x13x13xf32> to vector<8x13x13xf32>
    %36 = arith.mulf %34, %35 : vector<8x13x13xf32>
    %37 = arith.addf %24, %36 : vector<8x13x13xf32>
    %38 = vector.extract_strided_slice %26 {offsets = [0, 1], sizes = [8, 1], strides = [1, 1]} : vector<8x4xf32> to vector<8x1xf32>
    %39 = vector.shape_cast %38 : vector<8x1xf32> to vector<8x1x1xf32>
    %40 = vector.extract_strided_slice %28 {offsets = [1, 0, 0], sizes = [1, 13, 13], strides = [1, 1, 1]} : vector<4x13x13xf32> to vector<1x13x13xf32>
    %41 = vector.shape_cast %40 : vector<1x13x13xf32> to vector<13x13xf32>
    %42 = vector.shape_cast %41 : vector<13x13xf32> to vector<1x13x13xf32>
    %43 = vector.broadcast %39 : vector<8x1x1xf32> to vector<8x13x13xf32>
    %44 = vector.broadcast %42 : vector<1x13x13xf32> to vector<8x13x13xf32>
    %45 = arith.mulf %43, %44 : vector<8x13x13xf32>
    %46 = arith.addf %37, %45 : vector<8x13x13xf32>
    %47 = vector.extract_strided_slice %26 {offsets = [0, 2], sizes = [8, 1], strides = [1, 1]} : vector<8x4xf32> to vector<8x1xf32>
    %48 = vector.shape_cast %47 : vector<8x1xf32> to vector<8x1x1xf32>
    %49 = vector.extract_strided_slice %28 {offsets = [2, 0, 0], sizes = [1, 13, 13], strides = [1, 1, 1]} : vector<4x13x13xf32> to vector<1x13x13xf32>
    %50 = vector.shape_cast %49 : vector<1x13x13xf32> to vector<13x13xf32>
    %51 = vector.shape_cast %50 : vector<13x13xf32> to vector<1x13x13xf32>
    %52 = vector.broadcast %48 : vector<8x1x1xf32> to vector<8x13x13xf32>
    %53 = vector.broadcast %51 : vector<1x13x13xf32> to vector<8x13x13xf32>
    %54 = arith.mulf %52, %53 : vector<8x13x13xf32>
    %55 = arith.addf %46, %54 : vector<8x13x13xf32>
    %56 = vector.extract_strided_slice %26 {offsets = [0, 3], sizes = [8, 1], strides = [1, 1]} : vector<8x4xf32> to vector<8x1xf32>
    %57 = vector.shape_cast %56 : vector<8x1xf32> to vector<8x1x1xf32>
    %58 = vector.extract_strided_slice %28 {offsets = [3, 0, 0], sizes = [1, 13, 13], strides = [1, 1, 1]} : vector<4x13x13xf32> to vector<1x13x13xf32>
    %59 = vector.shape_cast %58 : vector<1x13x13xf32> to vector<13x13xf32>
    %60 = vector.shape_cast %59 : vector<13x13xf32> to vector<1x13x13xf32>
    %61 = vector.broadcast %57 : vector<8x1x1xf32> to vector<8x13x13xf32>
    %62 = vector.broadcast %60 : vector<1x13x13xf32> to vector<8x13x13xf32>
    %63 = arith.mulf %61, %62 : vector<8x13x13xf32>
    %64 = arith.addf %55, %63 : vector<8x13x13xf32>
    %cst_17 = arith.constant dense<0xFF800000> : vector<8x13xf32>
    %65 = vector.multi_reduction <maximumf>, %64, %cst_17 [2] : vector<8x13x13xf32> to vector<8x13xf32>
    %66 = vector.shape_cast %65 : vector<8x13xf32> to vector<8x13x1xf32>
    %67 = vector.broadcast %66 : vector<8x13x1xf32> to vector<8x13x13xf32>
    %68 = arith.subf %64, %67 : vector<8x13x13xf32>
    %69 = math.exp %68 : vector<8x13x13xf32>
    %cst_18 = arith.constant dense<0.000000e+00> : vector<8x13xf32>
    %70 = vector.multi_reduction <add>, %69, %cst_18 [2] : vector<8x13x13xf32> to vector<8x13xf32>
    %71 = arith.truncf %16 : vector<8x8x13xf32> to vector<8x8x13xbf16>
    %72 = arith.truncf %69 : vector<8x13x13xf32> to vector<8x13x13xbf16>
    %cst_19 = arith.constant dense<0.000000e+00> : vector<8x8x13xf32>
    %73 = tpu.matmul %71, %72, %cst_19 {dimension_numbers = #tpu.dot_dimension_numbers<[2], [2], [1], [1], [0, 0, 0, 1, 1, 1], [0], [0]>} : vector<8x8x13xbf16>, vector<8x13x13xbf16>, vector<8x8x13xf32> -> vector<8x8x13xf32>
    %74 = tpu.reciprocal %70 {approx = true} : vector<8x13xf32> -> vector<8x13xf32>
    %75 = vector.shape_cast %74 : vector<8x13xf32> to vector<8x1x13xf32>
    %76 = vector.broadcast %75 : vector<8x1x13xf32> to vector<8x8x13xf32>
    %77 = arith.mulf %73, %76 : vector<8x8x13xf32>
    %78 = vector.shape_cast %77 : vector<8x8x13xf32> to vector<64x13xf32>
    %c0_20 = arith.constant 0 : index
    %c0_21 = arith.constant 0 : index
    %c0_22 = arith.constant 0 : index
    %79 = vector.load %arg10[%c0_20, %c0_21, %c0_22] : memref<1x32x64xf32, #tpu.memory_space<vmem>>, vector<1x32x64xf32>
    %80 = vector.shape_cast %79 : vector<1x32x64xf32> to vector<32x64xf32>
    %cst_23 = arith.constant dense<0.000000e+00> : vector<32x13xf32>
    %81 = tpu.matmul %80, %78, %cst_23 {dimension_numbers = #tpu.dot_dimension_numbers<[1], [0], [0], [1], [0, 0, 1, 1], [], []>} : vector<32x64xf32>, vector<64x13xf32>, vector<32x13xf32> -> vector<32x13xf32>
    %c0_24 = arith.constant 0 : index
    %c0_25 = arith.constant 0 : index
    %c0_26 = arith.constant 0 : index
    %82 = vector.load %arg11[%c0_24, %c0_25, %c0_26] : memref<1x32x1xf32, #tpu.memory_space<vmem>>, vector<1x32x1xf32>
    %83 = vector.shape_cast %82 : vector<1x32x1xf32> to vector<32x1xf32>
    %84 = vector.broadcast %83 : vector<32x1xf32> to vector<32x13xf32>
    %85 = arith.addf %81, %84 : vector<32x13xf32>
    %86 = arith.addf %3, %85 : vector<32x13xf32>
    %cst_27 = arith.constant 0.000000e+00 : f32
    %87 = vector.broadcast %cst_27 : f32 to vector<32x13xf32>
    %88 = arith.maximumf %86, %87 : vector<32x13xf32>
    %c0_28 = arith.constant 0 : index
    %c0_29 = arith.constant 0 : index
    %89 = vector.load %arg15[%c0_28, %c0_29] : memref<32x13xf32, #tpu.memory_space<vmem>>, vector<32x13xf32>
    tpu.vector_store %arg15[%c0_28, %c0_29], %88 {strides = array<i32>} : memref<32x13xf32, #tpu.memory_space<vmem>>, vector<32x13xf32>,
    %c2_i32 = arith.constant 2 : i32
    %90 = arith.cmpi eq, %arg0, %c2_i32 : i32
    %91 = arith.extui %90 : i1 to i32
    %c0_i32_30 = arith.constant 0 : i32
    %92 = arith.cmpi ne, %91, %c0_i32_30 : i32
    scf.if %92 {
      %93 = vector.extract_strided_slice %88 {offsets = [0, 11], sizes = [32, 2], strides = [1, 1]} : vector<32x13xf32> to vector<32x2xf32>
      %c0_31 = arith.constant 0 : index
      %c0_32 = arith.constant 0 : index
      %94 = vector.load %arg12[%c0_31, %c0_32] : memref<32x16xf32, #tpu.memory_space<vmem>>, vector<32x16xf32>
      %cst_33 = arith.constant dense<0.000000e+00> : vector<2x16xf32>
      %95 = tpu.matmul %93, %94, %cst_33 {dimension_numbers = #tpu.dot_dimension_numbers<[0], [0], [1], [1], [0, 1, 1, 1], [], []>} : vector<32x2xf32>, vector<32x16xf32>, vector<2x16xf32> -> vector<2x16xf32>
      %c0_34 = arith.constant 0 : index
      %c0_35 = arith.constant 0 : index
      %96 = vector.load %arg13[%c0_34, %c0_35] : memref<1x16xf32, #tpu.memory_space<vmem>>, vector<1x16xf32>
      %97 = vector.broadcast %96 : vector<1x16xf32> to vector<2x16xf32>
      %98 = arith.addf %95, %97 : vector<2x16xf32>
      %c0_36 = arith.constant 0 : index
      %c0_37 = arith.constant 0 : index
      %99 = vector.load %arg14[%c0_36, %c0_37] : memref<2x16xf32, #tpu.memory_space<vmem>>, vector<2x16xf32>
      tpu.vector_store %arg14[%c0_36, %c0_37], %98 {strides = array<i32>} : memref<2x16xf32, #tpu.memory_space<vmem>>, vector<2x16xf32>,
    } else {
    }
    return
  }
  func.func @transform_0(%arg0: i32) -> (i32, i32) {
    %c0_i32 = arith.constant 0 : i32
    %c0_i32_0 = arith.constant 0 : i32
    %c0_i32_1 = arith.constant 0 : i32
    return %c0_i32, %c0_i32_0 : i32, i32
  }
  func.func @transform_1(%arg0: i32) -> (i32, i32) {
    %c0_i32 = arith.constant 0 : i32
    %c0_i32_0 = arith.constant 0 : i32
    %c0_i32_1 = arith.constant 0 : i32
    return %c0_i32, %c0_i32_0 : i32, i32
  }
  func.func @transform_2(%arg0: i32) -> (i32, i32, i32) {
    %c0_i32 = arith.constant 0 : i32
    %c0_i32_0 = arith.constant 0 : i32
    %c0_i32_1 = arith.constant 0 : i32
    %c0_i32_2 = arith.constant 0 : i32
    return %c0_i32, %c0_i32_0, %c0_i32_1 : i32, i32, i32
  }
  func.func @transform_3(%arg0: i32) -> (i32, i32) {
    %c0_i32 = arith.constant 0 : i32
    %c0_i32_0 = arith.constant 0 : i32
    %c0_i32_1 = arith.constant 0 : i32
    return %c0_i32, %c0_i32_0 : i32, i32
  }
  func.func @transform_4(%arg0: i32) -> (i32, i32) {
    %c0_i32 = arith.constant 0 : i32
    %c0_i32_0 = arith.constant 0 : i32
    %c0_i32_1 = arith.constant 0 : i32
    return %c0_i32, %c0_i32_0 : i32, i32
  }
  func.func @transform_5(%arg0: i32) -> (i32, i32) {
    %c0_i32 = arith.constant 0 : i32
    %c0_i32_0 = arith.constant 0 : i32
    %c0_i32_1 = arith.constant 0 : i32
    return %c0_i32, %c0_i32_0 : i32, i32
  }
  func.func @transform_6(%arg0: i32) -> (i32, i32, i32) {
    %c0_i32 = arith.constant 0 : i32
    %c0_i32_0 = arith.constant 0 : i32
    %c0_i32_1 = arith.constant 0 : i32
    return %arg0, %c0_i32, %c0_i32_0 : i32, i32, i32
  }
  func.func @transform_7(%arg0: i32) -> (i32, i32, i32) {
    %c0_i32 = arith.constant 0 : i32
    %c0_i32_0 = arith.constant 0 : i32
    %c0_i32_1 = arith.constant 0 : i32
    return %arg0, %c0_i32, %c0_i32_0 : i32, i32, i32
  }
  func.func @transform_8(%arg0: i32) -> (i32, i32, i32) {
    %c0_i32 = arith.constant 0 : i32
    %c0_i32_0 = arith.constant 0 : i32
    %c0_i32_1 = arith.constant 0 : i32
    return %arg0, %c0_i32, %c0_i32_0 : i32, i32, i32
  }
  func.func @transform_9(%arg0: i32) -> (i32, i32, i32) {
    %c0_i32 = arith.constant 0 : i32
    %c0_i32_0 = arith.constant 0 : i32
    %c0_i32_1 = arith.constant 0 : i32
    return %arg0, %c0_i32, %c0_i32_0 : i32, i32, i32
  }
  func.func @transform_10(%arg0: i32) -> (i32, i32, i32) {
    %c0_i32 = arith.constant 0 : i32
    %c0_i32_0 = arith.constant 0 : i32
    %c0_i32_1 = arith.constant 0 : i32
    return %arg0, %c0_i32, %c0_i32_0 : i32, i32, i32
  }
  func.func @transform_11(%arg0: i32) -> (i32, i32) {
    %c0_i32 = arith.constant 0 : i32
    %c0_i32_0 = arith.constant 0 : i32
    %c0_i32_1 = arith.constant 0 : i32
    return %c0_i32, %c0_i32_0 : i32, i32
  }
  func.func @transform_12(%arg0: i32) -> (i32, i32) {
    %c0_i32 = arith.constant 0 : i32
    %c0_i32_0 = arith.constant 0 : i32
    %c0_i32_1 = arith.constant 0 : i32
    return %c0_i32, %c0_i32_0 : i32, i32
  }
  func.func @transform_13(%arg0: i32) -> (i32, i32) {
    %c0_i32 = arith.constant 0 : i32
    %c0_i32_0 = arith.constant 0 : i32
    %c0_i32_1 = arith.constant 0 : i32
    return %c0_i32, %c0_i32_0 : i32, i32
  }
}

</mosaic_0001>

<llo_original>
// kernel: tpu_custom_call.1
$region0: #{tpu_custom_call.1}
  #allocation0 [shape = 'u32[]', space=smem, size = 0x4, offset = 0x4, fixed_abs, tag = 'smem constant byte address 0x4 - core index']
  #allocation1 [shape = 'u32[144,128]{1,0:T(1,128)}', space=vmem, size = 0x12000, scoped, tag = 'internal scratch']
  #allocation2 [shape = 'f32[32,13]{1,0:T(8,128)}', space=vmem, size = 0x4000, scoped, tag = 'scratch operand']
  %s0 = inlined_call_operand.vmem [shape: f32[6,11], index: 0, kind: input, shape index: {}]
  %s1 = inlined_call_operand.vmem [shape: f32[32,2], index: 1, kind: input, shape index: {}]
  %s2 = inlined_call_operand.vmem [shape: bf16[4,13,13], index: 2, kind: input, shape index: {}]
  %s3 = inlined_call_operand.vmem [shape: f32[13,13], index: 3, kind: input, shape index: {}]
  %s4 = inlined_call_operand.vmem [shape: f32[32,6], index: 4, kind: input, shape index: {}]
  %s5 = inlined_call_operand.vmem [shape: f32[32,1], index: 5, kind: input, shape index: {}]
  %s6 = inlined_call_operand.vmem [shape: f32[3,192,32], index: 6, kind: input, shape index: {}]
  %s7 = inlined_call_operand.vmem [shape: f32[3,192,1], index: 7, kind: input, shape index: {}]
  %s8 = inlined_call_operand.vmem [shape: f32[3,8,4], index: 8, kind: input, shape index: {}]
  %s9 = inlined_call_operand.vmem [shape: f32[3,32,64], index: 9, kind: input, shape index: {}]
  %s10 = inlined_call_operand.vmem [shape: f32[3,32,1], index: 10, kind: input, shape index: {}]
  %s11 = inlined_call_operand.vmem [shape: f32[32,16], index: 11, kind: input, shape index: {}]
  %s12 = inlined_call_operand.vmem [shape: f32[1,16], index: 12, kind: input, shape index: {}]
  %s13 = inlined_call_operand.hbm [shape: f32[2,16], index: 13, kind: output, shape index: {}]
  %s14 = sld [smem:[#allocation0]]
  $region93: #{tpu_custom_call.1} parent=0
    _
  %s16 = ssub.s32 1, %s14
  %s17 = scalar_select 0, %s16, %s14
  $region1: #{tpu_custom_call.1} parent=0
    #allocation3 [shape = 'u8[1024]{0}', space=vmem, size = 0x400, scoped, tag = 'output window, operand 0, single buffered']
    #allocation4 [shape = 's32[2]{0}', space=sflag, size = 0x8, scoped, tag = 'scoped memory for tpu_custom_call.1']
    %18 = vsyncpa [#allocation4], 0
    loop: start=0, step=1, limit=5
    $region2: #{tpu_custom_call.1} parent=1 // loop_pre_header
      _
    $region3: #{tpu_custom_call.1} parent=1 // loop_header
      %s20 = sphi 0, %s24
      %p21 = scmp.ge.s32.totalorder %s20, 5
      %s28 = sphi 0, %s28
      %s30 = sphi 0, %s28
      %s31 = sphi 0, %s30
      %s45 = sphi 0, %s31
      %s49 = sphi 0, %s49
      %s51 = sphi 0, %s49
      %s52 = sphi 0, %s51
      %s66 = sphi 0, %s52
      %s70 = sphi 0, %s70
      %s72 = sphi 0, %s70
      %s73 = sphi 0, %s72
      %s87 = sphi 0, %s73
      %s91 = sphi 0, %s91
      %s93 = sphi 0, %s91
      %s94 = sphi 0, %s93
      %s108 = sphi 0, %s94
      %s112 = sphi 0, %s112
      %s114 = sphi 0, %s112
      %s115 = sphi 0, %s114
      %s129 = sphi 0, %s115
      %s133 = sphi 0, %s133
      %s135 = sphi 0, %s133
      %s136 = sphi 0, %s135
      %s150 = sphi 0, %s136
      %s156 = sphi 0, %s158
      %s159 = sphi 0, %s156
      %s160 = sphi 0, %s159
      %s176 = sphi 0, %s160
      %s182 = sphi 0, %s184
      %s185 = sphi 0, %s182
      %s186 = sphi 0, %s185
      %s202 = sphi 0, %s186
      %s208 = sphi 0, %s210
      %s211 = sphi 0, %s208
      %s212 = sphi 0, %s211
      %s228 = sphi 0, %s212
      %s234 = sphi 0, %s236
      %s237 = sphi 0, %s234
      %s238 = sphi 0, %s237
      %s254 = sphi 0, %s238
      %s260 = sphi 0, %s262
      %s263 = sphi 0, %s260
      %s264 = sphi 0, %s263
      %s280 = sphi 0, %s264
      %s284 = sphi 0, %s284
      %s286 = sphi 0, %s284
      %s287 = sphi 0, %s286
      %s301 = sphi 0, %s287
      %s305 = sphi 0, %s305
      %s307 = sphi 0, %s305
      %s308 = sphi 0, %s307
      %s322 = sphi 0, %s308
      %s326 = sphi 0, %s326
      %s328 = sphi 0, %s326
      %s329 = sphi 0, %s328
      %s343 = sphi 0, %s329
    $region4: #{tpu_custom_call.1} parent=1 // loop_header_branch
      %23 = sbr.rel (%p21) target = $region8
    $region5: #{tpu_custom_call.1} parent=1 // loop_body
      %s25 = ssub.s32 %s20, 1
      %s26 = ssub.s32 %s20, 2
      %s27 = sadd.s32 %s20, 1
      %s29 = sadd.s32 %s28, 1
      %p32 = scmp.eq.s32.totalorder %s20, 2
      %p33 = scmp.ne.s32.totalorder %s28, %s30
      %p34 = scmp.eq.s32.totalorder %s20, 0
      %p35 = por %p33, %p34
      %p36 = scmp.ne.s32.totalorder %s28, %s30
      %p37 = scmp.eq.s32.totalorder %s25, 2
      %p38 = por %p36, %p37
      %p39 = scmp.ne.s32.totalorder %s30, %s31
      %p40 = scmp.eq.s32.totalorder %s25, 0
      %p41 = por %p39, %p40
      %p42 = scmp.ne.s32.totalorder %s30, %s31
      %p43 = scmp.eq.s32.totalorder %s26, 2
      %p44 = por %p42, %p43
      %p46 = scmp.ne.s32.totalorder %s31, %s45
      %p47 = scmp.eq.s32.totalorder %s26, 0
      %p48 = por %p46, %p47
      %s50 = sadd.s32 %s49, 1
      %p53 = scmp.eq.s32.totalorder %s20, 2
      %p54 = scmp.ne.s32.totalorder %s49, %s51
      %p55 = scmp.eq.s32.totalorder %s20, 0
      %p56 = por %p54, %p55
      %p57 = scmp.ne.s32.totalorder %s49, %s51
      %p58 = scmp.eq.s32.totalorder %s25, 2
      %p59 = por %p57, %p58
      %p60 = scmp.ne.s32.totalorder %s51, %s52
      %p61 = scmp.eq.s32.totalorder %s25, 0
      %p62 = por %p60, %p61
      %p63 = scmp.ne.s32.totalorder %s51, %s52
      %p64 = scmp.eq.s32.totalorder %s26, 2
      %p65 = por %p63, %p64
      %p67 = scmp.ne.s32.totalorder %s52, %s66
      %p68 = scmp.eq.s32.totalorder %s26, 0
      %p69 = por %p67, %p68
      %s71 = sadd.s32 %s70, 1
      %p74 = scmp.eq.s32.totalorder %s20, 2
      %p75 = scmp.ne.s32.totalorder %s70, %s72
      %p76 = scmp.eq.s32.totalorder %s20, 0
      %p77 = por %p75, %p76
      %p78 = scmp.ne.s32.totalorder %s70, %s72
      %p79 = scmp.eq.s32.totalorder %s25, 2
      %p80 = por %p78, %p79
      %p81 = scmp.ne.s32.totalorder %s72, %s73
      %p82 = scmp.eq.s32.totalorder %s25, 0
      %p83 = por %p81, %p82
      %p84 = scmp.ne.s32.totalorder %s72, %s73
      %p85 = scmp.eq.s32.totalorder %s26, 2
      %p86 = por %p84, %p85
      %p88 = scmp.ne.s32.totalorder %s73, %s87
      %p89 = scmp.eq.s32.totalorder %s26, 0
      %p90 = por %p88, %p89
      %s92 = sadd.s32 %s91, 1
      %p95 = scmp.eq.s32.totalorder %s20, 2
      %p96 = scmp.ne.s32.totalorder %s91, %s93
      %p97 = scmp.eq.s32.totalorder %s20, 0
      %p98 = por %p96, %p97
      %p99 = scmp.ne.s32.totalorder %s91, %s93
      %p100 = scmp.eq.s32.totalorder %s25, 2
      %p101 = por %p99, %p100
      %p102 = scmp.ne.s32.totalorder %s93, %s94
      %p103 = scmp.eq.s32.totalorder %s25, 0
      %p104 = por %p102, %p103
      %p105 = scmp.ne.s32.totalorder %s93, %s94
      %p106 = scmp.eq.s32.totalorder %s26, 2
      %p107 = por %p105, %p106
      %p109 = scmp.ne.s32.totalorder %s94, %s108
      %p110 = scmp.eq.s32.totalorder %s26, 0
      %p111 = por %p109, %p110
      %s113 = sadd.s32 %s112, 1
      %p116 = scmp.eq.s32.totalorder %s20, 2
      %p117 = scmp.ne.s32.totalorder %s112, %s114
      %p118 = scmp.eq.s32.totalorder %s20, 0
      %p119 = por %p117, %p118
      %p120 = scmp.ne.s32.totalorder %s112, %s114
      %p121 = scmp.eq.s32.totalorder %s25, 2
      %p122 = por %p120, %p121
      %p123 = scmp.ne.s32.totalorder %s114, %s115
      %p124 = scmp.eq.s32.totalorder %s25, 0
      %p125 = por %p123, %p124
      %p126 = scmp.ne.s32.totalorder %s114, %s115
      %p127 = scmp.eq.s32.totalorder %s26, 2
      %p128 = por %p126, %p127
      %p130 = scmp.ne.s32.totalorder %s115, %s129
      %p131 = scmp.eq.s32.totalorder %s26, 0
      %p132 = por %p130, %p131
      %s134 = sadd.s32 %s133, 1
      %p137 = scmp.eq.s32.totalorder %s20, 2
      %p138 = scmp.ne.s32.totalorder %s133, %s135
      %p139 = scmp.eq.s32.totalorder %s20, 0
      %p140 = por %p138, %p139
      %p141 = scmp.ne.s32.totalorder %s133, %s135
      %p142 = scmp.eq.s32.totalorder %s25, 2
      %p143 = por %p141, %p142
      %p144 = scmp.ne.s32.totalorder %s135, %s136
      %p145 = scmp.eq.s32.totalorder %s25, 0
      %p146 = por %p144, %p145
      %p147 = scmp.ne.s32.totalorder %s135, %s136
      %p148 = scmp.eq.s32.totalorder %s26, 2
      %p149 = por %p147, %p148
      %p151 = scmp.ne.s32.totalorder %s136, %s150
      %p152 = scmp.eq.s32.totalorder %s26, 0
      %p153 = por %p151, %p152
      %s154 = ssub.s32 %s20, %s27
      %p155 = scmp.eq.s32.totalorder %s154, 0
      %s157 = sadd.s32 %s156, 1
      %s158 = scalar_select %p155, %s156, %s157
      %p161 = pneg %p155
      %p162 = scmp.eq.s32.totalorder %s20, 2
      %p163 = por %p161, %p162
      %p164 = scmp.ne.s32.totalorder %s156, %s159
      %p165 = scmp.eq.s32.totalorder %s20, 0
      %p166 = por %p164, %p165
      %p167 = scmp.ne.s32.totalorder %s156, %s159
      %p168 = scmp.eq.s32.totalorder %s25, 2
      %p169 = por %p167, %p168
      %p170 = scmp.ne.s32.totalorder %s159, %s160
      %p171 = scmp.eq.s32.totalorder %s25, 0
      %p172 = por %p170, %p171
      %p173 = scmp.ne.s32.totalorder %s159, %s160
      %p174 = scmp.eq.s32.totalorder %s26, 2
      %p175 = por %p173, %p174
      %p177 = scmp.ne.s32.totalorder %s160, %s176
      %p178 = scmp.eq.s32.totalorder %s26, 0
      %p179 = por %p177, %p178
      %s180 = ssub.s32 %s20, %s27
      %p181 = scmp.eq.s32.totalorder %s180, 0
      %s183 = sadd.s32 %s182, 1
      %s184 = scalar_select %p181, %s182, %s183
      %p187 = pneg %p181
      %p188 = scmp.eq.s32.totalorder %s20, 2
      %p189 = por %p187, %p188
      %p190 = scmp.ne.s32.totalorder %s182, %s185
      %p191 = scmp.eq.s32.totalorder %s20, 0
      %p192 = por %p190, %p191
      %p193 = scmp.ne.s32.totalorder %s182, %s185
      %p194 = scmp.eq.s32.totalorder %s25, 2
      %p195 = por %p193, %p194
      %p196 = scmp.ne.s32.totalorder %s185, %s186
      %p197 = scmp.eq.s32.totalorder %s25, 0
      %p198 = por %p196, %p197
      %p199 = scmp.ne.s32.totalorder %s185, %s186
      %p200 = scmp.eq.s32.totalorder %s26, 2
      %p201 = por %p199, %p200
      %p203 = scmp.ne.s32.totalorder %s186, %s202
      %p204 = scmp.eq.s32.totalorder %s26, 0
      %p205 = por %p203, %p204
      %s206 = ssub.s32 %s20, %s27
      %p207 = scmp.eq.s32.totalorder %s206, 0
      %s209 = sadd.s32 %s208, 1
      %s210 = scalar_select %p207, %s208, %s209
      %p213 = pneg %p207
      %p214 = scmp.eq.s32.totalorder %s20, 2
      %p215 = por %p213, %p214
      %p216 = scmp.ne.s32.totalorder %s208, %s211
      %p217 = scmp.eq.s32.totalorder %s20, 0
      %p218 = por %p216, %p217
      %p219 = scmp.ne.s32.totalorder %s208, %s211
      %p220 = scmp.eq.s32.totalorder %s25, 2
      %p221 = por %p219, %p220
      %p222 = scmp.ne.s32.totalorder %s211, %s212
      %p223 = scmp.eq.s32.totalorder %s25, 0
      %p224 = por %p222, %p223
      %p225 = scmp.ne.s32.totalorder %s211, %s212
      %p226 = scmp.eq.s32.totalorder %s26, 2
      %p227 = por %p225, %p226
      %p229 = scmp.ne.s32.totalorder %s212, %s228
      %p230 = scmp.eq.s32.totalorder %s26, 0
      %p231 = por %p229, %p230
      %s232 = ssub.s32 %s20, %s27
      %p233 = scmp.eq.s32.totalorder %s232, 0
      %s235 = sadd.s32 %s234, 1
      %s236 = scalar_select %p233, %s234, %s235
      %p239 = pneg %p233
      %p240 = scmp.eq.s32.totalorder %s20, 2
      %p241 = por %p239, %p240
      %p242 = scmp.ne.s32.totalorder %s234, %s237
      %p243 = scmp.eq.s32.totalorder %s20, 0
      %p244 = por %p242, %p243
      %p245 = scmp.ne.s32.totalorder %s234, %s237
      %p246 = scmp.eq.s32.totalorder %s25, 2
      %p247 = por %p245, %p246
      %p248 = scmp.ne.s32.totalorder %s237, %s238
      %p249 = scmp.eq.s32.totalorder %s25, 0
      %p250 = por %p248, %p249
      %p251 = scmp.ne.s32.totalorder %s237, %s238
      %p252 = scmp.eq.s32.totalorder %s26, 2
      %p253 = por %p251, %p252
      %p255 = scmp.ne.s32.totalorder %s238, %s254
      %p256 = scmp.eq.s32.totalorder %s26, 0
      %p257 = por %p255, %p256
      %s258 = ssub.s32 %s20, %s27
      %p259 = scmp.eq.s32.totalorder %s258, 0
      %s261 = sadd.s32 %s260, 1
      %s262 = scalar_select %p259, %s260, %s261
      %p265 = pneg %p259
      %p266 = scmp.eq.s32.totalorder %s20, 2
      %p267 = por %p265, %p266
      %p268 = scmp.ne.s32.totalorder %s260, %s263
      %p269 = scmp.eq.s32.totalorder %s20, 0
      %p270 = por %p268, %p269
      %p271 = scmp.ne.s32.totalorder %s260, %s263
      %p272 = scmp.eq.s32.totalorder %s25, 2
      %p273 = por %p271, %p272
      %p274 = scmp.ne.s32.totalorder %s263, %s264
      %p275 = scmp.eq.s32.totalorder %s25, 0
      %p276 = por %p274, %p275
      %p277 = scmp.ne.s32.totalorder %s263, %s264
      %p278 = scmp.eq.s32.totalorder %s26, 2
      %p279 = por %p277, %p278
      %p281 = scmp.ne.s32.totalorder %s264, %s280
      %p282 = scmp.eq.s32.totalorder %s26, 0
      %p283 = por %p281, %p282
      %s285 = sadd.s32 %s284, 1
      %p288 = scmp.eq.s32.totalorder %s20, 2
      %p289 = scmp.ne.s32.totalorder %s284, %s286
      %p290 = scmp.eq.s32.totalorder %s20, 0
      %p291 = por %p289, %p290
      %p292 = scmp.ne.s32.totalorder %s284, %s286
      %p293 = scmp.eq.s32.totalorder %s25, 2
      %p294 = por %p292, %p293
      %p295 = scmp.ne.s32.totalorder %s286, %s287
      %p296 = scmp.eq.s32.totalorder %s25, 0
      %p297 = por %p295, %p296
      %p298 = scmp.ne.s32.totalorder %s286, %s287
      %p299 = scmp.eq.s32.totalorder %s26, 2
      %p300 = por %p298, %p299
      %p302 = scmp.ne.s32.totalorder %s287, %s301
      %p303 = scmp.eq.s32.totalorder %s26, 0
      %p304 = por %p302, %p303
      %s306 = sadd.s32 %s305, 1
      %p309 = scmp.eq.s32.totalorder %s20, 2
      %p310 = scmp.ne.s32.totalorder %s305, %s307
      %p311 = scmp.eq.s32.totalorder %s20, 0
      %p312 = por %p310, %p311
      %p313 = scmp.ne.s32.totalorder %s305, %s307
      %p314 = scmp.eq.s32.totalorder %s25, 2
      %p315 = por %p313, %p314
      %p316 = scmp.ne.s32.totalorder %s307, %s308
      %p317 = scmp.eq.s32.totalorder %s25, 0
      %p318 = por %p316, %p317
      %p319 = scmp.ne.s32.totalorder %s307, %s308
      %p320 = scmp.eq.s32.totalorder %s26, 2
      %p321 = por %p319, %p320
      %p323 = scmp.ne.s32.totalorder %s308, %s322
      %p324 = scmp.eq.s32.totalorder %s26, 0
      %p325 = por %p323, %p324
      %s327 = sadd.s32 %s326, 1
      %p330 = scmp.eq.s32.totalorder %s20, 2
      %p331 = scmp.ne.s32.totalorder %s326, %s328
      %p332 = scmp.eq.s32.totalorder %s20, 0
      %p333 = por %p331, %p332
      %p334 = scmp.ne.s32.totalorder %s326, %s328
      %p335 = scmp.eq.s32.totalorder %s25, 2
      %p336 = por %p334, %p335
      %p337 = scmp.ne.s32.totalorder %s328, %s329
      %p338 = scmp.eq.s32.totalorder %s25, 0
      %p339 = por %p337, %p338
      %p340 = scmp.ne.s32.totalorder %s328, %s329
      %p341 = scmp.eq.s32.totalorder %s26, 2
      %p342 = por %p340, %p341
      %p344 = scmp.ne.s32.totalorder %s329, %s343
      %p345 = scmp.eq.s32.totalorder %s26, 0
      %p346 = por %p344, %p345
      %p347 = scmp.le.s32.totalorder 1, %s20
      %p348 = scmp.lt.s32.totalorder %s20, 4
      %p349 = pnand %p347, %p348
      %p350 = pneg %p349
      // Predicated region
      $region9: #{tpu_custom_call.1} parent=5 // pred_check
        _
      $region10: #{tpu_custom_call.1} parent=5 // pred_check_branch
        %352 = sbr.rel (%p349) target = $region12
      $region11: #{tpu_custom_call.1} parent=5 // pred_region
        %s353 = ssub.s32 %s20, 1
        // Predicated region
        $region13: #{tpu_custom_call.1} parent=11 // pred_check
          %p354 = pneg %p41
        $region14: #{tpu_custom_call.1} parent=11 // pred_check_branch
          %356 = sbr.rel (%p354) target = $region16
        $region15: #{tpu_custom_call.1} parent=11 // pred_region
          _
        $region16: #{tpu_custom_call.1} parent=11 // pred_fallthru
          _
        // Predicated region
        $region17: #{tpu_custom_call.1} parent=11 // pred_check
          %p357 = pneg %p62
        $region18: #{tpu_custom_call.1} parent=11 // pred_check_branch
          %359 = sbr.rel (%p357) target = $region20
        $region19: #{tpu_custom_call.1} parent=11 // pred_region
          _
        $region20: #{tpu_custom_call.1} parent=11 // pred_fallthru
          _
        // Predicated region
        $region21: #{tpu_custom_call.1} parent=11 // pred_check
          %p360 = pneg %p83
        $region22: #{tpu_custom_call.1} parent=11 // pred_check_branch
          %362 = sbr.rel (%p360) target = $region24
        $region23: #{tpu_custom_call.1} parent=11 // pred_region
          _
        $region24: #{tpu_custom_call.1} parent=11 // pred_fallthru
          _
        // Predicated region
        $region25: #{tpu_custom_call.1} parent=11 // pred_check
          %p363 = pneg %p104
        $region26: #{tpu_custom_call.1} parent=11 // pred_check_branch
          %365 = sbr.rel (%p363) target = $region28
        $region27: #{tpu_custom_call.1} parent=11 // pred_region
          _
        $region28: #{tpu_custom_call.1} parent=11 // pred_fallthru
          _
        // Predicated region
        $region29: #{tpu_custom_call.1} parent=11 // pred_check
          %p366 = pneg %p125
        $region30: #{tpu_custom_call.1} parent=11 // pred_check_branch
          %368 = sbr.rel (%p366) target = $region32
        $region31: #{tpu_custom_call.1} parent=11 // pred_region
          _
        $region32: #{tpu_custom_call.1} parent=11 // pred_fallthru
          _
        // Predicated region
        $region33: #{tpu_custom_call.1} parent=11 // pred_check
          %p369 = pneg %p146
        $region34: #{tpu_custom_call.1} parent=11 // pred_check_branch
          %371 = sbr.rel (%p369) target = $region36
        $region35: #{tpu_custom_call.1} parent=11 // pred_region
          _
        $region36: #{tpu_custom_call.1} parent=11 // pred_fallthru
          _
        // Predicated region
        $region37: #{tpu_custom_call.1} parent=11 // pred_check
          %p372 = pneg %p297
        $region38: #{tpu_custom_call.1} parent=11 // pred_check_branch
          %374 = sbr.rel (%p372) target = $region40
        $region39: #{tpu_custom_call.1} parent=11 // pred_region
          _
        $region40: #{tpu_custom_call.1} parent=11 // pred_fallthru
          _
        // Predicated region
        $region41: #{tpu_custom_call.1} parent=11 // pred_check
          %p375 = pneg %p318
        $region42: #{tpu_custom_call.1} parent=11 // pred_check_branch
          %377 = sbr.rel (%p375) target = $region44
        $region43: #{tpu_custom_call.1} parent=11 // pred_region
          _
        $region44: #{tpu_custom_call.1} parent=11 // pred_fallthru
          _
      $region12: #{tpu_custom_call.1} parent=5 // pred_fallthru
        _
      %p378 = scmp.lt.s32.totalorder %s20, 3
      // Predicated region
      $region45: #{tpu_custom_call.1} parent=5 // pred_check
        %p379 = pneg %p378
      $region46: #{tpu_custom_call.1} parent=5 // pred_check_branch
        %381 = sbr.rel (%p379) target = $region48
      $region47: #{tpu_custom_call.1} parent=5 // pred_region
        // Predicated region
        $region49: #{tpu_custom_call.1} parent=47 // pred_check
          %p382 = pneg %p166
        $region50: #{tpu_custom_call.1} parent=47 // pred_check_branch
          %384 = sbr.rel (%p382) target = $region52
        $region51: #{tpu_custom_call.1} parent=47 // pred_region
          %p385 = scmp.lt.s32.totalorder %s20, 2
          %s386 = scalar_select %p385, %s20, 2
          %s387 = smul.addr %s386, 24
          %s388 = smul.addr %s387, 8
          %s389 = scalar_lea.vmem %s6, %s388
        $region52: #{tpu_custom_call.1} parent=47 // pred_fallthru
          _
        // Predicated region
        $region53: #{tpu_custom_call.1} parent=47 // pred_check
          %p390 = pneg %p192
        $region54: #{tpu_custom_call.1} parent=47 // pred_check_branch
          %392 = sbr.rel (%p390) target = $region56
        $region55: #{tpu_custom_call.1} parent=47 // pred_region
          %p393 = scmp.lt.s32.totalorder %s20, 2
          %s394 = scalar_select %p393, %s20, 2
          %s395 = smul.addr %s394, 24
          %s396 = smul.addr %s395, 8
          %s397 = scalar_lea.vmem %s7, %s396
        $region56: #{tpu_custom_call.1} parent=47 // pred_fallthru
          _
        // Predicated region
        $region57: #{tpu_custom_call.1} parent=47 // pred_check
          %p398 = pneg %p218
        $region58: #{tpu_custom_call.1} parent=47 // pred_check_branch
          %400 = sbr.rel (%p398) target = $region60
        $region59: #{tpu_custom_call.1} parent=47 // pred_region
          %p401 = scmp.lt.s32.totalorder %s20, 2
          %s402 = scalar_select %p401, %s20, 2
          %s403 = smul.addr %s402, 8
          %s404 = scalar_lea.vmem %s8, %s403
        $region60: #{tpu_custom_call.1} parent=47 // pred_fallthru
          _
        // Predicated region
        $region61: #{tpu_custom_call.1} parent=47 // pred_check
          %p405 = pneg %p244
        $region62: #{tpu_custom_call.1} parent=47 // pred_check_branch
          %407 = sbr.rel (%p405) target = $region64
        $region63: #{tpu_custom_call.1} parent=47 // pred_region
          %p408 = scmp.lt.s32.totalorder %s20, 2
          %s409 = scalar_select %p408, %s20, 2
          %s410 = smul.addr %s409, 4
          %s411 = smul.addr %s410, 8
          %s412 = scalar_lea.vmem %s9, %s411
        $region64: #{tpu_custom_call.1} parent=47 // pred_fallthru
          _
        // Predicated region
        $region65: #{tpu_custom_call.1} parent=47 // pred_check
          %p413 = pneg %p270
        $region66: #{tpu_custom_call.1} parent=47 // pred_check_branch
          %415 = sbr.rel (%p413) target = $region68
        $region67: #{tpu_custom_call.1} parent=47 // pred_region
          %p416 = scmp.lt.s32.totalorder %s20, 2
          %s417 = scalar_select %p416, %s20, 2
          %s418 = smul.addr %s417, 4
          %s419 = smul.addr %s418, 8
          %s420 = scalar_lea.vmem %s10, %s419
        $region68: #{tpu_custom_call.1} parent=47 // pred_fallthru
          _
      $region48: #{tpu_custom_call.1} parent=5 // pred_fallthru
        _
      %p421 = scmp.le.s32.totalorder 1, %s20
      %p422 = scmp.lt.s32.totalorder %s20, 4
      %p423 = pnand %p421, %p422
      %p424 = pneg %p423
      // Predicated region
      $region69: #{tpu_custom_call.1} parent=5 // pred_check
        _
      $region70: #{tpu_custom_call.1} parent=5 // pred_check_branch
        %426 = sbr.rel (%p423) target = $region72
      $region71: #{tpu_custom_call.1} parent=5 // pred_region
        %s427 = ssub.s32 %s20, 1
        %p428 = pneg %p41
        %p429 = pneg %p38
        %p430 = pneg %p62
        %p431 = pneg %p59
        %p432 = pneg %p83
        %p433 = pneg %p80
        %p434 = pneg %p104
        %p435 = pneg %p101
        %p436 = pneg %p125
        %p437 = pneg %p122
        %p438 = pneg %p146
        %p439 = pneg %p143
        %p440 = scmp.lt.s32.totalorder %s25, 2
        %s441 = scalar_select %p440, %s25, 2
        %s442 = smul.addr %s441, 24
        %s443 = smul.addr %s442, 8
        %s444 = scalar_lea.vmem %s6, %s443
        %p445 = pneg %p172
        %p446 = pneg %p169
        %p447 = scmp.lt.s32.totalorder %s25, 2
        %s448 = scalar_select %p447, %s25, 2
        %s449 = smul.addr %s448, 24
        %s450 = smul.addr %s449, 8
        %s451 = scalar_lea.vmem %s7, %s450
        %p452 = pneg %p198
        %p453 = pneg %p195
        %p454 = scmp.lt.s32.totalorder %s25, 2
        %s455 = scalar_select %p454, %s25, 2
        %s456 = smul.addr %s455, 8
        %s457 = scalar_lea.vmem %s8, %s456
        %p458 = pneg %p224
        %p459 = pneg %p221
        %p460 = scmp.lt.s32.totalorder %s25, 2
        %s461 = scalar_select %p460, %s25, 2
        %s462 = smul.addr %s461, 4
        %s463 = smul.addr %s462, 8
        %s464 = scalar_lea.vmem %s9, %s463
        %p465 = pneg %p250
        %p466 = pneg %p247
        %p467 = scmp.lt.s32.totalorder %s25, 2
        %s468 = scalar_select %p467, %s25, 2
        %s469 = smul.addr %s468, 4
        %s470 = smul.addr %s469, 8
        %s471 = scalar_lea.vmem %s10, %s470
        %p472 = pneg %p276
        %p473 = pneg %p273
        %p474 = pneg %p297
        %p475 = pneg %p294
        %p476 = pneg %p318
        %p477 = pneg %p315
        %p478 = pneg %p339
        %p479 = pneg %p336
        %p480 = scmp.lt.s32.totalorder %s25, 2
        %s481 = scalar_select %p480, %s25, 2
        %s482 = smul.addr %s481, 24
        %s483 = smul.addr %s482, 8
        %s484 = scalar_lea.vmem %s6, %s483
        %p485 = scmp.lt.s32.totalorder %s25, 2
        %s486 = scalar_select %p485, %s25, 2
        %s487 = smul.addr %s486, 24
        %s488 = smul.addr %s487, 8
        %s489 = scalar_lea.vmem %s7, %s488
        %p490 = scmp.lt.s32.totalorder %s25, 2
        %s491 = scalar_select %p490, %s25, 2
        %s492 = smul.addr %s491, 8
        %s493 = scalar_lea.vmem %s8, %s492
        %p494 = scmp.lt.s32.totalorder %s25, 2
        %s495 = scalar_select %p494, %s25, 2
        %s496 = smul.addr %s495, 4
        %s497 = smul.addr %s496, 8
        %s498 = scalar_lea.vmem %s9, %s497
        %p499 = scmp.lt.s32.totalorder %s25, 2
        %s500 = scalar_select %p499, %s25, 2
        %s501 = smul.addr %s500, 4
        %s502 = smul.addr %s501, 8
        %s503 = scalar_lea.vmem %s10, %s502
        %p505 = scmp.eq.s32.totalorder %s25, 0
        // Predicated region
        $region73: #{tpu_custom_call.1} parent=71 // pred_check
          %p506 = pneg %p505
        $region74: #{tpu_custom_call.1} parent=71 // pred_check_branch
          %508 = sbr.rel (%p506) target = $region76
        $region75: #{tpu_custom_call.1} parent=71 // pred_region
          %v509 = vld [vmem:[%s4] sm:$0xff]
          %v510 = vld [vmem:[%s4 + $0x8] sm:$0xff]
          %v511 = vld [vmem:[%s4 + $0x10] sm:$0xff]
          %v512 = vld [vmem:[%s4 + $0x18] sm:$0xff]
          %v513 = vld [vmem:[%s0] sm:$0x3f]
          %v514 = vld [vmem:[%s5] sm:$0xff]
          %v515 = vld [vmem:[%s5 + $0x8] sm:$0xff]
          %v516 = vld [vmem:[%s5 + $0x10] sm:$0xff]
          %v517 = vld [vmem:[%s5 + $0x18] sm:$0xff]
          %519 = vset.pattern.permute.xlu0 0
          %520 = vperm.xlu0 %519, %v514
          %v521 = vpop.permute.xlu0 %520
          %524 = vset.pattern.permute.xlu0 0
          %525 = vperm.xlu0 %524, %v515
          %v526 = vpop.permute.xlu0 %525
          %529 = vset.pattern.permute.xlu0 0
          %530 = vperm.xlu0 %529, %v516
          %v531 = vpop.permute.xlu0 %530
          %534 = vset.pattern.permute.xlu0 0
          %535 = vperm.xlu0 %534, %v517
          %v536 = vpop.permute.xlu0 %535
          %vm538 = vcmask 48128
          %v540 = vsel %vm538, %v509, 0
          %v543 = vsel %vm538, %v510, 0
          %v546 = vsel %vm538, %v511, 0
          %v549 = vsel %vm538, %v512, 0
          %vm551 = vcmask 1045504
          %v553 = vsel %vm551, %v513, 0
          %555 = vmatprep.subr.mxu0 0.0
          %556 = vmatpush1.msra.mxu0 0.0
          %557 = vmatprep.subr.mxu0 0.0
          %558 = vmatpush1.msra.mxu0 0.0
          %559 = vmatprep.subr.mxu0 0.0
          %560 = vmatpush1.msra.mxu0 0.0
          %561 = vmatprep.subr.mxu0 0.0
          %562 = vmatpush1.msra.mxu0 0.0
          %563 = vmatprep.subr.mxu0 0.0
          %564 = vmatpush1.msra.mxu0 0.0
          %565 = vmatprep.subr.mxu0 0.0
          %566 = vmatpush1.msra.mxu0 0.0
          %567 = vmatprep.subr.mxu0 0.0
          %568 = vmatpush1.msra.mxu0 0.0
          %569 = vmatprep.subr.mxu0 0.0
          %570 = vmatpush1.msra.mxu0 0.0
          %571 = vmatprep.subr.mxu0 0.0
          %572 = vmatpush1.msra.mxu0 0.0
          %573 = vmatprep.subr.mxu0 0.0
          %574 = vmatpush1.msra.mxu0 0.0
          %575 = vmatprep.subr.mxu0 0.0
          %576 = vmatpush1.msra.mxu0 0.0
          %577 = vmatprep.subr.mxu0 0.0
          %578 = vmatpush1.msra.mxu0 0.0
          %579 = vmatprep.subr.mxu0 0.0
          %580 = vmatpush1.msra.mxu0 0.0
          %581 = vmatprep.subr.mxu0 0.0
          %582 = vmatpush1.msra.mxu0 0.0
          %583 = vmatprep.subr.mxu0 0.0
          %584 = vmatpush1.msra.mxu0 0.0
          %585 = vmatprep.subr.mxu0 0.0
          %586 = vmatpush1.msra.mxu0 %v553
          %587 = vmatprep.subr.mxu0 0.0
          %588 = vmatpush2.msra.mxu0 0.0
          %589 = vmatprep.subr.mxu0 0.0
          %590 = vmatpush2.msra.mxu0 0.0
          %591 = vmatprep.subr.mxu0 0.0
          %592 = vmatpush2.msra.mxu0 0.0
          %593 = vmatprep.subr.mxu0 0.0
          %594 = vmatpush2.msra.mxu0 0.0
          %595 = vmatprep.subr.mxu0 0.0
          %596 = vmatpush2.msra.mxu0 0.0
          %597 = vmatprep.subr.mxu0 0.0
          %598 = vmatpush2.msra.mxu0 0.0
          %599 = vmatprep.subr.mxu0 0.0
          %600 = vmatpush2.msra.mxu0 0.0
          %601 = vmatprep.subr.mxu0 0.0
          %602 = vmatpush2.msra.mxu0 0.0
          %603 = vmatprep.subr.mxu0 0.0
          %604 = vmatpush2.msra.mxu0 0.0
          %605 = vmatprep.subr.mxu0 0.0
          %606 = vmatpush2.msra.mxu0 0.0
          %607 = vmatprep.subr.mxu0 0.0
          %608 = vmatpush2.msra.mxu0 0.0
          %609 = vmatprep.subr.mxu0 0.0
          %610 = vmatpush2.msra.mxu0 0.0
          %611 = vmatprep.subr.mxu0 0.0
          %612 = vmatpush2.msra.mxu0 0.0
          %613 = vmatprep.subr.mxu0 0.0
          %614 = vmatpush2.msra.mxu0 0.0
          %615 = vmatprep.subr.mxu0 0.0
          %616 = vmatpush2.msra.mxu0 0.0
          %617 = vmatprep.subr.mxu0 0.0
          %618 = vmatpush2.msra.mxu0 0.0
          %619 = vmatprep.mubr.f32.mxu0 0.0
          %620 = vmatmul.mubr.f32.gmra.mxu0 %v540
          %v621 = vpop.f32.mrf.mxu0
          %v622 = vadd.f32 %v521, %v621
          %v623 = vpop.f32.mrf.mxu0
          %624 = vmatprep.mubr.f32.mxu0 0.0
          %625 = vmatmul.mubr.f32.gmra.mxu0 %v543
          %v626 = vpop.f32.mrf.mxu0
          %v627 = vadd.f32 %v526, %v626
          %v628 = vpop.f32.mrf.mxu0
          %629 = vmatprep.mubr.f32.mxu0 0.0
          %630 = vmatmul.mubr.f32.gmra.mxu0 %v546
          %v631 = vpop.f32.mrf.mxu0
          %v632 = vadd.f32 %v531, %v631
          %v633 = vpop.f32.mrf.mxu0
          %634 = vmatprep.mubr.f32.mxu0 0.0
          %635 = vmatmul.mubr.f32.gmra.mxu0 %v549
          %v636 = vpop.f32.mrf.mxu0
          %v637 = vadd.f32 %v536, %v636
          %v638 = vpop.f32.mrf.mxu0
          %639 = vdwg.mxu0
          %vm640 = vcmask 89088
          %641 = vst.msk [vmem:[#allocation2] sm:$0xff] %vm640, %v622
          %642 = vst.msk [vmem:[#allocation2 + $0x8] sm:$0xff] %vm640, %v627
          %643 = vst.msk [vmem:[#allocation2 + $0x10] sm:$0xff] %vm640, %v632
          %644 = vst.msk [vmem:[#allocation2 + $0x18] sm:$0xff] %vm640, %v637
          %v645 = vld [vmem:[%s1] sm:$0xff]
          %v646 = vld [vmem:[%s1 + $0x8] sm:$0xff]
          %v647 = vld [vmem:[%s1 + $0x10] sm:$0xff]
          %v648 = vld [vmem:[%s1 + $0x18] sm:$0xff]
          %653 = vrot.lane.b32.xlu0 %v645, 11
          %v654 = vpop.permute.xlu0 %653
          %655 = vrot.lane.b32.xlu0 %v646, 11
          %v656 = vpop.permute.xlu0 %655
          %657 = vrot.lane.b32.xlu0 %v647, 11
          %v658 = vpop.permute.xlu0 %657
          %659 = vrot.lane.b32.xlu0 %v648, 11
          %v660 = vpop.permute.xlu0 %659
          %vm665 = vcmask 105560
          %666 = vst.msk [vmem:[#allocation2] sm:$0xff] %vm665, %v654
          %667 = vst.msk [vmem:[#allocation2 + $0x8] sm:$0xff] %vm665, %v656
          %668 = vst.msk [vmem:[#allocation2 + $0x10] sm:$0xff] %vm665, %v658
          %669 = vst.msk [vmem:[#allocation2 + $0x18] sm:$0xff] %vm665, %v660
        $region76: #{tpu_custom_call.1} parent=71 // pred_fallthru
          _
        %v670 = vld [vmem:[#allocation2] sm:$0xff]
        %v671 = vld [vmem:[#allocation2 + $0x8] sm:$0xff]
        %v672 = vld [vmem:[#allocation2 + $0x10] sm:$0xff]
        %v673 = vld [vmem:[#allocation2 + $0x18] sm:$0xff]
        %v674 = vld [vmem:[%s484] sm:$0xff]
        %v675 = vld [vmem:[%s484 + $0x8] sm:$0xff]
        %v676 = vld [vmem:[%s484 + $0x10] sm:$0xff]
        %v677 = vld [vmem:[%s484 + $0x18] sm:$0xff]
        %v678 = vld [vmem:[%s484 + $0x20] sm:$0xff]
        %v679 = vld [vmem:[%s484 + $0x28] sm:$0xff]
        %v680 = vld [vmem:[%s484 + $0x30] sm:$0xff]
        %v681 = vld [vmem:[%s484 + $0x38] sm:$0xff]
        %v682 = vld [vmem:[%s484 + $0x40] sm:$0xff]
        %v683 = vld [vmem:[%s484 + $0x48] sm:$0xff]
        %v684 = vld [vmem:[%s484 + $0x50] sm:$0xff]
        %v685 = vld [vmem:[%s484 + $0x58] sm:$0xff]
        %v686 = vld [vmem:[%s484 + $0x60] sm:$0xff]
        %v687 = vld [vmem:[%s484 + $0x68] sm:$0xff]
        %v688 = vld [vmem:[%s484 + $0x70] sm:$0xff]
        %v689 = vld [vmem:[%s484 + $0x78] sm:$0xff]
        %v690 = vld [vmem:[%s484 + $0x80] sm:$0xff]
        %v691 = vld [vmem:[%s484 + $0x88] sm:$0xff]
        %v692 = vld [vmem:[%s484 + $0x90] sm:$0xff]
        %v693 = vld [vmem:[%s484 + $0x98] sm:$0xff]
        %v694 = vld [vmem:[%s484 + $0xa0] sm:$0xff]
        %v695 = vld [vmem:[%s484 + $0xa8] sm:$0xff]
        %v696 = vld [vmem:[%s484 + $0xb0] sm:$0xff]
        %v697 = vld [vmem:[%s484 + $0xb8] sm:$0xff]
        %v698 = vld [vmem:[%s489] sm:$0xff]
        %v699 = vld [vmem:[%s489 + $0x8] sm:$0xff]
        %v700 = vld [vmem:[%s489 + $0x10] sm:$0xff]
        %v701 = vld [vmem:[%s489 + $0x18] sm:$0xff]
        %v702 = vld [vmem:[%s489 + $0x20] sm:$0xff]
        %v703 = vld [vmem:[%s489 + $0x28] sm:$0xff]
        %v704 = vld [vmem:[%s489 + $0x30] sm:$0xff]
        %v705 = vld [vmem:[%s489 + $0x38] sm:$0xff]
        %v706 = vld [vmem:[%s489 + $0x40] sm:$0xff]
        %v707 = vld [vmem:[%s489 + $0x48] sm:$0xff]
        %v708 = vld [vmem:[%s489 + $0x50] sm:$0xff]
        %v709 = vld [vmem:[%s489 + $0x58] sm:$0xff]
        %v710 = vld [vmem:[%s489 + $0x60] sm:$0xff]
        %v711 = vld [vmem:[%s489 + $0x68] sm:$0xff]
        %v712 = vld [vmem:[%s489 + $0x70] sm:$0xff]
        %v713 = vld [vmem:[%s489 + $0x78] sm:$0xff]
        %v714 = vld [vmem:[%s489 + $0x80] sm:$0xff]
        %v715 = vld [vmem:[%s489 + $0x88] sm:$0xff]
        %v716 = vld [vmem:[%s489 + $0x90] sm:$0xff]
        %v717 = vld [vmem:[%s489 + $0x98] sm:$0xff]
        %v718 = vld [vmem:[%s489 + $0xa0] sm:$0xff]
        %v719 = vld [vmem:[%s489 + $0xa8] sm:$0xff]
        %v720 = vld [vmem:[%s489 + $0xb0] sm:$0xff]
        %v721 = vld [vmem:[%s489 + $0xb8] sm:$0xff]
        %723 = vset.pattern.permute.xlu0 0
        %724 = vperm.xlu0 %723, %v698
        %v725 = vpop.permute.xlu0 %724
        %728 = vset.pattern.permute.xlu0 0
        %729 = vperm.xlu0 %728, %v699
        %v730 = vpop.permute.xlu0 %729
        %733 = vset.pattern.permute.xlu0 0
        %734 = vperm.xlu0 %733, %v700
        %v735 = vpop.permute.xlu0 %734
        %738 = vset.pattern.permute.xlu0 0
        %739 = vperm.xlu0 %738, %v701
        %v740 = vpop.permute.xlu0 %739
        %743 = vset.pattern.permute.xlu0 0
        %744 = vperm.xlu0 %743, %v702
        %v745 = vpop.permute.xlu0 %744
        %748 = vset.pattern.permute.xlu0 0
        %749 = vperm.xlu0 %748, %v703
        %v750 = vpop.permute.xlu0 %749
        %753 = vset.pattern.permute.xlu0 0
        %754 = vperm.xlu0 %753, %v704
        %v755 = vpop.permute.xlu0 %754
        %758 = vset.pattern.permute.xlu0 0
        %759 = vperm.xlu0 %758, %v705
        %v760 = vpop.permute.xlu0 %759
        %763 = vset.pattern.permute.xlu0 0
        %764 = vperm.xlu0 %763, %v706
        %v765 = vpop.permute.xlu0 %764
        %768 = vset.pattern.permute.xlu0 0
        %769 = vperm.xlu0 %768, %v707
        %v770 = vpop.permute.xlu0 %769
        %773 = vset.pattern.permute.xlu0 0
        %774 = vperm.xlu0 %773, %v708
        %v775 = vpop.permute.xlu0 %774
        %778 = vset.pattern.permute.xlu0 0
        %779 = vperm.xlu0 %778, %v709
        %v780 = vpop.permute.xlu0 %779
        %783 = vset.pattern.permute.xlu0 0
        %784 = vperm.xlu0 %783, %v710
        %v785 = vpop.permute.xlu0 %784
        %788 = vset.pattern.permute.xlu0 0
        %789 = vperm.xlu0 %788, %v711
        %v790 = vpop.permute.xlu0 %789
        %793 = vset.pattern.permute.xlu0 0
        %794 = vperm.xlu0 %793, %v712
        %v795 = vpop.permute.xlu0 %794
        %798 = vset.pattern.permute.xlu0 0
        %799 = vperm.xlu0 %798, %v713
        %v800 = vpop.permute.xlu0 %799
        %803 = vset.pattern.permute.xlu0 0
        %804 = vperm.xlu0 %803, %v714
        %v805 = vpop.permute.xlu0 %804
        %808 = vset.pattern.permute.xlu0 0
        %809 = vperm.xlu0 %808, %v715
        %v810 = vpop.permute.xlu0 %809
        %813 = vset.pattern.permute.xlu0 0
        %814 = vperm.xlu0 %813, %v716
        %v815 = vpop.permute.xlu0 %814
        %818 = vset.pattern.permute.xlu0 0
        %819 = vperm.xlu0 %818, %v717
        %v820 = vpop.permute.xlu0 %819
        %823 = vset.pattern.permute.xlu0 0
        %824 = vperm.xlu0 %823, %v718
        %v825 = vpop.permute.xlu0 %824
        %828 = vset.pattern.permute.xlu0 0
        %829 = vperm.xlu0 %828, %v719
        %v830 = vpop.permute.xlu0 %829
        %833 = vset.pattern.permute.xlu0 0
        %834 = vperm.xlu0 %833, %v720
        %v835 = vpop.permute.xlu0 %834
        %838 = vset.pattern.permute.xlu0 0
        %839 = vperm.xlu0 %838, %v721
        %v840 = vpop.permute.xlu0 %839
        %vm842 = vcmask 261120
        %v844 = vsel %vm842, %v674, 0
        %v847 = vsel %vm842, %v675, 0
        %v850 = vsel %vm842, %v676, 0
        %v853 = vsel %vm842, %v677, 0
        %v856 = vsel %vm842, %v678, 0
        %v859 = vsel %vm842, %v679, 0
        %v862 = vsel %vm842, %v680, 0
        %v865 = vsel %vm842, %v681, 0
        %v868 = vsel %vm842, %v682, 0
        %v871 = vsel %vm842, %v683, 0
        %v874 = vsel %vm842, %v684, 0
        %v877 = vsel %vm842, %v685, 0
        %v880 = vsel %vm842, %v686, 0
        %v883 = vsel %vm842, %v687, 0
        %v886 = vsel %vm842, %v688, 0
        %v889 = vsel %vm842, %v689, 0
        %v892 = vsel %vm842, %v690, 0
        %v895 = vsel %vm842, %v691, 0
        %v898 = vsel %vm842, %v692, 0
        %v901 = vsel %vm842, %v693, 0
        %v904 = vsel %vm842, %v694, 0
        %v907 = vsel %vm842, %v695, 0
        %v910 = vsel %vm842, %v696, 0
        %v913 = vsel %vm842, %v697, 0
        %915 = vmatprep.subr.mxu0 0.0
        %916 = vmatpush1.msra.mxu0 0.0
        %917 = vmatprep.subr.mxu0 0.0
        %918 = vmatpush1.msra.mxu0 0.0
        %919 = vmatprep.subr.mxu0 0.0
        %920 = vmatpush1.msra.mxu0 0.0
        %921 = vmatprep.subr.mxu0 0.0
        %922 = vmatpush1.msra.mxu0 0.0
        %923 = vmatprep.subr.mxu0 0.0
        %924 = vmatpush1.msra.mxu0 0.0
        %925 = vmatprep.subr.mxu0 0.0
        %926 = vmatpush1.msra.mxu0 0.0
        %927 = vmatprep.subr.mxu0 0.0
        %928 = vmatpush1.msra.mxu0 0.0
        %929 = vmatprep.subr.mxu0 0.0
        %930 = vmatpush1.msra.mxu0 0.0
        %931 = vmatprep.subr.mxu0 0.0
        %932 = vmatpush1.msra.mxu0 0.0
        %933 = vmatprep.subr.mxu0 0.0
        %934 = vmatpush1.msra.mxu0 0.0
        %935 = vmatprep.subr.mxu0 0.0
        %936 = vmatpush1.msra.mxu0 0.0
        %937 = vmatprep.subr.mxu0 0.0
        %938 = vmatpush1.msra.mxu0 0.0
        %939 = vmatprep.subr.mxu0 0.0
        %940 = vmatpush1.msra.mxu0 %v673
        %941 = vmatprep.subr.mxu0 0.0
        %942 = vmatpush1.msra.mxu0 %v672
        %943 = vmatprep.subr.mxu0 0.0
        %944 = vmatpush1.msra.mxu0 %v671
        %945 = vmatprep.subr.mxu0 0.0
        %946 = vmatpush1.msra.mxu0 %v670
        %947 = vmatprep.subr.mxu0 0.0
        %948 = vmatpush2.msra.mxu0 0.0
        %949 = vmatprep.subr.mxu0 0.0
        %950 = vmatpush2.msra.mxu0 0.0
        %951 = vmatprep.subr.mxu0 0.0
        %952 = vmatpush2.msra.mxu0 0.0
        %953 = vmatprep.subr.mxu0 0.0
        %954 = vmatpush2.msra.mxu0 0.0
        %955 = vmatprep.subr.mxu0 0.0
        %956 = vmatpush2.msra.mxu0 0.0
        %957 = vmatprep.subr.mxu0 0.0
        %958 = vmatpush2.msra.mxu0 0.0
        %959 = vmatprep.subr.mxu0 0.0
        %960 = vmatpush2.msra.mxu0 0.0
        %961 = vmatprep.subr.mxu0 0.0
        %962 = vmatpush2.msra.mxu0 0.0
        %963 = vmatprep.subr.mxu0 0.0
        %964 = vmatpush2.msra.mxu0 0.0
        %965 = vmatprep.subr.mxu0 0.0
        %966 = vmatpush2.msra.mxu0 0.0
        %967 = vmatprep.subr.mxu0 0.0
        %968 = vmatpush2.msra.mxu0 0.0
        %969 = vmatprep.subr.mxu0 0.0
        %970 = vmatpush2.msra.mxu0 0.0
        %971 = vmatprep.subr.mxu0 0.0
        %972 = vmatpush2.msra.mxu0 0.0
        %973 = vmatprep.subr.mxu0 0.0
        %974 = vmatpush2.msra.mxu0 0.0
        %975 = vmatprep.subr.mxu0 0.0
        %976 = vmatpush2.msra.mxu0 0.0
        %977 = vmatprep.subr.mxu0 0.0
        %978 = vmatpush2.msra.mxu0 0.0
        %979 = vmatprep.mubr.f32.mxu0 0.0
        %980 = vmatmul.mubr.f32.gmra.mxu0 %v844
        %v981 = vpop.f32.mrf.mxu0
        %v982 = vadd.f32 %v725, %v981
        %v983 = vpop.f32.mrf.mxu0
        %984 = vmatprep.mubr.f32.mxu0 0.0
        %985 = vmatmul.mubr.f32.gmra.mxu0 %v847
        %v986 = vpop.f32.mrf.mxu0
        %v987 = vadd.f32 %v730, %v986
        %v988 = vpop.f32.mrf.mxu0
        %989 = vmatprep.mubr.f32.mxu0 0.0
        %990 = vmatmul.mubr.f32.gmra.mxu0 %v850
        %v991 = vpop.f32.mrf.mxu0
        %v992 = vadd.f32 %v735, %v991
        %v993 = vpop.f32.mrf.mxu0
        %994 = vmatprep.mubr.f32.mxu0 0.0
        %995 = vmatmul.mubr.f32.gmra.mxu0 %v853
        %v996 = vpop.f32.mrf.mxu0
        %v997 = vadd.f32 %v740, %v996
        %v998 = vpop.f32.mrf.mxu0
        %999 = vmatprep.mubr.f32.mxu0 0.0
        %1000 = vmatmul.mubr.f32.gmra.mxu0 %v856
        %v1001 = vpop.f32.mrf.mxu0
        %v1002 = vadd.f32 %v745, %v1001
        %v1003 = vpop.f32.mrf.mxu0
        %1004 = vmatprep.mubr.f32.mxu0 0.0
        %1005 = vmatmul.mubr.f32.gmra.mxu0 %v859
        %v1006 = vpop.f32.mrf.mxu0
        %v1007 = vadd.f32 %v750, %v1006
        %v1008 = vpop.f32.mrf.mxu0
        %1009 = vmatprep.mubr.f32.mxu0 0.0
        %1010 = vmatmul.mubr.f32.gmra.mxu0 %v862
        %v1011 = vpop.f32.mrf.mxu0
        %v1012 = vadd.f32 %v755, %v1011
        %v1013 = vpop.f32.mrf.mxu0
        %1014 = vmatprep.mubr.f32.mxu0 0.0
        %1015 = vmatmul.mubr.f32.gmra.mxu0 %v865
        %v1016 = vpop.f32.mrf.mxu0
        %v1017 = vadd.f32 %v760, %v1016
        %v1018 = vpop.f32.mrf.mxu0
        %1019 = vmatprep.mubr.f32.mxu0 0.0
        %1020 = vmatmul.mubr.f32.gmra.mxu0 %v868
        %v1021 = vpop.f32.mrf.mxu0
        %v1022 = vadd.f32 %v765, %v1021
        %v1023 = vpop.f32.mrf.mxu0
        %1024 = vmatprep.mubr.f32.mxu0 0.0
        %1025 = vmatmul.mubr.f32.gmra.mxu0 %v871
        %v1026 = vpop.f32.mrf.mxu0
        %v1027 = vadd.f32 %v770, %v1026
        %v1028 = vpop.f32.mrf.mxu0
        %1029 = vmatprep.mubr.f32.mxu0 0.0
        %1030 = vmatmul.mubr.f32.gmra.mxu0 %v874
        %v1031 = vpop.f32.mrf.mxu0
        %v1032 = vadd.f32 %v775, %v1031
        %v1033 = vpop.f32.mrf.mxu0
        %1034 = vmatprep.mubr.f32.mxu0 0.0
        %1035 = vmatmul.mubr.f32.gmra.mxu0 %v877
        %v1036 = vpop.f32.mrf.mxu0
        %v1037 = vadd.f32 %v780, %v1036
        %v1038 = vpop.f32.mrf.mxu0
        %1039 = vmatprep.mubr.f32.mxu0 0.0
        %1040 = vmatmul.mubr.f32.gmra.mxu0 %v880
        %v1041 = vpop.f32.mrf.mxu0
        %v1042 = vadd.f32 %v785, %v1041
        %v1043 = vpop.f32.mrf.mxu0
        %1044 = vmatprep.mubr.f32.mxu0 0.0
        %1045 = vmatmul.mubr.f32.gmra.mxu0 %v883
        %v1046 = vpop.f32.mrf.mxu0
        %v1047 = vadd.f32 %v790, %v1046
        %v1048 = vpop.f32.mrf.mxu0
        %1049 = vmatprep.mubr.f32.mxu0 0.0
        %1050 = vmatmul.mubr.f32.gmra.mxu0 %v886
        %v1051 = vpop.f32.mrf.mxu0
        %v1052 = vadd.f32 %v795, %v1051
        %v1053 = vpop.f32.mrf.mxu0
        %1054 = vmatprep.mubr.f32.mxu0 0.0
        %1055 = vmatmul.mubr.f32.gmra.mxu0 %v889
        %v1056 = vpop.f32.mrf.mxu0
        %v1057 = vadd.f32 %v800, %v1056
        %v1058 = vpop.f32.mrf.mxu0
        %1059 = vmatprep.mubr.f32.mxu0 0.0
        %1060 = vmatmul.mubr.f32.gmra.mxu0 %v892
        %v1061 = vpop.f32.mrf.mxu0
        %v1062 = vadd.f32 %v805, %v1061
        %v1063 = vpop.f32.mrf.mxu0
        %1064 = vmatprep.mubr.f32.mxu0 0.0
        %1065 = vmatmul.mubr.f32.gmra.mxu0 %v895
        %v1066 = vpop.f32.mrf.mxu0
        %v1067 = vadd.f32 %v810, %v1066
        %v1068 = vpop.f32.mrf.mxu0
        %1069 = vmatprep.mubr.f32.mxu0 0.0
        %1070 = vmatmul.mubr.f32.gmra.mxu0 %v898
        %v1071 = vpop.f32.mrf.mxu0
        %v1072 = vadd.f32 %v815, %v1071
        %v1073 = vpop.f32.mrf.mxu0
        %1074 = vmatprep.mubr.f32.mxu0 0.0
        %1075 = vmatmul.mubr.f32.gmra.mxu0 %v901
        %v1076 = vpop.f32.mrf.mxu0
        %v1077 = vadd.f32 %v820, %v1076
        %v1078 = vpop.f32.mrf.mxu0
        %1079 = vmatprep.mubr.f32.mxu0 0.0
        %1080 = vmatmul.mubr.f32.gmra.mxu0 %v904
        %v1081 = vpop.f32.mrf.mxu0
        %v1082 = vadd.f32 %v825, %v1081
        %v1083 = vpop.f32.mrf.mxu0
        %1084 = vmatprep.mubr.f32.mxu0 0.0
        %1085 = vmatmul.mubr.f32.gmra.mxu0 %v907
        %v1086 = vpop.f32.mrf.mxu0
        %v1087 = vadd.f32 %v830, %v1086
        %v1088 = vpop.f32.mrf.mxu0
        %1089 = vmatprep.mubr.f32.mxu0 0.0
        %1090 = vmatmul.mubr.f32.gmra.mxu0 %v910
        %v1091 = vpop.f32.mrf.mxu0
        %v1092 = vadd.f32 %v835, %v1091
        %v1093 = vpop.f32.mrf.mxu0
        %1094 = vmatprep.mubr.f32.mxu0 0.0
        %1095 = vmatmul.mubr.f32.gmra.mxu0 %v913
        %v1096 = vpop.f32.mrf.mxu0
        %v1097 = vadd.f32 %v840, %v1096
        %v1098 = vpop.f32.mrf.mxu0
        %1099 = vdwg.mxu0
        %1100 = vxpose.xlu0.b32.start [1/16] %v982, 128
        %1101 = vxpose.xlu0.b32.cont [2/16] 0.0, 128
        %1102 = vxpose.xlu0.b32.cont [3/16] 0.0, 128
        %1103 = vxpose.xlu0.b32.cont [4/16] 0.0, 128
        %1104 = vxpose.xlu0.b32.cont [5/16] 0.0, 128
        %1105 = vxpose.xlu0.b32.cont [6/16] 0.0, 128
        %1106 = vxpose.xlu0.b32.cont [7/16] 0.0, 128
        %1107 = vxpose.xlu0.b32.cont [8/16] 0.0, 128
        %1108 = vxpose.xlu0.b32.cont [9/16] 0.0, 128
        %1109 = vxpose.xlu0.b32.cont [10/16] 0.0, 128
        %1110 = vxpose.xlu0.b32.cont [11/16] 0.0, 128
        %1111 = vxpose.xlu0.b32.cont [12/16] 0.0, 128
        %1112 = vxpose.xlu0.b32.cont [13/16] 0.0, 128
        %1113 = vxpose.xlu0.b32.cont [14/16] 0.0, 128
        %1114 = vxpose.xlu0.b32.cont [15/16] 0.0, 128
        %1115 = vxpose.xlu0.b32.end [16/16] 0.0, 128
        %v1116 = vpop.trf.xlu0
        %v1117 = vpop.trf.xlu0
        %v1118 = vpop.trf.xlu0
        %v1119 = vpop.trf.xlu0
        %v1120 = vpop.trf.xlu0
        %v1121 = vpop.trf.xlu0
        %v1122 = vpop.trf.xlu0
        %v1123 = vpop.trf.xlu0
        %v1124 = vpop.trf.xlu0
        %v1125 = vpop.trf.xlu0
        %v1126 = vpop.trf.xlu0
        %v1127 = vpop.trf.xlu0
        %v1128 = vpop.trf.xlu0
        %v1129 = vpop.trf.xlu0
        %v1130 = vpop.trf.xlu0
        %v1131 = vpop.trf.xlu0
        %1132 = vxpose.xlu0.b32.start [1/16] %v987, 128
        %1133 = vxpose.xlu0.b32.cont [2/16] 0.0, 128
        %1134 = vxpose.xlu0.b32.cont [3/16] 0.0, 128
        %1135 = vxpose.xlu0.b32.cont [4/16] 0.0, 128
        %1136 = vxpose.xlu0.b32.cont [5/16] 0.0, 128
        %1137 = vxpose.xlu0.b32.cont [6/16] 0.0, 128
        %1138 = vxpose.xlu0.b32.cont [7/16] 0.0, 128
        %1139 = vxpose.xlu0.b32.cont [8/16] 0.0, 128
        %1140 = vxpose.xlu0.b32.cont [9/16] 0.0, 128
        %1141 = vxpose.xlu0.b32.cont [10/16] 0.0, 128
        %1142 = vxpose.xlu0.b32.cont [11/16] 0.0, 128
        %1143 = vxpose.xlu0.b32.cont [12/16] 0.0, 128
        %1144 = vxpose.xlu0.b32.cont [13/16] 0.0, 128
        %1145 = vxpose.xlu0.b32.cont [14/16] 0.0, 128
        %1146 = vxpose.xlu0.b32.cont [15/16] 0.0, 128
        %1147 = vxpose.xlu0.b32.end [16/16] 0.0, 128
        %v1148 = vpop.trf.xlu0
        %v1149 = vpop.trf.xlu0
        %v1150 = vpop.trf.xlu0
        %v1151 = vpop.trf.xlu0
        %v1152 = vpop.trf.xlu0
        %v1153 = vpop.trf.xlu0
        %v1154 = vpop.trf.xlu0
        %v1155 = vpop.trf.xlu0
        %v1156 = vpop.trf.xlu0
        %v1157 = vpop.trf.xlu0
        %v1158 = vpop.trf.xlu0
        %v1159 = vpop.trf.xlu0
        %v1160 = vpop.trf.xlu0
        %v1161 = vpop.trf.xlu0
        %v1162 = vpop.trf.xlu0
        %v1163 = vpop.trf.xlu0
        %1164 = vxpose.xlu0.b32.start [1/16] %v992, 128
        %1165 = vxpose.xlu0.b32.cont [2/16] 0.0, 128
        %1166 = vxpose.xlu0.b32.cont [3/16] 0.0, 128
        %1167 = vxpose.xlu0.b32.cont [4/16] 0.0, 128
        %1168 = vxpose.xlu0.b32.cont [5/16] 0.0, 128
        %1169 = vxpose.xlu0.b32.cont [6/16] 0.0, 128
        %1170 = vxpose.xlu0.b32.cont [7/16] 0.0, 128
        %1171 = vxpose.xlu0.b32.cont [8/16] 0.0, 128
        %1172 = vxpose.xlu0.b32.cont [9/16] 0.0, 128
        %1173 = vxpose.xlu0.b32.cont [10/16] 0.0, 128
        %1174 = vxpose.xlu0.b32.cont [11/16] 0.0, 128
        %1175 = vxpose.xlu0.b32.cont [12/16] 0.0, 128
        %1176 = vxpose.xlu0.b32.cont [13/16] 0.0, 128
        %1177 = vxpose.xlu0.b32.cont [14/16] 0.0, 128
        %1178 = vxpose.xlu0.b32.cont [15/16] 0.0, 128
        %1179 = vxpose.xlu0.b32.end [16/16] 0.0, 128
        %v1180 = vpop.trf.xlu0
        %v1181 = vpop.trf.xlu0
        %v1182 = vpop.trf.xlu0
        %v1183 = vpop.trf.xlu0
        %v1184 = vpop.trf.xlu0
        %v1185 = vpop.trf.xlu0
        %v1186 = vpop.trf.xlu0
        %v1187 = vpop.trf.xlu0
        %v1188 = vpop.trf.xlu0
        %v1189 = vpop.trf.xlu0
        %v1190 = vpop.trf.xlu0
        %v1191 = vpop.trf.xlu0
        %v1192 = vpop.trf.xlu0
        %v1193 = vpop.trf.xlu0
        %v1194 = vpop.trf.xlu0
        %v1195 = vpop.trf.xlu0
        %1196 = vxpose.xlu0.b32.start [1/16] %v997, 128
        %1197 = vxpose.xlu0.b32.cont [2/16] 0.0, 128
        %1198 = vxpose.xlu0.b32.cont [3/16] 0.0, 128
        %1199 = vxpose.xlu0.b32.cont [4/16] 0.0, 128
        %1200 = vxpose.xlu0.b32.cont [5/16] 0.0, 128
        %1201 = vxpose.xlu0.b32.cont [6/16] 0.0, 128
        %1202 = vxpose.xlu0.b32.cont [7/16] 0.0, 128
        %1203 = vxpose.xlu0.b32.cont [8/16] 0.0, 128
        %1204 = vxpose.xlu0.b32.cont [9/16] 0.0, 128
        %1205 = vxpose.xlu0.b32.cont [10/16] 0.0, 128
        %1206 = vxpose.xlu0.b32.cont [11/16] 0.0, 128
        %1207 = vxpose.xlu0.b32.cont [12/16] 0.0, 128
        %1208 = vxpose.xlu0.b32.cont [13/16] 0.0, 128
        %1209 = vxpose.xlu0.b32.cont [14/16] 0.0, 128
        %1210 = vxpose.xlu0.b32.cont [15/16] 0.0, 128
        %1211 = vxpose.xlu0.b32.end [16/16] 0.0, 128
        %v1212 = vpop.trf.xlu0
        %v1213 = vpop.trf.xlu0
        %v1214 = vpop.trf.xlu0
        %v1215 = vpop.trf.xlu0
        %v1216 = vpop.trf.xlu0
        %v1217 = vpop.trf.xlu0
        %v1218 = vpop.trf.xlu0
        %v1219 = vpop.trf.xlu0
        %v1220 = vpop.trf.xlu0
        %v1221 = vpop.trf.xlu0
        %v1222 = vpop.trf.xlu0
        %v1223 = vpop.trf.xlu0
        %v1224 = vpop.trf.xlu0
        %v1225 = vpop.trf.xlu0
        %v1226 = vpop.trf.xlu0
        %v1227 = vpop.trf.xlu0
        %1228 = vxpose.xlu0.b32.start [1/16] %v1002, 128
        %1229 = vxpose.xlu0.b32.cont [2/16] 0.0, 128
        %1230 = vxpose.xlu0.b32.cont [3/16] 0.0, 128
        %1231 = vxpose.xlu0.b32.cont [4/16] 0.0, 128
        %1232 = vxpose.xlu0.b32.cont [5/16] 0.0, 128
        %1233 = vxpose.xlu0.b32.cont [6/16] 0.0, 128
        %1234 = vxpose.xlu0.b32.cont [7/16] 0.0, 128
        %1235 = vxpose.xlu0.b32.cont [8/16] 0.0, 128
        %1236 = vxpose.xlu0.b32.cont [9/16] 0.0, 128
        %1237 = vxpose.xlu0.b32.cont [10/16] 0.0, 128
        %1238 = vxpose.xlu0.b32.cont [11/16] 0.0, 128
        %1239 = vxpose.xlu0.b32.cont [12/16] 0.0, 128
        %1240 = vxpose.xlu0.b32.cont [13/16] 0.0, 128
        %1241 = vxpose.xlu0.b32.cont [14/16] 0.0, 128
        %1242 = vxpose.xlu0.b32.cont [15/16] 0.0, 128
        %1243 = vxpose.xlu0.b32.end [16/16] 0.0, 128
        %v1244 = vpop.trf.xlu0
        %v1245 = vpop.trf.xlu0
        %v1246 = vpop.trf.xlu0
        %v1247 = vpop.trf.xlu0
        %v1248 = vpop.trf.xlu0
        %v1249 = vpop.trf.xlu0
        %v1250 = vpop.trf.xlu0
        %v1251 = vpop.trf.xlu0
        %v1252 = vpop.trf.xlu0
        %v1253 = vpop.trf.xlu0
        %v1254 = vpop.trf.xlu0
        %v1255 = vpop.trf.xlu0
        %v1256 = vpop.trf.xlu0
        %v1257 = vpop.trf.xlu0
        %v1258 = vpop.trf.xlu0
        %v1259 = vpop.trf.xlu0
        %1260 = vxpose.xlu0.b32.start [1/16] %v1007, 128
        %1261 = vxpose.xlu0.b32.cont [2/16] 0.0, 128
        %1262 = vxpose.xlu0.b32.cont [3/16] 0.0, 128
        %1263 = vxpose.xlu0.b32.cont [4/16] 0.0, 128
        %1264 = vxpose.xlu0.b32.cont [5/16] 0.0, 128
        %1265 = vxpose.xlu0.b32.cont [6/16] 0.0, 128
        %1266 = vxpose.xlu0.b32.cont [7/16] 0.0, 128
        %1267 = vxpose.xlu0.b32.cont [8/16] 0.0, 128
        %1268 = vxpose.xlu0.b32.cont [9/16] 0.0, 128
        %1269 = vxpose.xlu0.b32.cont [10/16] 0.0, 128
        %1270 = vxpose.xlu0.b32.cont [11/16] 0.0, 128
        %1271 = vxpose.xlu0.b32.cont [12/16] 0.0, 128
        %1272 = vxpose.xlu0.b32.cont [13/16] 0.0, 128
        %1273 = vxpose.xlu0.b32.cont [14/16] 0.0, 128
        %1274 = vxpose.xlu0.b32.cont [15/16] 0.0, 128
        %1275 = vxpose.xlu0.b32.end [16/16] 0.0, 128
        %v1276 = vpop.trf.xlu0
        %v1277 = vpop.trf.xlu0
        %v1278 = vpop.trf.xlu0
        %v1279 = vpop.trf.xlu0
        %v1280 = vpop.trf.xlu0
        %v1281 = vpop.trf.xlu0
        %v1282 = vpop.trf.xlu0
        %v1283 = vpop.trf.xlu0
        %v1284 = vpop.trf.xlu0
        %v1285 = vpop.trf.xlu0
        %v1286 = vpop.trf.xlu0
        %v1287 = vpop.trf.xlu0
        %v1288 = vpop.trf.xlu0
        %v1289 = vpop.trf.xlu0
        %v1290 = vpop.trf.xlu0
        %v1291 = vpop.trf.xlu0
        %1292 = vxpose.xlu0.b32.start [1/16] %v1012, 128
        %1293 = vxpose.xlu0.b32.cont [2/16] 0.0, 128
        %1294 = vxpose.xlu0.b32.cont [3/16] 0.0, 128
        %1295 = vxpose.xlu0.b32.cont [4/16] 0.0, 128
        %1296 = vxpose.xlu0.b32.cont [5/16] 0.0, 128
        %1297 = vxpose.xlu0.b32.cont [6/16] 0.0, 128
        %1298 = vxpose.xlu0.b32.cont [7/16] 0.0, 128
        %1299 = vxpose.xlu0.b32.cont [8/16] 0.0, 128
        %1300 = vxpose.xlu0.b32.cont [9/16] 0.0, 128
        %1301 = vxpose.xlu0.b32.cont [10/16] 0.0, 128
        %1302 = vxpose.xlu0.b32.cont [11/16] 0.0, 128
        %1303 = vxpose.xlu0.b32.cont [12/16] 0.0, 128
        %1304 = vxpose.xlu0.b32.cont [13/16] 0.0, 128
        %1305 = vxpose.xlu0.b32.cont [14/16] 0.0, 128
        %1306 = vxpose.xlu0.b32.cont [15/16] 0.0, 128
        %1307 = vxpose.xlu0.b32.end [16/16] 0.0, 128
        %v1308 = vpop.trf.xlu0
        %v1309 = vpop.trf.xlu0
        %v1310 = vpop.trf.xlu0
        %v1311 = vpop.trf.xlu0
        %v1312 = vpop.trf.xlu0
        %v1313 = vpop.trf.xlu0
        %v1314 = vpop.trf.xlu0
        %v1315 = vpop.trf.xlu0
        %v1316 = vpop.trf.xlu0
        %v1317 = vpop.trf.xlu0
        %v1318 = vpop.trf.xlu0
        %v1319 = vpop.trf.xlu0
        %v1320 = vpop.trf.xlu0
        %v1321 = vpop.trf.xlu0
        %v1322 = vpop.trf.xlu0
        %v1323 = vpop.trf.xlu0
        %1324 = vxpose.xlu0.b32.start [1/16] %v1017, 128
        %1325 = vxpose.xlu0.b32.cont [2/16] 0.0, 128
        %1326 = vxpose.xlu0.b32.cont [3/16] 0.0, 128
        %1327 = vxpose.xlu0.b32.cont [4/16] 0.0, 128
        %1328 = vxpose.xlu0.b32.cont [5/16] 0.0, 128
        %1329 = vxpose.xlu0.b32.cont [6/16] 0.0, 128
        %1330 = vxpose.xlu0.b32.cont [7/16] 0.0, 128
        %1331 = vxpose.xlu0.b32.cont [8/16] 0.0, 128
        %1332 = vxpose.xlu0.b32.cont [9/16] 0.0, 128
        %1333 = vxpose.xlu0.b32.cont [10/16] 0.0, 128
        %1334 = vxpose.xlu0.b32.cont [11/16] 0.0, 128
        %1335 = vxpose.xlu0.b32.cont [12/16] 0.0, 128
        %1336 = vxpose.xlu0.b32.cont [13/16] 0.0, 128
        %1337 = vxpose.xlu0.b32.cont [14/16] 0.0, 128
        %1338 = vxpose.xlu0.b32.cont [15/16] 0.0, 128
        %1339 = vxpose.xlu0.b32.end [16/16] 0.0, 128
        %v1340 = vpop.trf.xlu0
        %v1341 = vpop.trf.xlu0
        %v1342 = vpop.trf.xlu0
        %v1343 = vpop.trf.xlu0
        %v1344 = vpop.trf.xlu0
        %v1345 = vpop.trf.xlu0
        %v1346 = vpop.trf.xlu0
        %v1347 = vpop.trf.xlu0
        %v1348 = vpop.trf.xlu0
        %v1349 = vpop.trf.xlu0
        %v1350 = vpop.trf.xlu0
        %v1351 = vpop.trf.xlu0
        %v1352 = vpop.trf.xlu0
        %v1353 = vpop.trf.xlu0
        %v1354 = vpop.trf.xlu0
        %v1355 = vpop.trf.xlu0
        %v1356 = vpack.c.bf16 %v1117, %v1116
        %v1357 = vpack.c.bf16 %v1149, %v1148
        %v1358 = vpack.c.bf16 %v1181, %v1180
        %v1359 = vpack.c.bf16 %v1213, %v1212
        %v1360 = vpack.c.bf16 %v1245, %v1244
        %v1361 = vpack.c.bf16 %v1277, %v1276
        %v1362 = vpack.c.bf16 %v1309, %v1308
        %v1363 = vpack.c.bf16 %v1341, %v1340
        %v1364 = vpack.c.bf16 %v1022, %v1022
        %v1365 = vpack.c.bf16 %v1027, %v1027
        %v1366 = vpack.c.bf16 %v1032, %v1032
        %v1367 = vpack.c.bf16 %v1037, %v1037
        %v1368 = vpack.c.bf16 %v1042, %v1042
        %v1369 = vpack.c.bf16 %v1047, %v1047
        %v1370 = vpack.c.bf16 %v1052, %v1052
        %v1371 = vpack.c.bf16 %v1057, %v1057
        %v1372 = vld [vmem:[%s3] sm:$0xff]
        %v1373 = vld [vmem:[%s3 + $0x8] sm:$0x1f]
        %vm1374 = vcmask 64512
        %v1376 = vsel %vm1374, %v1356, 0
        %vm1378 = vcmask 1043456
        %v1380 = vsel %vm1378, %v1364, 0
        %1382 = vmatprep.subr.bf16.mxu0 0
        %1383 = vmatpush1.bf16.msra.mxu0 0
        %1384 = vmatprep.subr.bf16.mxu0 0
        %1385 = vmatpush1.bf16.msra.mxu0 0
        %1386 = vmatprep.subr.bf16.mxu0 0
        %1387 = vmatpush1.bf16.msra.mxu0 0
        %1388 = vmatprep.subr.bf16.mxu0 0
        %1389 = vmatpush1.bf16.msra.mxu0 0
        %1390 = vmatprep.subr.bf16.mxu0 0
        %1391 = vmatpush1.bf16.msra.mxu0 0
        %1392 = vmatprep.subr.bf16.mxu0 0
        %1393 = vmatpush1.bf16.msra.mxu0 0
        %1394 = vmatprep.subr.bf16.mxu0 0
        %1395 = vmatpush1.bf16.msra.mxu0 0
        %1396 = vmatprep.subr.bf16.mxu0 0
        %1397 = vmatpush1.bf16.msra.mxu0 %v1380
        %1398 = vmatprep.subr.bf16.mxu0 0
        %1399 = vmatpush2.bf16.msra.mxu0 0
        %1400 = vmatprep.subr.bf16.mxu0 0
        %1401 = vmatpush2.bf16.msra.mxu0 0
        %1402 = vmatprep.subr.bf16.mxu0 0
        %1403 = vmatpush2.bf16.msra.mxu0 0
        %1404 = vmatprep.subr.bf16.mxu0 0
        %1405 = vmatpush2.bf16.msra.mxu0 0
        %1406 = vmatprep.subr.bf16.mxu0 0
        %1407 = vmatpush2.bf16.msra.mxu0 0
        %1408 = vmatprep.subr.bf16.mxu0 0
        %1409 = vmatpush2.bf16.msra.mxu0 0
        %1410 = vmatprep.subr.bf16.mxu0 0
        %1411 = vmatpush2.bf16.msra.mxu0 0
        %1412 = vmatprep.subr.bf16.mxu0 0
        %1413 = vmatpush2.bf16.msra.mxu0 0
        %1414 = vmatprep.mubr.bf16.mxu0 0
        %1415 = vmatmul.mubr.bf16.gmra.mxu0 %v1376
        %v1416 = vpop.f32.mrf.mxu0
        %v1417 = vadd.f32 %v1372, %v1416
        %v1418 = vpop.f32.mrf.mxu0
        %v1419 = vpop.f32.mrf.mxu0
        %v1420 = vadd.f32 %v1373, %v1419
        %v1421 = vpop.f32.mrf.mxu0
        %1422 = vdwg.mxu0
        %v1424 = vsel %vm1374, %v1357, 0
        %v1427 = vsel %vm1378, %v1365, 0
        %1429 = vmatprep.subr.bf16.mxu0 0
        %1430 = vmatpush1.bf16.msra.mxu0 0
        %1431 = vmatprep.subr.bf16.mxu0 0
        %1432 = vmatpush1.bf16.msra.mxu0 0
        %1433 = vmatprep.subr.bf16.mxu0 0
        %1434 = vmatpush1.bf16.msra.mxu0 0
        %1435 = vmatprep.subr.bf16.mxu0 0
        %1436 = vmatpush1.bf16.msra.mxu0 0
        %1437 = vmatprep.subr.bf16.mxu0 0
        %1438 = vmatpush1.bf16.msra.mxu0 0
        %1439 = vmatprep.subr.bf16.mxu0 0
        %1440 = vmatpush1.bf16.msra.mxu0 0
        %1441 = vmatprep.subr.bf16.mxu0 0
        %1442 = vmatpush1.bf16.msra.mxu0 0
        %1443 = vmatprep.subr.bf16.mxu0 0
        %1444 = vmatpush1.bf16.msra.mxu0 %v1427
        %1445 = vmatprep.subr.bf16.mxu0 0
        %1446 = vmatpush2.bf16.msra.mxu0 0
        %1447 = vmatprep.subr.bf16.mxu0 0
        %1448 = vmatpush2.bf16.msra.mxu0 0
        %1449 = vmatprep.subr.bf16.mxu0 0
        %1450 = vmatpush2.bf16.msra.mxu0 0
        %1451 = vmatprep.subr.bf16.mxu0 0
        %1452 = vmatpush2.bf16.msra.mxu0 0
        %1453 = vmatprep.subr.bf16.mxu0 0
        %1454 = vmatpush2.bf16.msra.mxu0 0
        %1455 = vmatprep.subr.bf16.mxu0 0
        %1456 = vmatpush2.bf16.msra.mxu0 0
        %1457 = vmatprep.subr.bf16.mxu0 0
        %1458 = vmatpush2.bf16.msra.mxu0 0
        %1459 = vmatprep.subr.bf16.mxu0 0
        %1460 = vmatpush2.bf16.msra.mxu0 0
        %1461 = vmatprep.mubr.bf16.mxu0 0
        %1462 = vmatmul.mubr.bf16.gmra.mxu0 %v1424
        %v1463 = vpop.f32.mrf.mxu0
        %v1464 = vadd.f32 %v1372, %v1463
        %v1465 = vpop.f32.mrf.mxu0
        %v1466 = vpop.f32.mrf.mxu0
        %v1467 = vadd.f32 %v1373, %v1466
        %v1468 = vpop.f32.mrf.mxu0
        %1469 = vdwg.mxu0
        %v1471 = vsel %vm1374, %v1358, 0
        %v1474 = vsel %vm1378, %v1366, 0
        %1476 = vmatprep.subr.bf16.mxu0 0
        %1477 = vmatpush1.bf16.msra.mxu0 0
        %1478 = vmatprep.subr.bf16.mxu0 0
        %1479 = vmatpush1.bf16.msra.mxu0 0
        %1480 = vmatprep.subr.bf16.mxu0 0
        %1481 = vmatpush1.bf16.msra.mxu0 0
        %1482 = vmatprep.subr.bf16.mxu0 0
        %1483 = vmatpush1.bf16.msra.mxu0 0
        %1484 = vmatprep.subr.bf16.mxu0 0
        %1485 = vmatpush1.bf16.msra.mxu0 0
        %1486 = vmatprep.subr.bf16.mxu0 0
        %1487 = vmatpush1.bf16.msra.mxu0 0
        %1488 = vmatprep.subr.bf16.mxu0 0
        %1489 = vmatpush1.bf16.msra.mxu0 0
        %1490 = vmatprep.subr.bf16.mxu0 0
        %1491 = vmatpush1.bf16.msra.mxu0 %v1474
        %1492 = vmatprep.subr.bf16.mxu0 0
        %1493 = vmatpush2.bf16.msra.mxu0 0
        %1494 = vmatprep.subr.bf16.mxu0 0
        %1495 = vmatpush2.bf16.msra.mxu0 0
        %1496 = vmatprep.subr.bf16.mxu0 0
        %1497 = vmatpush2.bf16.msra.mxu0 0
        %1498 = vmatprep.subr.bf16.mxu0 0
        %1499 = vmatpush2.bf16.msra.mxu0 0
        %1500 = vmatprep.subr.bf16.mxu0 0
        %1501 = vmatpush2.bf16.msra.mxu0 0
        %1502 = vmatprep.subr.bf16.mxu0 0
        %1503 = vmatpush2.bf16.msra.mxu0 0
        %1504 = vmatprep.subr.bf16.mxu0 0
        %1505 = vmatpush2.bf16.msra.mxu0 0
        %1506 = vmatprep.subr.bf16.mxu0 0
        %1507 = vmatpush2.bf16.msra.mxu0 0
        %1508 = vmatprep.mubr.bf16.mxu0 0
        %1509 = vmatmul.mubr.bf16.gmra.mxu0 %v1471
        %v1510 = vpop.f32.mrf.mxu0
        %v1511 = vadd.f32 %v1372, %v1510
        %v1512 = vpop.f32.mrf.mxu0
        %v1513 = vpop.f32.mrf.mxu0
        %v1514 = vadd.f32 %v1373, %v1513
        %v1515 = vpop.f32.mrf.mxu0
        %1516 = vdwg.mxu0
        %v1518 = vsel %vm1374, %v1359, 0
        %v1521 = vsel %vm1378, %v1367, 0
        %1523 = vmatprep.subr.bf16.mxu0 0
        %1524 = vmatpush1.bf16.msra.mxu0 0
        %1525 = vmatprep.subr.bf16.mxu0 0
        %1526 = vmatpush1.bf16.msra.mxu0 0
        %1527 = vmatprep.subr.bf16.mxu0 0
        %1528 = vmatpush1.bf16.msra.mxu0 0
        %1529 = vmatprep.subr.bf16.mxu0 0
        %1530 = vmatpush1.bf16.msra.mxu0 0
        %1531 = vmatprep.subr.bf16.mxu0 0
        %1532 = vmatpush1.bf16.msra.mxu0 0
        %1533 = vmatprep.subr.bf16.mxu0 0
        %1534 = vmatpush1.bf16.msra.mxu0 0
        %1535 = vmatprep.subr.bf16.mxu0 0
        %1536 = vmatpush1.bf16.msra.mxu0 0
        %1537 = vmatprep.subr.bf16.mxu0 0
        %1538 = vmatpush1.bf16.msra.mxu0 %v1521
        %1539 = vmatprep.subr.bf16.mxu0 0
        %1540 = vmatpush2.bf16.msra.mxu0 0
        %1541 = vmatprep.subr.bf16.mxu0 0
        %1542 = vmatpush2.bf16.msra.mxu0 0
        %1543 = vmatprep.subr.bf16.mxu0 0
        %1544 = vmatpush2.bf16.msra.mxu0 0
        %1545 = vmatprep.subr.bf16.mxu0 0
        %1546 = vmatpush2.bf16.msra.mxu0 0
        %1547 = vmatprep.subr.bf16.mxu0 0
        %1548 = vmatpush2.bf16.msra.mxu0 0
        %1549 = vmatprep.subr.bf16.mxu0 0
        %1550 = vmatpush2.bf16.msra.mxu0 0
        %1551 = vmatprep.subr.bf16.mxu0 0
        %1552 = vmatpush2.bf16.msra.mxu0 0
        %1553 = vmatprep.subr.bf16.mxu0 0
        %1554 = vmatpush2.bf16.msra.mxu0 0
        %1555 = vmatprep.mubr.bf16.mxu0 0
        %1556 = vmatmul.mubr.bf16.gmra.mxu0 %v1518
        %v1557 = vpop.f32.mrf.mxu0
        %v1558 = vadd.f32 %v1372, %v1557
        %v1559 = vpop.f32.mrf.mxu0
        %v1560 = vpop.f32.mrf.mxu0
        %v1561 = vadd.f32 %v1373, %v1560
        %v1562 = vpop.f32.mrf.mxu0
        %1563 = vdwg.mxu0
        %v1565 = vsel %vm1374, %v1360, 0
        %v1568 = vsel %vm1378, %v1368, 0
        %1570 = vmatprep.subr.bf16.mxu0 0
        %1571 = vmatpush1.bf16.msra.mxu0 0
        %1572 = vmatprep.subr.bf16.mxu0 0
        %1573 = vmatpush1.bf16.msra.mxu0 0
        %1574 = vmatprep.subr.bf16.mxu0 0
        %1575 = vmatpush1.bf16.msra.mxu0 0
        %1576 = vmatprep.subr.bf16.mxu0 0
        %1577 = vmatpush1.bf16.msra.mxu0 0
        %1578 = vmatprep.subr.bf16.mxu0 0
        %1579 = vmatpush1.bf16.msra.mxu0 0
        %1580 = vmatprep.subr.bf16.mxu0 0
        %1581 = vmatpush1.bf16.msra.mxu0 0
        %1582 = vmatprep.subr.bf16.mxu0 0
        %1583 = vmatpush1.bf16.msra.mxu0 0
        %1584 = vmatprep.subr.bf16.mxu0 0
        %1585 = vmatpush1.bf16.msra.mxu0 %v1568
        %1586 = vmatprep.subr.bf16.mxu0 0
        %1587 = vmatpush2.bf16.msra.mxu0 0
        %1588 = vmatprep.subr.bf16.mxu0 0
        %1589 = vmatpush2.bf16.msra.mxu0 0
        %1590 = vmatprep.subr.bf16.mxu0 0
        %1591 = vmatpush2.bf16.msra.mxu0 0
        %1592 = vmatprep.subr.bf16.mxu0 0
        %1593 = vmatpush2.bf16.msra.mxu0 0
        %1594 = vmatprep.subr.bf16.mxu0 0
        %1595 = vmatpush2.bf16.msra.mxu0 0
        %1596 = vmatprep.subr.bf16.mxu0 0
        %1597 = vmatpush2.bf16.msra.mxu0 0
        %1598 = vmatprep.subr.bf16.mxu0 0
        %1599 = vmatpush2.bf16.msra.mxu0 0
        %1600 = vmatprep.subr.bf16.mxu0 0
        %1601 = vmatpush2.bf16.msra.mxu0 0
        %1602 = vmatprep.mubr.bf16.mxu0 0
        %1603 = vmatmul.mubr.bf16.gmra.mxu0 %v1565
        %v1604 = vpop.f32.mrf.mxu0
        %v1605 = vadd.f32 %v1372, %v1604
        %v1606 = vpop.f32.mrf.mxu0
        %v1607 = vpop.f32.mrf.mxu0
        %v1608 = vadd.f32 %v1373, %v1607
        %v1609 = vpop.f32.mrf.mxu0
        %1610 = vdwg.mxu0
        %v1612 = vsel %vm1374, %v1361, 0
        %v1615 = vsel %vm1378, %v1369, 0
        %1617 = vmatprep.subr.bf16.mxu0 0
        %1618 = vmatpush1.bf16.msra.mxu0 0
        %1619 = vmatprep.subr.bf16.mxu0 0
        %1620 = vmatpush1.bf16.msra.mxu0 0
        %1621 = vmatprep.subr.bf16.mxu0 0
        %1622 = vmatpush1.bf16.msra.mxu0 0
        %1623 = vmatprep.subr.bf16.mxu0 0
        %1624 = vmatpush1.bf16.msra.mxu0 0
        %1625 = vmatprep.subr.bf16.mxu0 0
        %1626 = vmatpush1.bf16.msra.mxu0 0
        %1627 = vmatprep.subr.bf16.mxu0 0
        %1628 = vmatpush1.bf16.msra.mxu0 0
        %1629 = vmatprep.subr.bf16.mxu0 0
        %1630 = vmatpush1.bf16.msra.mxu0 0
        %1631 = vmatprep.subr.bf16.mxu0 0
        %1632 = vmatpush1.bf16.msra.mxu0 %v1615
        %1633 = vmatprep.subr.bf16.mxu0 0
        %1634 = vmatpush2.bf16.msra.mxu0 0
        %1635 = vmatprep.subr.bf16.mxu0 0
        %1636 = vmatpush2.bf16.msra.mxu0 0
        %1637 = vmatprep.subr.bf16.mxu0 0
        %1638 = vmatpush2.bf16.msra.mxu0 0
        %1639 = vmatprep.subr.bf16.mxu0 0
        %1640 = vmatpush2.bf16.msra.mxu0 0
        %1641 = vmatprep.subr.bf16.mxu0 0
        %1642 = vmatpush2.bf16.msra.mxu0 0
        %1643 = vmatprep.subr.bf16.mxu0 0
        %1644 = vmatpush2.bf16.msra.mxu0 0
        %1645 = vmatprep.subr.bf16.mxu0 0
        %1646 = vmatpush2.bf16.msra.mxu0 0
        %1647 = vmatprep.subr.bf16.mxu0 0
        %1648 = vmatpush2.bf16.msra.mxu0 0
        %1649 = vmatprep.mubr.bf16.mxu0 0
        %1650 = vmatmul.mubr.bf16.gmra.mxu0 %v1612
        %v1651 = vpop.f32.mrf.mxu0
        %v1652 = vadd.f32 %v1372, %v1651
        %v1653 = vpop.f32.mrf.mxu0
        %v1654 = vpop.f32.mrf.mxu0
        %v1655 = vadd.f32 %v1373, %v1654
        %v1656 = vpop.f32.mrf.mxu0
        %1657 = vdwg.mxu0
        %v1659 = vsel %vm1374, %v1362, 0
        %v1662 = vsel %vm1378, %v1370, 0
        %1664 = vmatprep.subr.bf16.mxu0 0
        %1665 = vmatpush1.bf16.msra.mxu0 0
        %1666 = vmatprep.subr.bf16.mxu0 0
        %1667 = vmatpush1.bf16.msra.mxu0 0
        %1668 = vmatprep.subr.bf16.mxu0 0
        %1669 = vmatpush1.bf16.msra.mxu0 0
        %1670 = vmatprep.subr.bf16.mxu0 0
        %1671 = vmatpush1.bf16.msra.mxu0 0
        %1672 = vmatprep.subr.bf16.mxu0 0
        %1673 = vmatpush1.bf16.msra.mxu0 0
        %1674 = vmatprep.subr.bf16.mxu0 0
        %1675 = vmatpush1.bf16.msra.mxu0 0
        %1676 = vmatprep.subr.bf16.mxu0 0
        %1677 = vmatpush1.bf16.msra.mxu0 0
        %1678 = vmatprep.subr.bf16.mxu0 0
        %1679 = vmatpush1.bf16.msra.mxu0 %v1662
        %1680 = vmatprep.subr.bf16.mxu0 0
        %1681 = vmatpush2.bf16.msra.mxu0 0
        %1682 = vmatprep.subr.bf16.mxu0 0
        %1683 = vmatpush2.bf16.msra.mxu0 0
        %1684 = vmatprep.subr.bf16.mxu0 0
        %1685 = vmatpush2.bf16.msra.mxu0 0
        %1686 = vmatprep.subr.bf16.mxu0 0
        %1687 = vmatpush2.bf16.msra.mxu0 0
        %1688 = vmatprep.subr.bf16.mxu0 0
        %1689 = vmatpush2.bf16.msra.mxu0 0
        %1690 = vmatprep.subr.bf16.mxu0 0
        %1691 = vmatpush2.bf16.msra.mxu0 0
        %1692 = vmatprep.subr.bf16.mxu0 0
        %1693 = vmatpush2.bf16.msra.mxu0 0
        %1694 = vmatprep.subr.bf16.mxu0 0
        %1695 = vmatpush2.bf16.msra.mxu0 0
        %1696 = vmatprep.mubr.bf16.mxu0 0
        %1697 = vmatmul.mubr.bf16.gmra.mxu0 %v1659
        %v1698 = vpop.f32.mrf.mxu0
        %v1699 = vadd.f32 %v1372, %v1698
        %v1700 = vpop.f32.mrf.mxu0
        %v1701 = vpop.f32.mrf.mxu0
        %v1702 = vadd.f32 %v1373, %v1701
        %v1703 = vpop.f32.mrf.mxu0
        %1704 = vdwg.mxu0
        %v1706 = vsel %vm1374, %v1363, 0
        %v1709 = vsel %vm1378, %v1371, 0
        %1711 = vmatprep.subr.bf16.mxu0 0
        %1712 = vmatpush1.bf16.msra.mxu0 0
        %1713 = vmatprep.subr.bf16.mxu0 0
        %1714 = vmatpush1.bf16.msra.mxu0 0
        %1715 = vmatprep.subr.bf16.mxu0 0
        %1716 = vmatpush1.bf16.msra.mxu0 0
        %1717 = vmatprep.subr.bf16.mxu0 0
        %1718 = vmatpush1.bf16.msra.mxu0 0
        %1719 = vmatprep.subr.bf16.mxu0 0
        %1720 = vmatpush1.bf16.msra.mxu0 0
        %1721 = vmatprep.subr.bf16.mxu0 0
        %1722 = vmatpush1.bf16.msra.mxu0 0
        %1723 = vmatprep.subr.bf16.mxu0 0
        %1724 = vmatpush1.bf16.msra.mxu0 0
        %1725 = vmatprep.subr.bf16.mxu0 0
        %1726 = vmatpush1.bf16.msra.mxu0 %v1709
        %1727 = vmatprep.subr.bf16.mxu0 0
        %1728 = vmatpush2.bf16.msra.mxu0 0
        %1729 = vmatprep.subr.bf16.mxu0 0
        %1730 = vmatpush2.bf16.msra.mxu0 0
        %1731 = vmatprep.subr.bf16.mxu0 0
        %1732 = vmatpush2.bf16.msra.mxu0 0
        %1733 = vmatprep.subr.bf16.mxu0 0
        %1734 = vmatpush2.bf16.msra.mxu0 0
        %1735 = vmatprep.subr.bf16.mxu0 0
        %1736 = vmatpush2.bf16.msra.mxu0 0
        %1737 = vmatprep.subr.bf16.mxu0 0
        %1738 = vmatpush2.bf16.msra.mxu0 0
        %1739 = vmatprep.subr.bf16.mxu0 0
        %1740 = vmatpush2.bf16.msra.mxu0 0
        %1741 = vmatprep.subr.bf16.mxu0 0
        %1742 = vmatpush2.bf16.msra.mxu0 0
        %1743 = vmatprep.mubr.bf16.mxu0 0
        %1744 = vmatmul.mubr.bf16.gmra.mxu0 %v1706
        %v1745 = vpop.f32.mrf.mxu0
        %v1746 = vadd.f32 %v1372, %v1745
        %v1747 = vpop.f32.mrf.mxu0
        %v1748 = vpop.f32.mrf.mxu0
        %v1749 = vadd.f32 %v1373, %v1748
        %v1750 = vpop.f32.mrf.mxu0
        %1751 = vdwg.mxu0
        %v1752 = vld [vmem:[%s493] sm:$0xff]
        %v1753 = vld [vmem:[%s2] sm:$0xf]
        %v1754 = vld [vmem:[%s2 + $0x4] sm:$0x7]
        %v1755 = vld [vmem:[%s2 + $0x8] sm:$0xf]
        %v1756 = vld [vmem:[%s2 + $0xc] sm:$0x7]
        %v1757 = vld [vmem:[%s2 + $0x10] sm:$0xf]
        %v1758 = vld [vmem:[%s2 + $0x14] sm:$0x7]
        %v1759 = vld [vmem:[%s2 + $0x18] sm:$0xf]
        %v1760 = vld [vmem:[%s2 + $0x1c] sm:$0x7]
        %v1761 = vunpack.c.l.bf16 %v1753
        %v1762 = vunpack.c.l.bf16 %v1754
        %v1763 = vunpack.c.l.bf16 %v1755
        %v1764 = vunpack.c.l.bf16 %v1756
        %v1765 = vunpack.c.l.bf16 %v1757
        %v1766 = vunpack.c.l.bf16 %v1758
        %v1767 = vunpack.c.l.bf16 %v1759
        %v1768 = vunpack.c.l.bf16 %v1760
        %v1770 = vcombine.high %v1752, %v1752
        %v1772 = vunpack.c.l.s4 1966171168
        %v1773 = vunpack.c.0.s8 %v1772
        %v1774 = vlaneseq
        %v1775 = vshrl.u32 %v1774, 7
        %v1776 = vsub.s32 %v1773, %v1775
        %v1777 = vrot.slane %v1752, %v1776
        %v1779 = vunpack.c.l.s4 1966171168
        %v1780 = vunpack.c.0.s8 %v1779
        %v1781 = vlaneseq
        %v1782 = vshrl.u32 %v1781, 7
        %v1783 = vsub.s32 %v1780, %v1782
        %v1784 = vrot.slane %v1770, %v1783
        %v1785 = vcombine.high %v1777, %v1777
        %v1786 = vcombine.high %v1784, %v1784
        %v1788 = vunpack.c.l.s4 1966171168
        %v1789 = vunpack.c.0.s8 %v1788
        %v1790 = vlaneseq
        %v1791 = vshrl.u32 %v1790, 7
        %v1792 = vsub.s32 %v1789, %v1791
        %v1793 = vrot.slane %v1777, %v1792
        %v1795 = vunpack.c.l.s4 1966171168
        %v1796 = vunpack.c.0.s8 %v1795
        %v1797 = vlaneseq
        %v1798 = vshrl.u32 %v1797, 7
        %v1799 = vsub.s32 %v1796, %v1798
        %v1800 = vrot.slane %v1784, %v1799
        %v1802 = vunpack.c.l.s4 1966171168
        %v1803 = vunpack.c.0.s8 %v1802
        %v1804 = vlaneseq
        %v1805 = vshrl.u32 %v1804, 7
        %v1806 = vsub.s32 %v1803, %v1805
        %v1807 = vrot.slane %v1785, %v1806
        %v1809 = vunpack.c.l.s4 1966171168
        %v1810 = vunpack.c.0.s8 %v1809
        %v1811 = vlaneseq
        %v1812 = vshrl.u32 %v1811, 7
        %v1813 = vsub.s32 %v1810, %v1812
        %v1814 = vrot.slane %v1786, %v1813
        %v1815 = vcombine.high %v1793, %v1793
        %v1816 = vcombine.high %v1800, %v1800
        %v1817 = vcombine.high %v1807, %v1807
        %v1818 = vcombine.high %v1814, %v1814
        %v1819 = vlaneseq
        %v1820 = vshrl.u32 %v1819, 7
        %v1821 = vsub.s32 0, %v1820
        %v1822 = vrot.slane %v1793, %v1821
        %v1823 = vlaneseq
        %v1824 = vshrl.u32 %v1823, 7
        %v1825 = vsub.s32 0, %v1824
        %v1826 = vrot.slane %v1807, %v1825
        %v1827 = vlaneseq
        %v1828 = vshrl.u32 %v1827, 7
        %v1829 = vsub.s32 0, %v1828
        %v1830 = vrot.slane %v1815, %v1829
        %v1831 = vlaneseq
        %v1832 = vshrl.u32 %v1831, 7
        %v1833 = vsub.s32 0, %v1832
        %v1834 = vrot.slane %v1817, %v1833
        %v1835 = vlaneseq
        %v1836 = vshrl.u32 %v1835, 7
        %v1837 = vsub.s32 0, %v1836
        %v1838 = vrot.slane %v1800, %v1837
        %v1839 = vlaneseq
        %v1840 = vshrl.u32 %v1839, 7
        %v1841 = vsub.s32 0, %v1840
        %v1842 = vrot.slane %v1814, %v1841
        %v1843 = vlaneseq
        %v1844 = vshrl.u32 %v1843, 7
        %v1845 = vsub.s32 0, %v1844
        %v1846 = vrot.slane %v1816, %v1845
        %v1847 = vlaneseq
        %v1848 = vshrl.u32 %v1847, 7
        %v1849 = vsub.s32 0, %v1848
        %v1850 = vrot.slane %v1818, %v1849
        %1851 = vset.pattern.permute.xlu0 0
        %1852 = vperm.xlu0 %1851, %v1822
        %v1853 = vpop.permute.xlu0 %1852
        %1855 = vset.pattern.permute.xlu0 0
        %1856 = vperm.xlu0 %1855, %v1826
        %v1857 = vpop.permute.xlu0 %1856
        %1859 = vset.pattern.permute.xlu0 0
        %1860 = vperm.xlu0 %1859, %v1830
        %v1861 = vpop.permute.xlu0 %1860
        %1863 = vset.pattern.permute.xlu0 0
        %1864 = vperm.xlu0 %1863, %v1834
        %v1865 = vpop.permute.xlu0 %1864
        %1867 = vset.pattern.permute.xlu0 0
        %1868 = vperm.xlu0 %1867, %v1838
        %v1869 = vpop.permute.xlu0 %1868
        %1871 = vset.pattern.permute.xlu0 0
        %1872 = vperm.xlu0 %1871, %v1842
        %v1873 = vpop.permute.xlu0 %1872
        %1875 = vset.pattern.permute.xlu0 0
        %1876 = vperm.xlu0 %1875, %v1846
        %v1877 = vpop.permute.xlu0 %1876
        %1879 = vset.pattern.permute.xlu0 0
        %1880 = vperm.xlu0 %1879, %v1850
        %v1881 = vpop.permute.xlu0 %1880
        %v1883 = vmul.f32 %v1853, %v1761
        %v1884 = vmul.f32 %v1853, %v1762
        %v1885 = vmul.f32 %v1857, %v1761
        %v1886 = vmul.f32 %v1857, %v1762
        %v1887 = vmul.f32 %v1861, %v1761
        %v1888 = vmul.f32 %v1861, %v1762
        %v1889 = vmul.f32 %v1865, %v1761
        %v1890 = vmul.f32 %v1865, %v1762
        %v1891 = vmul.f32 %v1869, %v1761
        %v1892 = vmul.f32 %v1869, %v1762
        %v1893 = vmul.f32 %v1873, %v1761
        %v1894 = vmul.f32 %v1873, %v1762
        %v1895 = vmul.f32 %v1877, %v1761
        %v1896 = vmul.f32 %v1877, %v1762
        %v1897 = vmul.f32 %v1881, %v1761
        %v1898 = vmul.f32 %v1881, %v1762
        %v1899 = vadd.f32 %v1417, %v1883
        %v1900 = vadd.f32 %v1420, %v1884
        %v1901 = vadd.f32 %v1464, %v1885
        %v1902 = vadd.f32 %v1467, %v1886
        %v1903 = vadd.f32 %v1511, %v1887
        %v1904 = vadd.f32 %v1514, %v1888
        %v1905 = vadd.f32 %v1558, %v1889
        %v1906 = vadd.f32 %v1561, %v1890
        %v1907 = vadd.f32 %v1605, %v1891
        %v1908 = vadd.f32 %v1608, %v1892
        %v1909 = vadd.f32 %v1652, %v1893
        %v1910 = vadd.f32 %v1655, %v1894
        %v1911 = vadd.f32 %v1699, %v1895
        %v1912 = vadd.f32 %v1702, %v1896
        %v1913 = vadd.f32 %v1746, %v1897
        %v1914 = vadd.f32 %v1749, %v1898
        %1915 = vset.pattern.permute.xlu0 1
        %1916 = vperm.xlu0 %1915, %v1822
        %v1917 = vpop.permute.xlu0 %1916
        %1919 = vset.pattern.permute.xlu0 1
        %1920 = vperm.xlu0 %1919, %v1826
        %v1921 = vpop.permute.xlu0 %1920
        %1923 = vset.pattern.permute.xlu0 1
        %1924 = vperm.xlu0 %1923, %v1830
        %v1925 = vpop.permute.xlu0 %1924
        %1927 = vset.pattern.permute.xlu0 1
        %1928 = vperm.xlu0 %1927, %v1834
        %v1929 = vpop.permute.xlu0 %1928
        %1931 = vset.pattern.permute.xlu0 1
        %1932 = vperm.xlu0 %1931, %v1838
        %v1933 = vpop.permute.xlu0 %1932
        %1935 = vset.pattern.permute.xlu0 1
        %1936 = vperm.xlu0 %1935, %v1842
        %v1937 = vpop.permute.xlu0 %1936
        %1939 = vset.pattern.permute.xlu0 1
        %1940 = vperm.xlu0 %1939, %v1846
        %v1941 = vpop.permute.xlu0 %1940
        %1943 = vset.pattern.permute.xlu0 1
        %1944 = vperm.xlu0 %1943, %v1850
        %v1945 = vpop.permute.xlu0 %1944
        %v1947 = vmul.f32 %v1917, %v1763
        %v1948 = vmul.f32 %v1917, %v1764
        %v1949 = vmul.f32 %v1921, %v1763
        %v1950 = vmul.f32 %v1921, %v1764
        %v1951 = vmul.f32 %v1925, %v1763
        %v1952 = vmul.f32 %v1925, %v1764
        %v1953 = vmul.f32 %v1929, %v1763
        %v1954 = vmul.f32 %v1929, %v1764
        %v1955 = vmul.f32 %v1933, %v1763
        %v1956 = vmul.f32 %v1933, %v1764
        %v1957 = vmul.f32 %v1937, %v1763
        %v1958 = vmul.f32 %v1937, %v1764
        %v1959 = vmul.f32 %v1941, %v1763
        %v1960 = vmul.f32 %v1941, %v1764
        %v1961 = vmul.f32 %v1945, %v1763
        %v1962 = vmul.f32 %v1945, %v1764
        %v1963 = vadd.f32 %v1899, %v1947
        %v1964 = vadd.f32 %v1900, %v1948
        %v1965 = vadd.f32 %v1901, %v1949
        %v1966 = vadd.f32 %v1902, %v1950
        %v1967 = vadd.f32 %v1903, %v1951
        %v1968 = vadd.f32 %v1904, %v1952
        %v1969 = vadd.f32 %v1905, %v1953
        %v1970 = vadd.f32 %v1906, %v1954
        %v1971 = vadd.f32 %v1907, %v1955
        %v1972 = vadd.f32 %v1908, %v1956
        %v1973 = vadd.f32 %v1909, %v1957
        %v1974 = vadd.f32 %v1910, %v1958
        %v1975 = vadd.f32 %v1911, %v1959
        %v1976 = vadd.f32 %v1912, %v1960
        %v1977 = vadd.f32 %v1913, %v1961
        %v1978 = vadd.f32 %v1914, %v1962
        %1979 = vset.pattern.permute.xlu0 2
        %1980 = vperm.xlu0 %1979, %v1822
        %v1981 = vpop.permute.xlu0 %1980
        %1983 = vset.pattern.permute.xlu0 2
        %1984 = vperm.xlu0 %1983, %v1826
        %v1985 = vpop.permute.xlu0 %1984
        %1987 = vset.pattern.permute.xlu0 2
        %1988 = vperm.xlu0 %1987, %v1830
        %v1989 = vpop.permute.xlu0 %1988
        %1991 = vset.pattern.permute.xlu0 2
        %1992 = vperm.xlu0 %1991, %v1834
        %v1993 = vpop.permute.xlu0 %1992
        %1995 = vset.pattern.permute.xlu0 2
        %1996 = vperm.xlu0 %1995, %v1838
        %v1997 = vpop.permute.xlu0 %1996
        %1999 = vset.pattern.permute.xlu0 2
        %2000 = vperm.xlu0 %1999, %v1842
        %v2001 = vpop.permute.xlu0 %2000
        %2003 = vset.pattern.permute.xlu0 2
        %2004 = vperm.xlu0 %2003, %v1846
        %v2005 = vpop.permute.xlu0 %2004
        %2007 = vset.pattern.permute.xlu0 2
        %2008 = vperm.xlu0 %2007, %v1850
        %v2009 = vpop.permute.xlu0 %2008
        %v2011 = vmul.f32 %v1981, %v1765
        %v2012 = vmul.f32 %v1981, %v1766
        %v2013 = vmul.f32 %v1985, %v1765
        %v2014 = vmul.f32 %v1985, %v1766
        %v2015 = vmul.f32 %v1989, %v1765
        %v2016 = vmul.f32 %v1989, %v1766
        %v2017 = vmul.f32 %v1993, %v1765
        %v2018 = vmul.f32 %v1993, %v1766
        %v2019 = vmul.f32 %v1997, %v1765
        %v2020 = vmul.f32 %v1997, %v1766
        %v2021 = vmul.f32 %v2001, %v1765
        %v2022 = vmul.f32 %v2001, %v1766
        %v2023 = vmul.f32 %v2005, %v1765
        %v2024 = vmul.f32 %v2005, %v1766
        %v2025 = vmul.f32 %v2009, %v1765
        %v2026 = vmul.f32 %v2009, %v1766
        %v2027 = vadd.f32 %v1963, %v2011
        %v2028 = vadd.f32 %v1964, %v2012
        %v2029 = vadd.f32 %v1965, %v2013
        %v2030 = vadd.f32 %v1966, %v2014
        %v2031 = vadd.f32 %v1967, %v2015
        %v2032 = vadd.f32 %v1968, %v2016
        %v2033 = vadd.f32 %v1969, %v2017
        %v2034 = vadd.f32 %v1970, %v2018
        %v2035 = vadd.f32 %v1971, %v2019
        %v2036 = vadd.f32 %v1972, %v2020
        %v2037 = vadd.f32 %v1973, %v2021
        %v2038 = vadd.f32 %v1974, %v2022
        %v2039 = vadd.f32 %v1975, %v2023
        %v2040 = vadd.f32 %v1976, %v2024
        %v2041 = vadd.f32 %v1977, %v2025
        %v2042 = vadd.f32 %v1978, %v2026
        %2043 = vset.pattern.permute.xlu0 3
        %2044 = vperm.xlu0 %2043, %v1822
        %v2045 = vpop.permute.xlu0 %2044
        %2047 = vset.pattern.permute.xlu0 3
        %2048 = vperm.xlu0 %2047, %v1826
        %v2049 = vpop.permute.xlu0 %2048
        %2051 = vset.pattern.permute.xlu0 3
        %2052 = vperm.xlu0 %2051, %v1830
        %v2053 = vpop.permute.xlu0 %2052
        %2055 = vset.pattern.permute.xlu0 3
        %2056 = vperm.xlu0 %2055, %v1834
        %v2057 = vpop.permute.xlu0 %2056
        %2059 = vset.pattern.permute.xlu0 3
        %2060 = vperm.xlu0 %2059, %v1838
        %v2061 = vpop.permute.xlu0 %2060
        %2063 = vset.pattern.permute.xlu0 3
        %2064 = vperm.xlu0 %2063, %v1842
        %v2065 = vpop.permute.xlu0 %2064
        %2067 = vset.pattern.permute.xlu0 3
        %2068 = vperm.xlu0 %2067, %v1846
        %v2069 = vpop.permute.xlu0 %2068
        %2071 = vset.pattern.permute.xlu0 3
        %2072 = vperm.xlu0 %2071, %v1850
        %v2073 = vpop.permute.xlu0 %2072
        %v2075 = vmul.f32 %v2045, %v1767
        %v2076 = vmul.f32 %v2045, %v1768
        %v2077 = vmul.f32 %v2049, %v1767
        %v2078 = vmul.f32 %v2049, %v1768
        %v2079 = vmul.f32 %v2053, %v1767
        %v2080 = vmul.f32 %v2053, %v1768
        %v2081 = vmul.f32 %v2057, %v1767
        %v2082 = vmul.f32 %v2057, %v1768
        %v2083 = vmul.f32 %v2061, %v1767
        %v2084 = vmul.f32 %v2061, %v1768
        %v2085 = vmul.f32 %v2065, %v1767
        %v2086 = vmul.f32 %v2065, %v1768
        %v2087 = vmul.f32 %v2069, %v1767
        %v2088 = vmul.f32 %v2069, %v1768
        %v2089 = vmul.f32 %v2073, %v1767
        %v2090 = vmul.f32 %v2073, %v1768
        %v2091 = vadd.f32 %v2027, %v2075
        %v2092 = vadd.f32 %v2028, %v2076
        %v2093 = vadd.f32 %v2029, %v2077
        %v2094 = vadd.f32 %v2030, %v2078
        %v2095 = vadd.f32 %v2031, %v2079
        %v2096 = vadd.f32 %v2032, %v2080
        %v2097 = vadd.f32 %v2033, %v2081
        %v2098 = vadd.f32 %v2034, %v2082
        %v2099 = vadd.f32 %v2035, %v2083
        %v2100 = vadd.f32 %v2036, %v2084
        %v2101 = vadd.f32 %v2037, %v2085
        %v2102 = vadd.f32 %v2038, %v2086
        %v2103 = vadd.f32 %v2039, %v2087
        %v2104 = vadd.f32 %v2040, %v2088
        %v2105 = vadd.f32 %v2041, %v2089
        %v2106 = vadd.f32 %v2042, %v2090
        %vm2107 = vcmask 105472
        %v2108 = vsel %vm2107, %v2091, -inf
        %2109 = vmax.xlane.f32.xlu0 %v2108
        %v2110 = vpop.xlane.xlu0 %2109
        %vm2111 = vcmask 102400
        %v2112 = vsel %vm2111, %v2092, -inf
        %2113 = vmax.xlane.f32.xlu0 %v2112
        %v2114 = vpop.xlane.xlu0 %2113
        %v2115 = vsel %vm2107, %v2093, -inf
        %2116 = vmax.xlane.f32.xlu0 %v2115
        %v2117 = vpop.xlane.xlu0 %2116
        %v2118 = vsel %vm2111, %v2094, -inf
        %2119 = vmax.xlane.f32.xlu0 %v2118
        %v2120 = vpop.xlane.xlu0 %2119
        %v2121 = vsel %vm2107, %v2095, -inf
        %2122 = vmax.xlane.f32.xlu0 %v2121
        %v2123 = vpop.xlane.xlu0 %2122
        %v2124 = vsel %vm2111, %v2096, -inf
        %2125 = vmax.xlane.f32.xlu0 %v2124
        %v2126 = vpop.xlane.xlu0 %2125
        %v2127 = vsel %vm2107, %v2097, -inf
        %2128 = vmax.xlane.f32.xlu0 %v2127
        %v2129 = vpop.xlane.xlu0 %2128
        %v2130 = vsel %vm2111, %v2098, -inf
        %2131 = vmax.xlane.f32.xlu0 %v2130
        %v2132 = vpop.xlane.xlu0 %2131
        %v2133 = vsel %vm2107, %v2099, -inf
        %2134 = vmax.xlane.f32.xlu0 %v2133
        %v2135 = vpop.xlane.xlu0 %2134
        %v2136 = vsel %vm2111, %v2100, -inf
        %2137 = vmax.xlane.f32.xlu0 %v2136
        %v2138 = vpop.xlane.xlu0 %2137
        %v2139 = vsel %vm2107, %v2101, -inf
        %2140 = vmax.xlane.f32.xlu0 %v2139
        %v2141 = vpop.xlane.xlu0 %2140
        %v2142 = vsel %vm2111, %v2102, -inf
        %2143 = vmax.xlane.f32.xlu0 %v2142
        %v2144 = vpop.xlane.xlu0 %2143
        %v2145 = vsel %vm2107, %v2103, -inf
        %2146 = vmax.xlane.f32.xlu0 %v2145
        %v2147 = vpop.xlane.xlu0 %2146
        %v2148 = vsel %vm2111, %v2104, -inf
        %2149 = vmax.xlane.f32.xlu0 %v2148
        %v2150 = vpop.xlane.xlu0 %2149
        %v2151 = vsel %vm2107, %v2105, -inf
        %2152 = vmax.xlane.f32.xlu0 %v2151
        %v2153 = vpop.xlane.xlu0 %2152
        %v2154 = vsel %vm2111, %v2106, -inf
        %2155 = vmax.xlane.f32.xlu0 %v2154
        %v2156 = vpop.xlane.xlu0 %2155
        %v2157 = vsub.f32 %v2091, %v2110
        %v2158 = vsub.f32 %v2092, %v2114
        %v2159 = vsub.f32 %v2093, %v2117
        %v2160 = vsub.f32 %v2094, %v2120
        %v2161 = vsub.f32 %v2095, %v2123
        %v2162 = vsub.f32 %v2096, %v2126
        %v2163 = vsub.f32 %v2097, %v2129
        %v2164 = vsub.f32 %v2098, %v2132
        %v2165 = vsub.f32 %v2099, %v2135
        %v2166 = vsub.f32 %v2100, %v2138
        %v2167 = vsub.f32 %v2101, %v2141
        %v2168 = vsub.f32 %v2102, %v2144
        %v2169 = vsub.f32 %v2103, %v2147
        %v2170 = vsub.f32 %v2104, %v2150
        %v2171 = vsub.f32 %v2105, %v2153
        %v2172 = vsub.f32 %v2106, %v2156
        %v2173 = vmul.f32 %v2157, 1.442695
        %v2174 = vpow.pop %v2173
        %v2175 = vmul.f32 %v2158, 1.442695
        %v2176 = vpow.pop %v2175
        %v2177 = vmul.f32 %v2159, 1.442695
        %v2178 = vpow.pop %v2177
        %v2179 = vmul.f32 %v2160, 1.442695
        %v2180 = vpow.pop %v2179
        %v2181 = vmul.f32 %v2161, 1.442695
        %v2182 = vpow.pop %v2181
        %v2183 = vmul.f32 %v2162, 1.442695
        %v2184 = vpow.pop %v2183
        %v2185 = vmul.f32 %v2163, 1.442695
        %v2186 = vpow.pop %v2185
        %v2187 = vmul.f32 %v2164, 1.442695
        %v2188 = vpow.pop %v2187
        %v2189 = vmul.f32 %v2165, 1.442695
        %v2190 = vpow.pop %v2189
        %v2191 = vmul.f32 %v2166, 1.442695
        %v2192 = vpow.pop %v2191
        %v2193 = vmul.f32 %v2167, 1.442695
        %v2194 = vpow.pop %v2193
        %v2195 = vmul.f32 %v2168, 1.442695
        %v2196 = vpow.pop %v2195
        %v2197 = vmul.f32 %v2169, 1.442695
        %v2198 = vpow.pop %v2197
        %v2199 = vmul.f32 %v2170, 1.442695
        %v2200 = vpow.pop %v2199
        %v2201 = vmul.f32 %v2171, 1.442695
        %v2202 = vpow.pop %v2201
        %v2203 = vmul.f32 %v2172, 1.442695
        %v2204 = vpow.pop %v2203
        %v2205 = vsel %vm2107, %v2174, 0.0
        %2206 = vadd.xlane.f32.xlu0 %v2205
        %v2207 = vpop.xlane.xlu0 %2206
        %v2208 = vsel %vm2111, %v2176, 0.0
        %2209 = vadd.xlane.f32.xlu0 %v2208
        %v2210 = vpop.xlane.xlu0 %2209
        %v2211 = vsel %vm2107, %v2178, 0.0
        %2212 = vadd.xlane.f32.xlu0 %v2211
        %v2213 = vpop.xlane.xlu0 %2212
        %v2214 = vsel %vm2111, %v2180, 0.0
        %2215 = vadd.xlane.f32.xlu0 %v2214
        %v2216 = vpop.xlane.xlu0 %2215
        %v2217 = vsel %vm2107, %v2182, 0.0
        %2218 = vadd.xlane.f32.xlu0 %v2217
        %v2219 = vpop.xlane.xlu0 %2218
        %v2220 = vsel %vm2111, %v2184, 0.0
        %2221 = vadd.xlane.f32.xlu0 %v2220
        %v2222 = vpop.xlane.xlu0 %2221
        %v2223 = vsel %vm2107, %v2186, 0.0
        %2224 = vadd.xlane.f32.xlu0 %v2223
        %v2225 = vpop.xlane.xlu0 %2224
        %v2226 = vsel %vm2111, %v2188, 0.0
        %2227 = vadd.xlane.f32.xlu0 %v2226
        %v2228 = vpop.xlane.xlu0 %2227
        %v2229 = vsel %vm2107, %v2190, 0.0
        %2230 = vadd.xlane.f32.xlu0 %v2229
        %v2231 = vpop.xlane.xlu0 %2230
        %v2232 = vsel %vm2111, %v2192, 0.0
        %2233 = vadd.xlane.f32.xlu0 %v2232
        %v2234 = vpop.xlane.xlu0 %2233
        %v2235 = vsel %vm2107, %v2194, 0.0
        %2236 = vadd.xlane.f32.xlu0 %v2235
        %v2237 = vpop.xlane.xlu0 %2236
        %v2238 = vsel %vm2111, %v2196, 0.0
        %2239 = vadd.xlane.f32.xlu0 %v2238
        %v2240 = vpop.xlane.xlu0 %2239
        %v2241 = vsel %vm2107, %v2198, 0.0
        %2242 = vadd.xlane.f32.xlu0 %v2241
        %v2243 = vpop.xlane.xlu0 %2242
        %v2244 = vsel %vm2111, %v2200, 0.0
        %2245 = vadd.xlane.f32.xlu0 %v2244
        %v2246 = vpop.xlane.xlu0 %2245
        %v2247 = vsel %vm2107, %v2202, 0.0
        %2248 = vadd.xlane.f32.xlu0 %v2247
        %v2249 = vpop.xlane.xlu0 %2248
        %v2250 = vsel %vm2111, %v2204, 0.0
        %2251 = vadd.xlane.f32.xlu0 %v2250
        %v2252 = vpop.xlane.xlu0 %2251
        %v2253 = vpack.c.bf16 %v1062, %v1062
        %v2254 = vpack.c.bf16 %v1067, %v1067
        %v2255 = vpack.c.bf16 %v1072, %v1072
        %v2256 = vpack.c.bf16 %v1077, %v1077
        %v2257 = vpack.c.bf16 %v1082, %v1082
        %v2258 = vpack.c.bf16 %v1087, %v1087
        %v2259 = vpack.c.bf16 %v1092, %v1092
        %v2260 = vpack.c.bf16 %v1097, %v1097
        %v2261 = vpack.c.bf16 %v2176, %v2174
        %v2262 = vpack.c.bf16 %v2180, %v2178
        %v2263 = vpack.c.bf16 %v2184, %v2182
        %v2264 = vpack.c.bf16 %v2188, %v2186
        %v2265 = vpack.c.bf16 %v2192, %v2190
        %v2266 = vpack.c.bf16 %v2196, %v2194
        %v2267 = vpack.c.bf16 %v2200, %v2198
        %v2268 = vpack.c.bf16 %v2204, %v2202
        %v2270 = vsel %vm2107, %v2253, 0
        %v2273 = vsel %vm2107, %v2261, 0
        %2275 = vmatprep.subr.bf16.mxu0 0
        %2276 = vmatpush1.bf16.xpose.msra.mxu0 0
        %2277 = vmatprep.subr.bf16.mxu0 0
        %2278 = vmatpush1.bf16.xpose.msra.mxu0 0
        %2279 = vmatprep.subr.bf16.mxu0 0
        %2280 = vmatpush1.bf16.xpose.msra.mxu0 0
        %2281 = vmatprep.subr.bf16.mxu0 0
        %2282 = vmatpush1.bf16.xpose.msra.mxu0 0
        %2283 = vmatprep.subr.bf16.mxu0 0
        %2284 = vmatpush1.bf16.xpose.msra.mxu0 0
        %2285 = vmatprep.subr.bf16.mxu0 0
        %2286 = vmatpush1.bf16.xpose.msra.mxu0 0
        %2287 = vmatprep.subr.bf16.mxu0 0
        %2288 = vmatpush1.bf16.xpose.msra.mxu0 0
        %2289 = vmatprep.subr.bf16.mxu0 0
        %2290 = vmatpush1.bf16.xpose.msra.mxu0 %v2273
        %2291 = vmatprep.subr.bf16.mxu0 0
        %2292 = vmatpush2.bf16.xpose.msra.mxu0 0
        %2293 = vmatprep.subr.bf16.mxu0 0
        %2294 = vmatpush2.bf16.xpose.msra.mxu0 0
        %2295 = vmatprep.subr.bf16.mxu0 0
        %2296 = vmatpush2.bf16.xpose.msra.mxu0 0
        %2297 = vmatprep.subr.bf16.mxu0 0
        %2298 = vmatpush2.bf16.xpose.msra.mxu0 0
        %2299 = vmatprep.subr.bf16.mxu0 0
        %2300 = vmatpush2.bf16.xpose.msra.mxu0 0
        %2301 = vmatprep.subr.bf16.mxu0 0
        %2302 = vmatpush2.bf16.xpose.msra.mxu0 0
        %2303 = vmatprep.subr.bf16.mxu0 0
        %2304 = vmatpush2.bf16.xpose.msra.mxu0 0
        %2305 = vmatprep.subr.bf16.mxu0 0
        %2306 = vmatpush2.bf16.xpose.msra.mxu0 0
        %2307 = vmatprep.mubr.bf16.mxu0 0
        %2308 = vmatmul.mubr.bf16.gmra.mxu0 %v2270
        %v2309 = vpop.f32.mrf.mxu0
        %v2310 = vadd.f32 0.0, %v2309
        %v2311 = vpop.f32.mrf.mxu0
        %v2312 = vpop.f32.mrf.mxu0
        %v2313 = vpop.f32.mrf.mxu0
        %2314 = vdwg.mxu0
        %v2316 = vsel %vm2107, %v2254, 0
        %v2319 = vsel %vm2107, %v2262, 0
        %2321 = vmatprep.subr.bf16.mxu0 0
        %2322 = vmatpush1.bf16.xpose.msra.mxu0 0
        %2323 = vmatprep.subr.bf16.mxu0 0
        %2324 = vmatpush1.bf16.xpose.msra.mxu0 0
        %2325 = vmatprep.subr.bf16.mxu0 0
        %2326 = vmatpush1.bf16.xpose.msra.mxu0 0
        %2327 = vmatprep.subr.bf16.mxu0 0
        %2328 = vmatpush1.bf16.xpose.msra.mxu0 0
        %2329 = vmatprep.subr.bf16.mxu0 0
        %2330 = vmatpush1.bf16.xpose.msra.mxu0 0
        %2331 = vmatprep.subr.bf16.mxu0 0
        %2332 = vmatpush1.bf16.xpose.msra.mxu0 0
        %2333 = vmatprep.subr.bf16.mxu0 0
        %2334 = vmatpush1.bf16.xpose.msra.mxu0 0
        %2335 = vmatprep.subr.bf16.mxu0 0
        %2336 = vmatpush1.bf16.xpose.msra.mxu0 %v2319
        %2337 = vmatprep.subr.bf16.mxu0 0
        %2338 = vmatpush2.bf16.xpose.msra.mxu0 0
        %2339 = vmatprep.subr.bf16.mxu0 0
        %2340 = vmatpush2.bf16.xpose.msra.mxu0 0
        %2341 = vmatprep.subr.bf16.mxu0 0
        %2342 = vmatpush2.bf16.xpose.msra.mxu0 0
        %2343 = vmatprep.subr.bf16.mxu0 0
        %2344 = vmatpush2.bf16.xpose.msra.mxu0 0
        %2345 = vmatprep.subr.bf16.mxu0 0
        %2346 = vmatpush2.bf16.xpose.msra.mxu0 0
        %2347 = vmatprep.subr.bf16.mxu0 0
        %2348 = vmatpush2.bf16.xpose.msra.mxu0 0
        %2349 = vmatprep.subr.bf16.mxu0 0
        %2350 = vmatpush2.bf16.xpose.msra.mxu0 0
        %2351 = vmatprep.subr.bf16.mxu0 0
        %2352 = vmatpush2.bf16.xpose.msra.mxu0 0
        %2353 = vmatprep.mubr.bf16.mxu0 0
        %2354 = vmatmul.mubr.bf16.gmra.mxu0 %v2316
        %v2355 = vpop.f32.mrf.mxu0
        %v2356 = vadd.f32 0.0, %v2355
        %v2357 = vpop.f32.mrf.mxu0
        %v2358 = vpop.f32.mrf.mxu0
        %v2359 = vpop.f32.mrf.mxu0
        %2360 = vdwg.mxu0
        %v2362 = vsel %vm2107, %v2255, 0
        %v2365 = vsel %vm2107, %v2263, 0
        %2367 = vmatprep.subr.bf16.mxu0 0
        %2368 = vmatpush1.bf16.xpose.msra.mxu0 0
        %2369 = vmatprep.subr.bf16.mxu0 0
        %2370 = vmatpush1.bf16.xpose.msra.mxu0 0
        %2371 = vmatprep.subr.bf16.mxu0 0
        %2372 = vmatpush1.bf16.xpose.msra.mxu0 0
        %2373 = vmatprep.subr.bf16.mxu0 0
        %2374 = vmatpush1.bf16.xpose.msra.mxu0 0
        %2375 = vmatprep.subr.bf16.mxu0 0
        %2376 = vmatpush1.bf16.xpose.msra.mxu0 0
        %2377 = vmatprep.subr.bf16.mxu0 0
        %2378 = vmatpush1.bf16.xpose.msra.mxu0 0
        %2379 = vmatprep.subr.bf16.mxu0 0
        %2380 = vmatpush1.bf16.xpose.msra.mxu0 0
        %2381 = vmatprep.subr.bf16.mxu0 0
        %2382 = vmatpush1.bf16.xpose.msra.mxu0 %v2365
        %2383 = vmatprep.subr.bf16.mxu0 0
        %2384 = vmatpush2.bf16.xpose.msra.mxu0 0
        %2385 = vmatprep.subr.bf16.mxu0 0
        %2386 = vmatpush2.bf16.xpose.msra.mxu0 0
        %2387 = vmatprep.subr.bf16.mxu0 0
        %2388 = vmatpush2.bf16.xpose.msra.mxu0 0
        %2389 = vmatprep.subr.bf16.mxu0 0
        %2390 = vmatpush2.bf16.xpose.msra.mxu0 0
        %2391 = vmatprep.subr.bf16.mxu0 0
        %2392 = vmatpush2.bf16.xpose.msra.mxu0 0
        %2393 = vmatprep.subr.bf16.mxu0 0
        %2394 = vmatpush2.bf16.xpose.msra.mxu0 0
        %2395 = vmatprep.subr.bf16.mxu0 0
        %2396 = vmatpush2.bf16.xpose.msra.mxu0 0
        %2397 = vmatprep.subr.bf16.mxu0 0
        %2398 = vmatpush2.bf16.xpose.msra.mxu0 0
        %2399 = vmatprep.mubr.bf16.mxu0 0
        %2400 = vmatmul.mubr.bf16.gmra.mxu0 %v2362
        %v2401 = vpop.f32.mrf.mxu0
        %v2402 = vadd.f32 0.0, %v2401
        %v2403 = vpop.f32.mrf.mxu0
        %v2404 = vpop.f32.mrf.mxu0
        %v2405 = vpop.f32.mrf.mxu0
        %2406 = vdwg.mxu0
        %v2408 = vsel %vm2107, %v2256, 0
        %v2411 = vsel %vm2107, %v2264, 0
        %2413 = vmatprep.subr.bf16.mxu0 0
        %2414 = vmatpush1.bf16.xpose.msra.mxu0 0
        %2415 = vmatprep.subr.bf16.mxu0 0
        %2416 = vmatpush1.bf16.xpose.msra.mxu0 0
        %2417 = vmatprep.subr.bf16.mxu0 0
        %2418 = vmatpush1.bf16.xpose.msra.mxu0 0
        %2419 = vmatprep.subr.bf16.mxu0 0
        %2420 = vmatpush1.bf16.xpose.msra.mxu0 0
        %2421 = vmatprep.subr.bf16.mxu0 0
        %2422 = vmatpush1.bf16.xpose.msra.mxu0 0
        %2423 = vmatprep.subr.bf16.mxu0 0
        %2424 = vmatpush1.bf16.xpose.msra.mxu0 0
        %2425 = vmatprep.subr.bf16.mxu0 0
        %2426 = vmatpush1.bf16.xpose.msra.mxu0 0
        %2427 = vmatprep.subr.bf16.mxu0 0
        %2428 = vmatpush1.bf16.xpose.msra.mxu0 %v2411
        %2429 = vmatprep.subr.bf16.mxu0 0
        %2430 = vmatpush2.bf16.xpose.msra.mxu0 0
        %2431 = vmatprep.subr.bf16.mxu0 0
        %2432 = vmatpush2.bf16.xpose.msra.mxu0 0
        %2433 = vmatprep.subr.bf16.mxu0 0
        %2434 = vmatpush2.bf16.xpose.msra.mxu0 0
        %2435 = vmatprep.subr.bf16.mxu0 0
        %2436 = vmatpush2.bf16.xpose.msra.mxu0 0
        %2437 = vmatprep.subr.bf16.mxu0 0
        %2438 = vmatpush2.bf16.xpose.msra.mxu0 0
        %2439 = vmatprep.subr.bf16.mxu0 0
        %2440 = vmatpush2.bf16.xpose.msra.mxu0 0
        %2441 = vmatprep.subr.bf16.mxu0 0
        %2442 = vmatpush2.bf16.xpose.msra.mxu0 0
        %2443 = vmatprep.subr.bf16.mxu0 0
        %2444 = vmatpush2.bf16.xpose.msra.mxu0 0
        %2445 = vmatprep.mubr.bf16.mxu0 0
        %2446 = vmatmul.mubr.bf16.gmra.mxu0 %v2408
        %v2447 = vpop.f32.mrf.mxu0
        %v2448 = vadd.f32 0.0, %v2447
        %v2449 = vpop.f32.mrf.mxu0
        %v2450 = vpop.f32.mrf.mxu0
        %v2451 = vpop.f32.mrf.mxu0
        %2452 = vdwg.mxu0
        %v2454 = vsel %vm2107, %v2257, 0
        %v2457 = vsel %vm2107, %v2265, 0
        %2459 = vmatprep.subr.bf16.mxu0 0
        %2460 = vmatpush1.bf16.xpose.msra.mxu0 0
        %2461 = vmatprep.subr.bf16.mxu0 0
        %2462 = vmatpush1.bf16.xpose.msra.mxu0 0
        %2463 = vmatprep.subr.bf16.mxu0 0
        %2464 = vmatpush1.bf16.xpose.msra.mxu0 0
        %2465 = vmatprep.subr.bf16.mxu0 0
        %2466 = vmatpush1.bf16.xpose.msra.mxu0 0
        %2467 = vmatprep.subr.bf16.mxu0 0
        %2468 = vmatpush1.bf16.xpose.msra.mxu0 0
        %2469 = vmatprep.subr.bf16.mxu0 0
        %2470 = vmatpush1.bf16.xpose.msra.mxu0 0
        %2471 = vmatprep.subr.bf16.mxu0 0
        %2472 = vmatpush1.bf16.xpose.msra.mxu0 0
        %2473 = vmatprep.subr.bf16.mxu0 0
        %2474 = vmatpush1.bf16.xpose.msra.mxu0 %v2457
        %2475 = vmatprep.subr.bf16.mxu0 0
        %2476 = vmatpush2.bf16.xpose.msra.mxu0 0
        %2477 = vmatprep.subr.bf16.mxu0 0
        %2478 = vmatpush2.bf16.xpose.msra.mxu0 0
        %2479 = vmatprep.subr.bf16.mxu0 0
        %2480 = vmatpush2.bf16.xpose.msra.mxu0 0
        %2481 = vmatprep.subr.bf16.mxu0 0
        %2482 = vmatpush2.bf16.xpose.msra.mxu0 0
        %2483 = vmatprep.subr.bf16.mxu0 0
        %2484 = vmatpush2.bf16.xpose.msra.mxu0 0
        %2485 = vmatprep.subr.bf16.mxu0 0
        %2486 = vmatpush2.bf16.xpose.msra.mxu0 0
        %2487 = vmatprep.subr.bf16.mxu0 0
        %2488 = vmatpush2.bf16.xpose.msra.mxu0 0
        %2489 = vmatprep.subr.bf16.mxu0 0
        %2490 = vmatpush2.bf16.xpose.msra.mxu0 0
        %2491 = vmatprep.mubr.bf16.mxu0 0
        %2492 = vmatmul.mubr.bf16.gmra.mxu0 %v2454
        %v2493 = vpop.f32.mrf.mxu0
        %v2494 = vadd.f32 0.0, %v2493
        %v2495 = vpop.f32.mrf.mxu0
        %v2496 = vpop.f32.mrf.mxu0
        %v2497 = vpop.f32.mrf.mxu0
        %2498 = vdwg.mxu0
        %v2500 = vsel %vm2107, %v2258, 0
        %v2503 = vsel %vm2107, %v2266, 0
        %2505 = vmatprep.subr.bf16.mxu0 0
        %2506 = vmatpush1.bf16.xpose.msra.mxu0 0
        %2507 = vmatprep.subr.bf16.mxu0 0
        %2508 = vmatpush1.bf16.xpose.msra.mxu0 0
        %2509 = vmatprep.subr.bf16.mxu0 0
        %2510 = vmatpush1.bf16.xpose.msra.mxu0 0
        %2511 = vmatprep.subr.bf16.mxu0 0
        %2512 = vmatpush1.bf16.xpose.msra.mxu0 0
        %2513 = vmatprep.subr.bf16.mxu0 0
        %2514 = vmatpush1.bf16.xpose.msra.mxu0 0
        %2515 = vmatprep.subr.bf16.mxu0 0
        %2516 = vmatpush1.bf16.xpose.msra.mxu0 0
        %2517 = vmatprep.subr.bf16.mxu0 0
        %2518 = vmatpush1.bf16.xpose.msra.mxu0 0
        %2519 = vmatprep.subr.bf16.mxu0 0
        %2520 = vmatpush1.bf16.xpose.msra.mxu0 %v2503
        %2521 = vmatprep.subr.bf16.mxu0 0
        %2522 = vmatpush2.bf16.xpose.msra.mxu0 0
        %2523 = vmatprep.subr.bf16.mxu0 0
        %2524 = vmatpush2.bf16.xpose.msra.mxu0 0
        %2525 = vmatprep.subr.bf16.mxu0 0
        %2526 = vmatpush2.bf16.xpose.msra.mxu0 0
        %2527 = vmatprep.subr.bf16.mxu0 0
        %2528 = vmatpush2.bf16.xpose.msra.mxu0 0
        %2529 = vmatprep.subr.bf16.mxu0 0
        %2530 = vmatpush2.bf16.xpose.msra.mxu0 0
        %2531 = vmatprep.subr.bf16.mxu0 0
        %2532 = vmatpush2.bf16.xpose.msra.mxu0 0
        %2533 = vmatprep.subr.bf16.mxu0 0
        %2534 = vmatpush2.bf16.xpose.msra.mxu0 0
        %2535 = vmatprep.subr.bf16.mxu0 0
        %2536 = vmatpush2.bf16.xpose.msra.mxu0 0
        %2537 = vmatprep.mubr.bf16.mxu0 0
        %2538 = vmatmul.mubr.bf16.gmra.mxu0 %v2500
        %v2539 = vpop.f32.mrf.mxu0
        %v2540 = vadd.f32 0.0, %v2539
        %v2541 = vpop.f32.mrf.mxu0
        %v2542 = vpop.f32.mrf.mxu0
        %v2543 = vpop.f32.mrf.mxu0
        %2544 = vdwg.mxu0
        %v2546 = vsel %vm2107, %v2259, 0
        %v2549 = vsel %vm2107, %v2267, 0
        %2551 = vmatprep.subr.bf16.mxu0 0
        %2552 = vmatpush1.bf16.xpose.msra.mxu0 0
        %2553 = vmatprep.subr.bf16.mxu0 0
        %2554 = vmatpush1.bf16.xpose.msra.mxu0 0
        %2555 = vmatprep.subr.bf16.mxu0 0
        %2556 = vmatpush1.bf16.xpose.msra.mxu0 0
        %2557 = vmatprep.subr.bf16.mxu0 0
        %2558 = vmatpush1.bf16.xpose.msra.mxu0 0
        %2559 = vmatprep.subr.bf16.mxu0 0
        %2560 = vmatpush1.bf16.xpose.msra.mxu0 0
        %2561 = vmatprep.subr.bf16.mxu0 0
        %2562 = vmatpush1.bf16.xpose.msra.mxu0 0
        %2563 = vmatprep.subr.bf16.mxu0 0
        %2564 = vmatpush1.bf16.xpose.msra.mxu0 0
        %2565 = vmatprep.subr.bf16.mxu0 0
        %2566 = vmatpush1.bf16.xpose.msra.mxu0 %v2549
        %2567 = vmatprep.subr.bf16.mxu0 0
        %2568 = vmatpush2.bf16.xpose.msra.mxu0 0
        %2569 = vmatprep.subr.bf16.mxu0 0
        %2570 = vmatpush2.bf16.xpose.msra.mxu0 0
        %2571 = vmatprep.subr.bf16.mxu0 0
        %2572 = vmatpush2.bf16.xpose.msra.mxu0 0
        %2573 = vmatprep.subr.bf16.mxu0 0
        %2574 = vmatpush2.bf16.xpose.msra.mxu0 0
        %2575 = vmatprep.subr.bf16.mxu0 0
        %2576 = vmatpush2.bf16.xpose.msra.mxu0 0
        %2577 = vmatprep.subr.bf16.mxu0 0
        %2578 = vmatpush2.bf16.xpose.msra.mxu0 0
        %2579 = vmatprep.subr.bf16.mxu0 0
        %2580 = vmatpush2.bf16.xpose.msra.mxu0 0
        %2581 = vmatprep.subr.bf16.mxu0 0
        %2582 = vmatpush2.bf16.xpose.msra.mxu0 0
        %2583 = vmatprep.mubr.bf16.mxu0 0
        %2584 = vmatmul.mubr.bf16.gmra.mxu0 %v2546
        %v2585 = vpop.f32.mrf.mxu0
        %v2586 = vadd.f32 0.0, %v2585
        %v2587 = vpop.f32.mrf.mxu0
        %v2588 = vpop.f32.mrf.mxu0
        %v2589 = vpop.f32.mrf.mxu0
        %2590 = vdwg.mxu0
        %v2592 = vsel %vm2107, %v2260, 0
        %v2595 = vsel %vm2107, %v2268, 0
        %2597 = vmatprep.subr.bf16.mxu0 0
        %2598 = vmatpush1.bf16.xpose.msra.mxu0 0
        %2599 = vmatprep.subr.bf16.mxu0 0
        %2600 = vmatpush1.bf16.xpose.msra.mxu0 0
        %2601 = vmatprep.subr.bf16.mxu0 0
        %2602 = vmatpush1.bf16.xpose.msra.mxu0 0
        %2603 = vmatprep.subr.bf16.mxu0 0
        %2604 = vmatpush1.bf16.xpose.msra.mxu0 0
        %2605 = vmatprep.subr.bf16.mxu0 0
        %2606 = vmatpush1.bf16.xpose.msra.mxu0 0
        %2607 = vmatprep.subr.bf16.mxu0 0
        %2608 = vmatpush1.bf16.xpose.msra.mxu0 0
        %2609 = vmatprep.subr.bf16.mxu0 0
        %2610 = vmatpush1.bf16.xpose.msra.mxu0 0
        %2611 = vmatprep.subr.bf16.mxu0 0
        %2612 = vmatpush1.bf16.xpose.msra.mxu0 %v2595
        %2613 = vmatprep.subr.bf16.mxu0 0
        %2614 = vmatpush2.bf16.xpose.msra.mxu0 0
        %2615 = vmatprep.subr.bf16.mxu0 0
        %2616 = vmatpush2.bf16.xpose.msra.mxu0 0
        %2617 = vmatprep.subr.bf16.mxu0 0
        %2618 = vmatpush2.bf16.xpose.msra.mxu0 0
        %2619 = vmatprep.subr.bf16.mxu0 0
        %2620 = vmatpush2.bf16.xpose.msra.mxu0 0
        %2621 = vmatprep.subr.bf16.mxu0 0
        %2622 = vmatpush2.bf16.xpose.msra.mxu0 0
        %2623 = vmatprep.subr.bf16.mxu0 0
        %2624 = vmatpush2.bf16.xpose.msra.mxu0 0
        %2625 = vmatprep.subr.bf16.mxu0 0
        %2626 = vmatpush2.bf16.xpose.msra.mxu0 0
        %2627 = vmatprep.subr.bf16.mxu0 0
        %2628 = vmatpush2.bf16.xpose.msra.mxu0 0
        %2629 = vmatprep.mubr.bf16.mxu0 0
        %2630 = vmatmul.mubr.bf16.gmra.mxu0 %v2592
        %v2631 = vpop.f32.mrf.mxu0
        %v2632 = vadd.f32 0.0, %v2631
        %v2633 = vpop.f32.mrf.mxu0
        %v2634 = vpop.f32.mrf.mxu0
        %v2635 = vpop.f32.mrf.mxu0
        %2636 = vdwg.mxu0
        %v2637 = vrcp.pop %v2207
        %v2638 = vrcp.pop %v2210
        %v2639 = vrcp.pop %v2213
        %v2640 = vrcp.pop %v2216
        %v2641 = vrcp.pop %v2219
        %v2642 = vrcp.pop %v2222
        %v2643 = vrcp.pop %v2225
        %v2644 = vrcp.pop %v2228
        %v2645 = vrcp.pop %v2231
        %v2646 = vrcp.pop %v2234
        %v2647 = vrcp.pop %v2237
        %v2648 = vrcp.pop %v2240
        %v2649 = vrcp.pop %v2243
        %v2650 = vrcp.pop %v2246
        %v2651 = vrcp.pop %v2249
        %v2652 = vrcp.pop %v2252
        %v2669 = vlaneseq
        %v2670 = vand.u32 %v2669, 127
        %v2671 = vlaneseq
        %v2672 = vshrl.u32 %v2671, 7
        %v2673 = vsub.s32 %v2670, %v2672
        %v2674 = vrot.slane %v2637, %v2673
        %v2675 = vadd.s32 %v2670, 4294967288
        %v2676 = vlaneseq
        %v2677 = vshrl.u32 %v2676, 7
        %v2678 = vsub.s32 %v2675, %v2677
        %v2679 = vrot.slane %v2638, %v2678
        %vm2680 = vcmask 130112
        %v2681 = vsel %vm2680, %v2679, %v2674
        %v2682 = vlaneseq
        %v2683 = vshrl.u32 %v2682, 7
        %v2684 = vsub.s32 %v2670, %v2683
        %v2685 = vrot.slane %v2639, %v2684
        %v2686 = vlaneseq
        %v2687 = vshrl.u32 %v2686, 7
        %v2688 = vsub.s32 %v2675, %v2687
        %v2689 = vrot.slane %v2640, %v2688
        %v2690 = vsel %vm2680, %v2689, %v2685
        %v2691 = vlaneseq
        %v2692 = vshrl.u32 %v2691, 7
        %v2693 = vsub.s32 %v2670, %v2692
        %v2694 = vrot.slane %v2641, %v2693
        %v2695 = vlaneseq
        %v2696 = vshrl.u32 %v2695, 7
        %v2697 = vsub.s32 %v2675, %v2696
        %v2698 = vrot.slane %v2642, %v2697
        %v2699 = vsel %vm2680, %v2698, %v2694
        %v2700 = vlaneseq
        %v2701 = vshrl.u32 %v2700, 7
        %v2702 = vsub.s32 %v2670, %v2701
        %v2703 = vrot.slane %v2643, %v2702
        %v2704 = vlaneseq
        %v2705 = vshrl.u32 %v2704, 7
        %v2706 = vsub.s32 %v2675, %v2705
        %v2707 = vrot.slane %v2644, %v2706
        %v2708 = vsel %vm2680, %v2707, %v2703
        %v2709 = vlaneseq
        %v2710 = vshrl.u32 %v2709, 7
        %v2711 = vsub.s32 %v2670, %v2710
        %v2712 = vrot.slane %v2645, %v2711
        %v2713 = vlaneseq
        %v2714 = vshrl.u32 %v2713, 7
        %v2715 = vsub.s32 %v2675, %v2714
        %v2716 = vrot.slane %v2646, %v2715
        %v2717 = vsel %vm2680, %v2716, %v2712
        %v2718 = vlaneseq
        %v2719 = vshrl.u32 %v2718, 7
        %v2720 = vsub.s32 %v2670, %v2719
        %v2721 = vrot.slane %v2647, %v2720
        %v2722 = vlaneseq
        %v2723 = vshrl.u32 %v2722, 7
        %v2724 = vsub.s32 %v2675, %v2723
        %v2725 = vrot.slane %v2648, %v2724
        %v2726 = vsel %vm2680, %v2725, %v2721
        %v2727 = vlaneseq
        %v2728 = vshrl.u32 %v2727, 7
        %v2729 = vsub.s32 %v2670, %v2728
        %v2730 = vrot.slane %v2649, %v2729
        %v2731 = vlaneseq
        %v2732 = vshrl.u32 %v2731, 7
        %v2733 = vsub.s32 %v2675, %v2732
        %v2734 = vrot.slane %v2650, %v2733
        %v2735 = vsel %vm2680, %v2734, %v2730
        %v2736 = vlaneseq
        %v2737 = vshrl.u32 %v2736, 7
        %v2738 = vsub.s32 %v2670, %v2737
        %v2739 = vrot.slane %v2651, %v2738
        %v2740 = vlaneseq
        %v2741 = vshrl.u32 %v2740, 7
        %v2742 = vsub.s32 %v2675, %v2741
        %v2743 = vrot.slane %v2652, %v2742
        %v2744 = vsel %vm2680, %v2743, %v2739
        %vm2745 = vcmask 1042434
        %v2746 = vsel %vm2745, %v2681, %v2681
        %vm2747 = vcmask 1043459
        %v2748 = vsel %vm2747, %v2681, %v2746
        %vm2749 = vcmask 1044484
        %v2750 = vsel %vm2749, %v2681, %v2748
        %vm2751 = vcmask 1045509
        %v2752 = vsel %vm2751, %v2681, %v2750
        %vm2753 = vcmask 1046534
        %v2754 = vsel %vm2753, %v2681, %v2752
        %vm2755 = vcmask 1047559
        %v2756 = vsel %vm2755, %v2681, %v2754
        %v2757 = vsel %vm2745, %v2690, %v2690
        %v2758 = vsel %vm2747, %v2690, %v2757
        %v2759 = vsel %vm2749, %v2690, %v2758
        %v2760 = vsel %vm2751, %v2690, %v2759
        %v2761 = vsel %vm2753, %v2690, %v2760
        %v2762 = vsel %vm2755, %v2690, %v2761
        %v2763 = vsel %vm2745, %v2699, %v2699
        %v2764 = vsel %vm2747, %v2699, %v2763
        %v2765 = vsel %vm2749, %v2699, %v2764
        %v2766 = vsel %vm2751, %v2699, %v2765
        %v2767 = vsel %vm2753, %v2699, %v2766
        %v2768 = vsel %vm2755, %v2699, %v2767
        %v2769 = vsel %vm2745, %v2708, %v2708
        %v2770 = vsel %vm2747, %v2708, %v2769
        %v2771 = vsel %vm2749, %v2708, %v2770
        %v2772 = vsel %vm2751, %v2708, %v2771
        %v2773 = vsel %vm2753, %v2708, %v2772
        %v2774 = vsel %vm2755, %v2708, %v2773
        %v2775 = vsel %vm2745, %v2717, %v2717
        %v2776 = vsel %vm2747, %v2717, %v2775
        %v2777 = vsel %vm2749, %v2717, %v2776
        %v2778 = vsel %vm2751, %v2717, %v2777
        %v2779 = vsel %vm2753, %v2717, %v2778
        %v2780 = vsel %vm2755, %v2717, %v2779
        %v2781 = vsel %vm2745, %v2726, %v2726
        %v2782 = vsel %vm2747, %v2726, %v2781
        %v2783 = vsel %vm2749, %v2726, %v2782
        %v2784 = vsel %vm2751, %v2726, %v2783
        %v2785 = vsel %vm2753, %v2726, %v2784
        %v2786 = vsel %vm2755, %v2726, %v2785
        %v2787 = vsel %vm2745, %v2735, %v2735
        %v2788 = vsel %vm2747, %v2735, %v2787
        %v2789 = vsel %vm2749, %v2735, %v2788
        %v2790 = vsel %vm2751, %v2735, %v2789
        %v2791 = vsel %vm2753, %v2735, %v2790
        %v2792 = vsel %vm2755, %v2735, %v2791
        %v2793 = vsel %vm2745, %v2744, %v2744
        %v2794 = vsel %vm2747, %v2744, %v2793
        %v2795 = vsel %vm2749, %v2744, %v2794
        %v2796 = vsel %vm2751, %v2744, %v2795
        %v2797 = vsel %vm2753, %v2744, %v2796
        %v2798 = vsel %vm2755, %v2744, %v2797
        %v2807 = vmul.f32 %v2310, %v2756
        %v2808 = vmul.f32 %v2356, %v2762
        %v2809 = vmul.f32 %v2402, %v2768
        %v2810 = vmul.f32 %v2448, %v2774
        %v2811 = vmul.f32 %v2494, %v2780
        %v2812 = vmul.f32 %v2540, %v2786
        %v2813 = vmul.f32 %v2586, %v2792
        %v2814 = vmul.f32 %v2632, %v2798
        %v2815 = vld [vmem:[%s498] sm:$0xff]
        %v2816 = vld [vmem:[%s498 + $0x8] sm:$0xff]
        %v2817 = vld [vmem:[%s498 + $0x10] sm:$0xff]
        %v2818 = vld [vmem:[%s498 + $0x18] sm:$0xff]
        %v2819 = vld [vmem:[%s503] sm:$0xff]
        %v2820 = vld [vmem:[%s503 + $0x8] sm:$0xff]
        %v2821 = vld [vmem:[%s503 + $0x10] sm:$0xff]
        %v2822 = vld [vmem:[%s503 + $0x18] sm:$0xff]
        %2824 = vset.pattern.permute.xlu0 0
        %2825 = vperm.xlu0 %2824, %v2819
        %v2826 = vpop.permute.xlu0 %2825
        %2829 = vset.pattern.permute.xlu0 0
        %2830 = vperm.xlu0 %2829, %v2820
        %v2831 = vpop.permute.xlu0 %2830
        %2834 = vset.pattern.permute.xlu0 0
        %2835 = vperm.xlu0 %2834, %v2821
        %v2836 = vpop.permute.xlu0 %2835
        %2839 = vset.pattern.permute.xlu0 0
        %2840 = vperm.xlu0 %2839, %v2822
        %v2841 = vpop.permute.xlu0 %2840
        %vm2843 = vcmask 523264
        %v2845 = vsel %vm2843, %v2815, 0
        %v2848 = vsel %vm2843, %v2816, 0
        %v2851 = vsel %vm2843, %v2817, 0
        %v2854 = vsel %vm2843, %v2818, 0
        %2856 = vmatprep.subr.mxu0 0.0
        %2857 = vmatpush1.msra.mxu0 0.0
        %2858 = vmatprep.subr.mxu0 0.0
        %2859 = vmatpush1.msra.mxu0 0.0
        %2860 = vmatprep.subr.mxu0 0.0
        %2861 = vmatpush1.msra.mxu0 0.0
        %2862 = vmatprep.subr.mxu0 0.0
        %2863 = vmatpush1.msra.mxu0 0.0
        %2864 = vmatprep.subr.mxu0 0.0
        %2865 = vmatpush1.msra.mxu0 0.0
        %2866 = vmatprep.subr.mxu0 0.0
        %2867 = vmatpush1.msra.mxu0 0.0
        %2868 = vmatprep.subr.mxu0 0.0
        %2869 = vmatpush1.msra.mxu0 0.0
        %2870 = vmatprep.subr.mxu0 0.0
        %2871 = vmatpush1.msra.mxu0 0.0
        %2872 = vmatprep.subr.mxu0 0.0
        %2873 = vmatpush1.msra.mxu0 %v2814
        %2874 = vmatprep.subr.mxu0 0.0
        %2875 = vmatpush1.msra.mxu0 %v2813
        %2876 = vmatprep.subr.mxu0 0.0
        %2877 = vmatpush1.msra.mxu0 %v2812
        %2878 = vmatprep.subr.mxu0 0.0
        %2879 = vmatpush1.msra.mxu0 %v2811
        %2880 = vmatprep.subr.mxu0 0.0
        %2881 = vmatpush1.msra.mxu0 %v2810
        %2882 = vmatprep.subr.mxu0 0.0
        %2883 = vmatpush1.msra.mxu0 %v2809
        %2884 = vmatprep.subr.mxu0 0.0
        %2885 = vmatpush1.msra.mxu0 %v2808
        %2886 = vmatprep.subr.mxu0 0.0
        %2887 = vmatpush1.msra.mxu0 %v2807
        %2888 = vmatprep.subr.mxu0 0.0
        %2889 = vmatpush2.msra.mxu0 0.0
        %2890 = vmatprep.subr.mxu0 0.0
        %2891 = vmatpush2.msra.mxu0 0.0
        %2892 = vmatprep.subr.mxu0 0.0
        %2893 = vmatpush2.msra.mxu0 0.0
        %2894 = vmatprep.subr.mxu0 0.0
        %2895 = vmatpush2.msra.mxu0 0.0
        %2896 = vmatprep.subr.mxu0 0.0
        %2897 = vmatpush2.msra.mxu0 0.0
        %2898 = vmatprep.subr.mxu0 0.0
        %2899 = vmatpush2.msra.mxu0 0.0
        %2900 = vmatprep.subr.mxu0 0.0
        %2901 = vmatpush2.msra.mxu0 0.0
        %2902 = vmatprep.subr.mxu0 0.0
        %2903 = vmatpush2.msra.mxu0 0.0
        %2904 = vmatprep.subr.mxu0 0.0
        %2905 = vmatpush2.msra.mxu0 0.0
        %2906 = vmatprep.subr.mxu0 0.0
        %2907 = vmatpush2.msra.mxu0 0.0
        %2908 = vmatprep.subr.mxu0 0.0
        %2909 = vmatpush2.msra.mxu0 0.0
        %2910 = vmatprep.subr.mxu0 0.0
        %2911 = vmatpush2.msra.mxu0 0.0
        %2912 = vmatprep.subr.mxu0 0.0
        %2913 = vmatpush2.msra.mxu0 0.0
        %2914 = vmatprep.subr.mxu0 0.0
        %2915 = vmatpush2.msra.mxu0 0.0
        %2916 = vmatprep.subr.mxu0 0.0
        %2917 = vmatpush2.msra.mxu0 0.0
        %2918 = vmatprep.subr.mxu0 0.0
        %2919 = vmatpush2.msra.mxu0 0.0
        %2920 = vmatprep.mubr.f32.mxu0 0.0
        %2921 = vmatmul.mubr.f32.gmra.mxu0 %v2845
        %v2922 = vpop.f32.mrf.mxu0
        %v2923 = vadd.f32 %v2826, %v2922
        %v2924 = vpop.f32.mrf.mxu0
        %2925 = vmatprep.mubr.f32.mxu0 0.0
        %2926 = vmatmul.mubr.f32.gmra.mxu0 %v2848
        %v2927 = vpop.f32.mrf.mxu0
        %v2928 = vadd.f32 %v2831, %v2927
        %v2929 = vpop.f32.mrf.mxu0
        %2930 = vmatprep.mubr.f32.mxu0 0.0
        %2931 = vmatmul.mubr.f32.gmra.mxu0 %v2851
        %v2932 = vpop.f32.mrf.mxu0
        %v2933 = vadd.f32 %v2836, %v2932
        %v2934 = vpop.f32.mrf.mxu0
        %2935 = vmatprep.mubr.f32.mxu0 0.0
        %2936 = vmatmul.mubr.f32.gmra.mxu0 %v2854
        %v2937 = vpop.f32.mrf.mxu0
        %v2938 = vadd.f32 %v2841, %v2937
        %v2939 = vpop.f32.mrf.mxu0
        %2940 = vdwg.mxu0
        %v2941 = vadd.f32 %v670, %v2923
        %v2942 = vadd.f32 %v671, %v2928
        %v2943 = vadd.f32 %v672, %v2933
        %v2944 = vadd.f32 %v673, %v2938
        %v2945 = vmax.f32 %v2941, 0.0
        %v2946 = vmax.f32 %v2942, 0.0
        %v2947 = vmax.f32 %v2943, 0.0
        %v2948 = vmax.f32 %v2944, 0.0
        %2949 = vst.msk [vmem:[#allocation2] sm:$0xff] %vm2107, %v2945
        %2950 = vst.msk [vmem:[#allocation2 + $0x8] sm:$0xff] %vm2107, %v2946
        %2951 = vst.msk [vmem:[#allocation2 + $0x10] sm:$0xff] %vm2107, %v2947
        %2952 = vst.msk [vmem:[#allocation2 + $0x18] sm:$0xff] %vm2107, %v2948
        %p2953 = scmp.eq.s32.totalorder %s25, 2
        // Predicated region
        $region77: #{tpu_custom_call.1} parent=71 // pred_check
          %p2954 = pneg %p2953
        $region78: #{tpu_custom_call.1} parent=71 // pred_check_branch
          %2956 = sbr.rel (%p2954) target = $region80
        $region79: #{tpu_custom_call.1} parent=71 // pred_region
          %v2957 = vld [vmem:[%s11] sm:$0xff]
          %v2958 = vld [vmem:[%s11 + $0x8] sm:$0xff]
          %v2959 = vld [vmem:[%s11 + $0x10] sm:$0xff]
          %v2960 = vld [vmem:[%s11 + $0x18] sm:$0xff]
          %v2961 = vld [vmem:[%s12] sm:$0x1]
          %v2963 = vlaneseq
          %v2964 = vshrl.u32 %v2963, 7
          %v2965 = vsub.s32 0, %v2964
          %v2966 = vrot.slane %v2961, %v2965
          %2972 = vrot.lane.b32.xlu0 %v2945, 117
          %v2973 = vpop.permute.xlu0 %2972
          %2974 = vrot.lane.b32.xlu0 %v2946, 117
          %v2975 = vpop.permute.xlu0 %2974
          %2976 = vrot.lane.b32.xlu0 %v2947, 117
          %v2977 = vpop.permute.xlu0 %2976
          %2978 = vrot.lane.b32.xlu0 %v2948, 117
          %v2979 = vpop.permute.xlu0 %2978
          %2984 = vxpose.xlu0.b32.start [1/16] %v2973, 128
          %2985 = vxpose.xlu0.b32.cont [2/16] %v2975, 128
          %2986 = vxpose.xlu0.b32.cont [3/16] %v2977, 128
          %2987 = vxpose.xlu0.b32.cont [4/16] %v2979, 128
          %2988 = vxpose.xlu0.b32.cont [5/16] 0.0, 128
          %2989 = vxpose.xlu0.b32.cont [6/16] 0.0, 128
          %2990 = vxpose.xlu0.b32.cont [7/16] 0.0, 128
          %2991 = vxpose.xlu0.b32.cont [8/16] 0.0, 128
          %2992 = vxpose.xlu0.b32.cont [9/16] 0.0, 128
          %2993 = vxpose.xlu0.b32.cont [10/16] 0.0, 128
          %2994 = vxpose.xlu0.b32.cont [11/16] 0.0, 128
          %2995 = vxpose.xlu0.b32.cont [12/16] 0.0, 128
          %2996 = vxpose.xlu0.b32.cont [13/16] 0.0, 128
          %2997 = vxpose.xlu0.b32.cont [14/16] 0.0, 128
          %2998 = vxpose.xlu0.b32.cont [15/16] 0.0, 128
          %2999 = vxpose.xlu0.b32.end [16/16] 0.0, 128
          %v3000 = vpop.trf.xlu0
          %v3001 = vpop.trf.xlu0
          %v3002 = vpop.trf.xlu0
          %v3003 = vpop.trf.xlu0
          %v3004 = vpop.trf.xlu0
          %v3005 = vpop.trf.xlu0
          %v3006 = vpop.trf.xlu0
          %v3007 = vpop.trf.xlu0
          %v3008 = vpop.trf.xlu0
          %v3009 = vpop.trf.xlu0
          %v3010 = vpop.trf.xlu0
          %v3011 = vpop.trf.xlu0
          %v3012 = vpop.trf.xlu0
          %v3013 = vpop.trf.xlu0
          %v3014 = vpop.trf.xlu0
          %v3015 = vpop.trf.xlu0
          %v3017 = vsel %vm842, %v3000, 0
          %3019 = vmatprep.subr.mxu0 0.0
          %3020 = vmatpush1.msra.mxu0 0.0
          %3021 = vmatprep.subr.mxu0 0.0
          %3022 = vmatpush1.msra.mxu0 0.0
          %3023 = vmatprep.subr.mxu0 0.0
          %3024 = vmatpush1.msra.mxu0 0.0
          %3025 = vmatprep.subr.mxu0 0.0
          %3026 = vmatpush1.msra.mxu0 0.0
          %3027 = vmatprep.subr.mxu0 0.0
          %3028 = vmatpush1.msra.mxu0 0.0
          %3029 = vmatprep.subr.mxu0 0.0
          %3030 = vmatpush1.msra.mxu0 0.0
          %3031 = vmatprep.subr.mxu0 0.0
          %3032 = vmatpush1.msra.mxu0 0.0
          %3033 = vmatprep.subr.mxu0 0.0
          %3034 = vmatpush1.msra.mxu0 0.0
          %3035 = vmatprep.subr.mxu0 0.0
          %3036 = vmatpush1.msra.mxu0 0.0
          %3037 = vmatprep.subr.mxu0 0.0
          %3038 = vmatpush1.msra.mxu0 0.0
          %3039 = vmatprep.subr.mxu0 0.0
          %3040 = vmatpush1.msra.mxu0 0.0
          %3041 = vmatprep.subr.mxu0 0.0
          %3042 = vmatpush1.msra.mxu0 0.0
          %3043 = vmatprep.subr.mxu0 0.0
          %3044 = vmatpush1.msra.mxu0 %v2960
          %3045 = vmatprep.subr.mxu0 0.0
          %3046 = vmatpush1.msra.mxu0 %v2959
          %3047 = vmatprep.subr.mxu0 0.0
          %3048 = vmatpush1.msra.mxu0 %v2958
          %3049 = vmatprep.subr.mxu0 0.0
          %3050 = vmatpush1.msra.mxu0 %v2957
          %3051 = vmatprep.subr.mxu0 0.0
          %3052 = vmatpush2.msra.mxu0 0.0
          %3053 = vmatprep.subr.mxu0 0.0
          %3054 = vmatpush2.msra.mxu0 0.0
          %3055 = vmatprep.subr.mxu0 0.0
          %3056 = vmatpush2.msra.mxu0 0.0
          %3057 = vmatprep.subr.mxu0 0.0
          %3058 = vmatpush2.msra.mxu0 0.0
          %3059 = vmatprep.subr.mxu0 0.0
          %3060 = vmatpush2.msra.mxu0 0.0
          %3061 = vmatprep.subr.mxu0 0.0
          %3062 = vmatpush2.msra.mxu0 0.0
          %3063 = vmatprep.subr.mxu0 0.0
          %3064 = vmatpush2.msra.mxu0 0.0
          %3065 = vmatprep.subr.mxu0 0.0
          %3066 = vmatpush2.msra.mxu0 0.0
          %3067 = vmatprep.subr.mxu0 0.0
          %3068 = vmatpush2.msra.mxu0 0.0
          %3069 = vmatprep.subr.mxu0 0.0
          %3070 = vmatpush2.msra.mxu0 0.0
          %3071 = vmatprep.subr.mxu0 0.0
          %3072 = vmatpush2.msra.mxu0 0.0
          %3073 = vmatprep.subr.mxu0 0.0
          %3074 = vmatpush2.msra.mxu0 0.0
          %3075 = vmatprep.subr.mxu0 0.0
          %3076 = vmatpush2.msra.mxu0 0.0
          %3077 = vmatprep.subr.mxu0 0.0
          %3078 = vmatpush2.msra.mxu0 0.0
          %3079 = vmatprep.subr.mxu0 0.0
          %3080 = vmatpush2.msra.mxu0 0.0
          %3081 = vmatprep.subr.mxu0 0.0
          %3082 = vmatpush2.msra.mxu0 0.0
          %3083 = vmatprep.mubr.f32.mxu0 0.0
          %3084 = vmatmul.mubr.f32.gmra.mxu0 %v3017
          %v3085 = vpop.f32.mrf.mxu0
          %v3086 = vadd.f32 %v2966, %v3085
          %v3087 = vpop.f32.mrf.mxu0
          %3088 = vdwg.mxu0
          %vm3089 = vcmask 123904
          %3090 = vst.msk [vmem:[#allocation3] sm:$0x3] %vm3089, %v3086
        $region80: #{tpu_custom_call.1} parent=71 // pred_fallthru
          _
        // Predicated region
        $region81: #{tpu_custom_call.1} parent=71 // pred_check
          %p3091 = pneg %p336
        $region82: #{tpu_custom_call.1} parent=71 // pred_check_branch
          %3093 = sbr.rel (%p3091) target = $region84
        $region83: #{tpu_custom_call.1} parent=71 // pred_region
          %s3095 = ssub.s32 32, 32
          %3096 = vsyncadd [#allocation4], %s3095
          %s3098 = sshll.u32 [#allocation3], 4
          %s3099 = int_to_ptr.vmem [resolvable:$true] %s3098
          %3101 = dma.vmem_to_hbm [thread:$0]  %s3099, 32, %s13, [#allocation4]
        $region84: #{tpu_custom_call.1} parent=71 // pred_fallthru
          _
        // Predicated region
        $region85: #{tpu_custom_call.1} parent=71 // pred_check
          %p3102 = pneg %p336
        $region86: #{tpu_custom_call.1} parent=71 // pred_check_branch
          %3104 = sbr.rel (%p3102) target = $region88
        $region87: #{tpu_custom_call.1} parent=71 // pred_region
          %3105 = dma.done [#allocation4], 32
        $region88: #{tpu_custom_call.1} parent=71 // pred_fallthru
          _
      $region72: #{tpu_custom_call.1} parent=5 // pred_fallthru
        _
      %p3106 = scmp.le.s32.totalorder 2, %s20
      // Predicated region
      $region89: #{tpu_custom_call.1} parent=5 // pred_check
        %p3107 = pneg %p3106
      $region90: #{tpu_custom_call.1} parent=5 // pred_check_branch
        %3109 = sbr.rel (%p3107) target = $region92
      $region91: #{tpu_custom_call.1} parent=5 // pred_region
        %s3110 = ssub.s32 %s20, 2
      $region92: #{tpu_custom_call.1} parent=5 // pred_fallthru
        _
    $region6: #{tpu_custom_call.1} parent=1 // loop_footer
      %s24 = sadd.s32 1, %s20
    $region7: #{tpu_custom_call.1} parent=1 // loop_footer_branch
      %19 = sbr.rel target = $region3
    $region8: #{tpu_custom_call.1} parent=1 // loop_exit
      _
    %3111 = vsyncpa [#allocation4], 1
    %s3112 = scalar_lea.sflag [#allocation4], 1
    %3113 = vsyncpa %s3112, 1

</llo_original>
